<compile_context>
chip_gen: v7x
topology: tpu7x:2x2x1
jax: 0.10.0
libtpu: 0.0.40
codegen_flags: <defaults>
</compile_context>

<pallas_src>
import functools
import math

import jax
import jax.numpy as jnp
from jax.experimental import pallas as pl
from jax.experimental.pallas import tpu as pltpu

# Below v7x's 64 MiB physical VMEM, above the 16/32 MiB default scoped limits.
_VMEM_LIMIT_BYTES = 48 * 1024 * 1024


def _pick_strip_rows(H, W, Cout, pool):
    """Strip height: divides H, even when pooling, ~<=2 MiB f32 accumulator,
    and (when possible) leaves >=2 strips so the grid has pipelining depth."""
    budget_rows = max(2, (2 * 1024 * 1024) // max(1, W * Cout * 4))
    step = 2 if pool else 1
    cands = [s for s in range(step, H + 1, step) if H % s == 0]
    if not cands:
        return H
    ok = [s for s in cands if s <= budget_rows]
    sh = max(ok) if ok else min(cands)
    if sh == H and len(cands) > 1:          # prefer >=2 strips for pipeline depth
        sh = max(s for s in cands if s < H)
    return sh


# ----------------------------------------------------------------------------
# Pallas kernels
# ----------------------------------------------------------------------------
def _conv3x3_relu_pool_kernel(x_ref, w_ref, b_ref, o_ref, xp_ref, acc_ref,
                              *pool_scratch, H, W, Cin, Cout, SH, pool):
    """Fused 3x3 'same' conv + bias (+ optional 2x2/s2 maxpool) + ReLU, NHWC.

    Grid: (batch, H-strip).  Each step computes SH output rows of one image.

    x_ref  : (1, H, W, Cin)      bf16  full image (resident across the strip axis)
    w_ref  : (3, 3, Cin, Cout)   bf16
    b_ref  : (1, Cout)           f32
    o_ref  : (1, SHo, Wo, Cout)  bf16  (SHo, Wo) = (SH//2, W//2) if pool else (SH, W)
    xp_ref : (SH+2, W+2, Cin)    bf16  zero-halo strip scratch
    acc_ref: (SH*W, Cout)        f32   explicit VMEM conv accumulator
    pool_scratch: ((SH//2, W, Cout) f32,) iff pool
    """
    si = pl.program_id(1)
    rs = pl.multiple_of(si * SH, SH)          # first input row of this strip

    # ---- build the zero-padded bf16 strip (halo-only zero fill) -------------
    zcol = jnp.zeros((SH + 2, 1, Cin), jnp.bfloat16)
    xp_ref[:, 0:1, :] = zcol                  # left halo column (covers corners)
    xp_ref[:, W + 1:W + 2, :] = zcol          # right halo column (covers corners)
    xp_ref[1:SH + 1, 1:W + 1, :] = x_ref[:, pl.ds(rs, SH), :, :][0]
    # top / bottom halo rows: neighbour strip's edge row, zeros at image edges
    top = x_ref[:, pl.ds(jnp.maximum(rs - 1, 0), 1), :, :][0]       # (1, W, Cin)
    xp_ref[0:1, 1:W + 1, :] = jnp.where(rs > 0, top, jnp.zeros_like(top))
    bot = x_ref[:, pl.ds(jnp.minimum(rs + SH, H - 1), 1), :, :][0]
    xp_ref[SH + 1:SH + 2, 1:W + 1, :] = jnp.where(rs + SH < H, bot,
                                                  jnp.zeros_like(bot))

    # ---- conv: 9 MXU dots, f32 accumulation into a VMEM scratch -------------
    # Accumulator starts as the broadcast bias (saves a VPU pass at the end).
    acc_ref[...] = jnp.broadcast_to(b_ref[...], (SH * W, Cout))
    for kh in range(3):
        for kw in range(3):
            patch = xp_ref[kh:kh + SH, kw:kw + W, :].reshape(SH * W, Cin)
            acc_ref[...] += jnp.dot(patch, w_ref[kh, kw],
                                    preferred_element_type=jnp.float32)

    # ---- fused 2x2/s2 max-pool; ReLU applied after (max/ReLU commute) -------
    if pool:
        sho, wo = SH // 2, W // 2
        yh_ref, = pool_scratch
        # pool over H: leading-dim split (layout free) + reduce over pair axis
        yh_ref[...] = jnp.max(acc_ref[...].reshape(sho, 2, W, Cout), axis=1)
        # pool over W: stride-2 reads straight off the strip-sized scratch
        even = yh_ref[:, pl.ds(0, wo, 2), :]
        odd = yh_ref[:, pl.ds(1, wo, 2), :]
        y = jnp.maximum(jnp.maximum(even, odd), 0.0)
        o_ref[...] = y[None].astype(o_ref.dtype)
    else:
        y = jnp.maximum(acc_ref[...], 0.0)
        o_ref[...] = y.reshape(1, SH, W, Cout).astype(o_ref.dtype)


def _classifier_kernel(x_ref, w0_ref, b0_ref, w1_ref, b1_ref, w2_ref, b2_ref,
                       o_ref):
    """Fused Linear+ReLU -> Linear+ReLU -> Linear over a (TB, In) batch tile.

    Dropout = identity (eval semantics).  All dots accumulate in f32; the
    inter-layer activations are cast back to bf16 (MXU input dtype).
    """
    h = jnp.dot(x_ref[...], w0_ref[...], preferred_element_type=jnp.float32)
    h = jnp.maximum(h + b0_ref[...], 0.0).astype(jnp.bfloat16)
    h = jnp.dot(h, w1_ref[...], preferred_element_type=jnp.float32)
    h = jnp.maximum(h + b1_ref[...], 0.0).astype(jnp.bfloat16)
    o_ref[...] = jnp.dot(h, w2_ref[...],
                         preferred_element_type=jnp.float32) + b2_ref[...]


# ----------------------------------------------------------------------------
# Wrappers
# ----------------------------------------------------------------------------
def conv3x3_relu_pool(x_nhwc, w_hwio, b, *, pool):
    """x: (B,H,W,Cin) bf16, w: (3,3,Cin,Cout) bf16, b: (Cout,) f32."""
    B, H, W, Cin = x_nhwc.shape
    Cout = w_hwio.shape[-1]
    SH = _pick_strip_rows(H, W, Cout, pool)
    n_strips = H // SH
    if pool:
        Ho, Wo, SHo = H // 2, W // 2, SH // 2
    else:
        Ho, Wo, SHo = H, W, SH

    kernel = functools.partial(_conv3x3_relu_pool_kernel,
                               H=H, W=W, Cin=Cin, Cout=Cout, SH=SH, pool=pool)
    scratch = [pltpu.VMEM((SH + 2, W + 2, Cin), jnp.bfloat16),   # padded strip
               pltpu.VMEM((SH * W, Cout), jnp.float32)]          # accumulator
    if pool:
        scratch.append(pltpu.VMEM((SHo, W, Cout), jnp.float32))  # H-pooled strip
    cost = pl.CostEstimate(
        flops=int(2 * B * H * W * 9 * Cin * Cout),
        transcendentals=0,
        bytes_accessed=int(2 * (x_nhwc.size + w_hwio.size + B * Ho * Wo * Cout)
                           + 4 * b.size))
    return pl.pallas_call(
        kernel,
        out_shape=jax.ShapeDtypeStruct((B, Ho, Wo, Cout), jnp.bfloat16),
        grid=(B, n_strips),
        in_specs=[
            # full image per batch index; re-DMA'd only when bi changes
            pl.BlockSpec((1, H, W, Cin), lambda bi, si: (bi, 0, 0, 0)),
            pl.BlockSpec((3, 3, Cin, Cout), lambda bi, si: (0, 0, 0, 0)),
            pl.BlockSpec((1, Cout), lambda bi, si: (0, 0)),
        ],
        out_specs=pl.BlockSpec((1, SHo, Wo, Cout),
                               lambda bi, si: (bi, si, 0, 0)),
        scratch_shapes=scratch,
        compiler_params=pltpu.CompilerParams(
            dimension_semantics=("parallel", "parallel"),
            vmem_limit_bytes=_VMEM_LIMIT_BYTES),
        cost_estimate=cost,
    )(x_nhwc, w_hwio, b.reshape(1, Cout))


def classifier(x, w0, b0, w1, b1, w2, b2):
    """x: (B, In) bf16; w*: (in, out) bf16; b*: (out,) f32 -> (B, classes) f32."""
    B, In = x.shape
    H1, H2, Out = w0.shape[1], w1.shape[1], w2.shape[1]
    # Batch tile: whole batch when small, else 128-row tiles (keeps MXU fed).
    TB = B if B <= 128 else 128
    nb = pl.cdiv(B, TB)
    Bp = nb * TB
    if Bp != B:
        x = jnp.pad(x, ((0, Bp - B), (0, 0)))
    cost = pl.CostEstimate(
        flops=int(2 * Bp * (In * H1 + H1 * H2 + H2 * Out)),
        transcendentals=0,
        bytes_accessed=int(2 * (x.size + w0.size + w1.size + w2.size)
                           + 4 * (b0.size + b1.size + b2.size + Bp * Out)))
    out = pl.pallas_call(
        _classifier_kernel,
        out_shape=jax.ShapeDtypeStruct((Bp, Out), jnp.float32),
        grid=(nb,),
        in_specs=[
            pl.BlockSpec((TB, In), lambda i: (i, 0)),
            pl.BlockSpec((In, H1), lambda i: (0, 0)),
            pl.BlockSpec((1, H1), lambda i: (0, 0)),
            pl.BlockSpec((H1, H2), lambda i: (0, 0)),
            pl.BlockSpec((1, H2), lambda i: (0, 0)),
            pl.BlockSpec((H2, Out), lambda i: (0, 0)),
            pl.BlockSpec((1, Out), lambda i: (0, 0)),
        ],
        out_specs=pl.BlockSpec((TB, Out), lambda i: (i, 0)),
        compiler_params=pltpu.CompilerParams(
            dimension_semantics=("parallel",),
            vmem_limit_bytes=_VMEM_LIMIT_BYTES),
        cost_estimate=cost,
    )(x, w0, b0.reshape(1, H1), w1, b1.reshape(1, H2), w2, b2.reshape(1, Out))
    return out[:B]


# ----------------------------------------------------------------------------
# Parameters (PyTorch layout) and conversion to kernel layout
# ----------------------------------------------------------------------------
def init_params_torch(key, cfg, in_ch, hidden, num_classes, flat_dim):
    """PyTorch-layout params matching VGG._initialize_weights statistics."""
    params = {"features": [], "classifier": []}
    for v in cfg:
        if v == "M":
            params["features"].append(("pool",))
        else:
            key, kw = jax.random.split(key)
            std = math.sqrt(2.0 / (3 * 3 * v))
            w = std * jax.random.normal(kw, (v, in_ch, 3, 3), jnp.float32)  # OIHW
            params["features"].append(("conv", w, jnp.zeros((v,), jnp.float32)))
            in_ch = v
    for din, dout in [(flat_dim, hidden), (hidden, hidden), (hidden, num_classes)]:
        key, kw = jax.random.split(key)
        w = 0.01 * jax.random.normal(kw, (dout, din), jnp.float32)          # (out, in)
        params["classifier"].append((w, jnp.zeros((dout,), jnp.float32)))
    return params


def prepare_params(tparams, in_hw):
    """PyTorch layout -> kernel layout (done once, outside the forward pass).

    * conv OIHW -> HWIO bf16; each 'M' folds into the preceding conv as a
      fused-pool flag.
    * FC (out,in) -> (in,out) bf16; the first FC's rows are permuted from the
      NCHW flatten order to the NHWC flatten order.
    """
    H, W = in_hw
    feats = []
    c_last = None
    for item in tparams["features"]:
        if item[0] == "conv":
            _, w_oihw, b = item
            feats.append(["conv",
                          jnp.transpose(w_oihw, (2, 3, 1, 0)).astype(jnp.bfloat16),
                          b.astype(jnp.float32), False])
            c_last = w_oihw.shape[0]
        else:
            assert feats and feats[-1][0] == "conv", "pool must follow a conv"
            feats[-1][3] = True
            H //= 2
            W //= 2
    feats = [tuple(f) for f in feats]

    (w0, b0), (w1, b1), (w2, b2) = tparams["classifier"]
    hidden = w0.shape[0]
    w0_k = jnp.transpose(w0, (1, 0))                   # (flat, hidden), rows (c,h,w)
    w0_k = w0_k.reshape(c_last, H, W, hidden)
    w0_k = jnp.transpose(w0_k, (1, 2, 0, 3)).reshape(-1, hidden)  # rows (h,w,c)
    classifier_p = [
        (w0_k.astype(jnp.bfloat16), b0.astype(jnp.float32)),
        (jnp.transpose(w1, (1, 0)).astype(jnp.bfloat16), b1.astype(jnp.float32)),
        (jnp.transpose(w2, (1, 0)).astype(jnp.bfloat16), b2.astype(jnp.float32)),
    ]
    return {"features": feats, "classifier": classifier_p}


# ----------------------------------------------------------------------------
# Forward pass (Pallas) and pure-JAX PyTorch-semantics reference
# ----------------------------------------------------------------------------
def vgg_features(x_nhwc, feat_params):
    for _, w, b, pool in feat_params:
        x_nhwc = conv3x3_relu_pool(x_nhwc, w, b, pool=pool)
    return x_nhwc


def vgg_forward(x_nchw, kparams):
    """Matches VGG.forward: features -> flatten -> classifier (dropout = id)."""
    x = jnp.transpose(x_nchw, (0, 2, 3, 1)).astype(jnp.bfloat16)  # NCHW->NHWC once
    x = vgg_features(x, kparams["features"])
    x = x.reshape(x.shape[0], -1)     # NHWC flatten; w0 rows pre-permuted to match
    (w0, b0), (w1, b1), (w2, b2) = kparams["classifier"]
    return classifier(x, w0, b0, w1, b1, w2, b2)


def vgg_reference(x_nchw, tparams):
    """Pure-JAX f32 reference using PyTorch layout / flatten semantics."""
    x = x_nchw
    for item in tparams["features"]:
        if item[0] == "conv":
            _, w, b = item
            x = jax.lax.conv_general_dilated(
                x, w, window_strides=(1, 1), padding="SAME",
                dimension_numbers=("NCHW", "OIHW", "NCHW"))
            x = jnp.maximum(x + b[None, :, None, None], 0.0)
        else:
            x = jax.lax.reduce_window(x, -jnp.inf, jax.lax.max,
                                      (1, 1, 2, 2), (1, 1, 2, 2), "VALID")
    feats = x
    x = x.reshape(x.shape[0], -1)
    (w0, b0), (w1, b1), (w2, b2) = tparams["classifier"]
    x = jnp.maximum(x @ w0.T + b0, 0.0)
    x = jnp.maximum(x @ w1.T + b1, 0.0)
    return feats, x @ w2.T + b2


# ----------------------------------------------------------------------------
if __name__ == "__main__":
    # Scaled-down VGG config (full VGG: 3->64..512 convs, 512*7*7 -> 4096 FCs;
    # same structure, smaller sizes here).  Exercises pool / no-pool paths.
    cfg = [8, 8, "M", 16, "M"]
    B, Cin, H, W = 2, 3, 16, 16
    num_classes, hidden = 10, 64
    flat_dim = 16 * (H // 4) * (W // 4)          # 256

    key = jax.random.PRNGKey(0)
    key, kx = jax.random.split(key)
    x = jax.random.normal(kx, (B, Cin, H, W), jnp.float32)

    tparams = init_params_torch(key, cfg, Cin, hidden, num_classes, flat_dim)
    kparams = prepare_params(tparams, in_hw=(H, W))

    out = jax.block_until_ready(vgg_forward(x, kparams))
    assert out.shape == (B, num_classes), out.shape

    ref_feats_nchw, ref_logits = vgg_reference(x, tparams)

    # feature-extractor check (healthy magnitudes -> tight-ish tolerance)
    feats = vgg_features(jnp.transpose(x, (0, 2, 3, 1)).astype(jnp.bfloat16),
                         kparams["features"])
    feats = jax.block_until_ready(feats).astype(jnp.float32)
    ref_feats = jnp.transpose(ref_feats_nchw, (0, 2, 3, 1))
    assert jnp.allclose(feats, ref_feats, atol=1.5e-1, rtol=5e-2), \
        float(jnp.max(jnp.abs(feats - ref_feats)))

    # end-to-end logits check (0.01-std FC weights make logits tiny; use a
    # scale-relative bound so bf16 matmuls pass while layout bugs still fail)
    scale = float(jnp.max(jnp.abs(ref_logits)))
    err = float(jnp.max(jnp.abs(out.astype(jnp.float32) - ref_logits)))
    assert scale > 0.0
    assert err <= 0.1 * scale + 2e-5, (err, scale)

    print("KERNEL_OK")
</pallas_src>

<mosaic_0001>
module attributes {stable_mosaic.version = 11 : i64} {
  func.func @_conv3x3_relu_pool_kernel(%arg0: i32, %arg1: i32, %arg2: memref<1x16x16x3xbf16, #tpu.memory_space<vmem>>, %arg3: memref<3x3x3x8xbf16, #tpu.memory_space<vmem>>, %arg4: memref<1x8xf32, #tpu.memory_space<vmem>>, %arg5: memref<1x8x16x8xbf16, #tpu.memory_space<vmem>>, %arg6: memref<10x18x3xbf16, #tpu.memory_space<vmem>>, %arg7: memref<128x8xf32, #tpu.memory_space<vmem>>) attributes {dimension_semantics = [#tpu.dimension_semantics<parallel>, #tpu.dimension_semantics<parallel>], iteration_bounds = array<i64: 2, 2>, scalar_prefetch = 0 : i64, scratch_operands = 2 : i64, tpu.core_type = #tpu.core_type<tc>, window_params = [{transform_indices = @transform_0, window_bounds = array<i64: 1, 16, 16, 3>}, {pipeline_mode = #tpu.pipeline_mode<synchronous>, transform_indices = @transform_1, window_bounds = array<i64: 3, 3, 3, 8>}, {pipeline_mode = #tpu.pipeline_mode<synchronous>, transform_indices = @transform_2, window_bounds = array<i64: 1, 8>}, {transform_indices = @transform_3, window_bounds = array<i64: 1, 8, 16, 8>}]} {
    %c8_i32 = arith.constant 8 : i32
    %0 = arith.muli %arg1, %c8_i32 : i32
    %1 = tpu.assume_multiple %0, 8 : i32
    %cst = arith.constant 0.000000e+00 : bf16
    %2 = vector.broadcast %cst : bf16 to vector<10x1x3xbf16>
    %c0 = arith.constant 0 : index
    %c0_0 = arith.constant 0 : index
    %c0_1 = arith.constant 0 : index
    %3 = vector.load %arg6[%c0, %c0_0, %c0_1] : memref<10x18x3xbf16, #tpu.memory_space<vmem>>, vector<10x1x3xbf16>
    tpu.vector_store %arg6[%c0, %c0_0, %c0_1], %2 {strides = array<i32>} : memref<10x18x3xbf16, #tpu.memory_space<vmem>>, vector<10x1x3xbf16>,
    %c0_2 = arith.constant 0 : index
    %c17 = arith.constant 17 : index
    %c0_3 = arith.constant 0 : index
    %4 = vector.load %arg6[%c0_2, %c17, %c0_3] : memref<10x18x3xbf16, #tpu.memory_space<vmem>>, vector<10x1x3xbf16>
    tpu.vector_store %arg6[%c0_2, %c17, %c0_3], %2 {strides = array<i32>} : memref<10x18x3xbf16, #tpu.memory_space<vmem>>, vector<10x1x3xbf16>,
    %c0_4 = arith.constant 0 : index
    %5 = arith.index_cast %1 : i32 to index
    %c0_5 = arith.constant 0 : index
    %c0_6 = arith.constant 0 : index
    %6 = vector.load %arg2[%c0_4, %5, %c0_5, %c0_6] : memref<1x16x16x3xbf16, #tpu.memory_space<vmem>>, vector<1x8x16x3xbf16>
    %7 = vector.shape_cast %6 : vector<1x8x16x3xbf16> to vector<8x16x3xbf16>
    %c1 = arith.constant 1 : index
    %c1_7 = arith.constant 1 : index
    %c0_8 = arith.constant 0 : index
    %8 = vector.load %arg6[%c1, %c1_7, %c0_8] : memref<10x18x3xbf16, #tpu.memory_space<vmem>>, vector<8x16x3xbf16>
    tpu.vector_store %arg6[%c1, %c1_7, %c0_8], %7 {strides = array<i32>} : memref<10x18x3xbf16, #tpu.memory_space<vmem>>, vector<8x16x3xbf16>,
    %c1_i32 = arith.constant 1 : i32
    %9 = arith.subi %1, %c1_i32 : i32
    %c0_i32 = arith.constant 0 : i32
    %10 = arith.maxsi %9, %c0_i32 : i32
    %c0_9 = arith.constant 0 : index
    %11 = arith.index_cast %10 : i32 to index
    %c0_10 = arith.constant 0 : index
    %c0_11 = arith.constant 0 : index
    %12 = vector.load %arg2[%c0_9, %11, %c0_10, %c0_11] : memref<1x16x16x3xbf16, #tpu.memory_space<vmem>>, vector<1x1x16x3xbf16>
    %13 = vector.shape_cast %12 : vector<1x1x16x3xbf16> to vector<1x16x3xbf16>
    %c0_i32_12 = arith.constant 0 : i32
    %14 = arith.cmpi sgt, %1, %c0_i32_12 : i32
    %cst_13 = arith.constant 0.000000e+00 : bf16
    %15 = vector.broadcast %cst_13 : bf16 to vector<1x16x3xbf16>
    %16 = arith.select %14, %13, %15 : vector<1x16x3xbf16>
    %c0_14 = arith.constant 0 : index
    %c1_15 = arith.constant 1 : index
    %c0_16 = arith.constant 0 : index
    %17 = vector.load %arg6[%c0_14, %c1_15, %c0_16] : memref<10x18x3xbf16, #tpu.memory_space<vmem>>, vector<1x16x3xbf16>
    tpu.vector_store %arg6[%c0_14, %c1_15, %c0_16], %16 {strides = array<i32>} : memref<10x18x3xbf16, #tpu.memory_space<vmem>>, vector<1x16x3xbf16>,
    %c8_i32_17 = arith.constant 8 : i32
    %18 = arith.addi %1, %c8_i32_17 : i32
    %c15_i32 = arith.constant 15 : i32
    %19 = arith.minsi %18, %c15_i32 : i32
    %c0_18 = arith.constant 0 : index
    %20 = arith.index_cast %19 : i32 to index
    %c0_19 = arith.constant 0 : index
    %c0_20 = arith.constant 0 : index
    %21 = vector.load %arg2[%c0_18, %20, %c0_19, %c0_20] : memref<1x16x16x3xbf16, #tpu.memory_space<vmem>>, vector<1x1x16x3xbf16>
    %22 = vector.shape_cast %21 : vector<1x1x16x3xbf16> to vector<1x16x3xbf16>
    %c8_i32_21 = arith.constant 8 : i32
    %23 = arith.addi %1, %c8_i32_21 : i32
    %c16_i32 = arith.constant 16 : i32
    %24 = arith.cmpi slt, %23, %c16_i32 : i32
    %cst_22 = arith.constant 0.000000e+00 : bf16
    %25 = vector.broadcast %cst_22 : bf16 to vector<1x16x3xbf16>
    %26 = arith.select %24, %22, %25 : vector<1x16x3xbf16>
    %c9 = arith.constant 9 : index
    %c1_23 = arith.constant 1 : index
    %c0_24 = arith.constant 0 : index
    %27 = vector.load %arg6[%c9, %c1_23, %c0_24] : memref<10x18x3xbf16, #tpu.memory_space<vmem>>, vector<1x16x3xbf16>
    tpu.vector_store %arg6[%c9, %c1_23, %c0_24], %26 {strides = array<i32>} : memref<10x18x3xbf16, #tpu.memory_space<vmem>>, vector<1x16x3xbf16>,
    %c0_25 = arith.constant 0 : index
    %c0_26 = arith.constant 0 : index
    %28 = vector.load %arg4[%c0_25, %c0_26] : memref<1x8xf32, #tpu.memory_space<vmem>>, vector<1x8xf32>
    %29 = vector.shape_cast %28 : vector<1x8xf32> to vector<1x8xf32>
    %30 = vector.broadcast %29 : vector<1x8xf32> to vector<128x8xf32>
    %c0_27 = arith.constant 0 : index
    %c0_28 = arith.constant 0 : index
    %31 = vector.load %arg7[%c0_27, %c0_28] : memref<128x8xf32, #tpu.memory_space<vmem>>, vector<128x8xf32>
    tpu.vector_store %arg7[%c0_27, %c0_28], %30 {strides = array<i32>} : memref<128x8xf32, #tpu.memory_space<vmem>>, vector<128x8xf32>,
    %c0_29 = arith.constant 0 : index
    %c0_30 = arith.constant 0 : index
    %c0_31 = arith.constant 0 : index
    %32 = vector.load %arg6[%c0_29, %c0_30, %c0_31] : memref<10x18x3xbf16, #tpu.memory_space<vmem>>, vector<8x16x3xbf16>
    %33 = vector.shape_cast %32 : vector<8x16x3xbf16> to vector<128x3xbf16>
    %c0_32 = arith.constant 0 : index
    %c0_33 = arith.constant 0 : index
    %34 = vector.load %arg7[%c0_32, %c0_33] : memref<128x8xf32, #tpu.memory_space<vmem>>, vector<128x8xf32>
    %c0_34 = arith.constant 0 : index
    %c0_35 = arith.constant 0 : index
    %c0_36 = arith.constant 0 : index
    %c0_37 = arith.constant 0 : index
    %35 = vector.load %arg3[%c0_34, %c0_35, %c0_36, %c0_37] : memref<3x3x3x8xbf16, #tpu.memory_space<vmem>>, vector<1x1x3x8xbf16>
    %36 = vector.shape_cast %35 : vector<1x1x3x8xbf16> to vector<3x8xbf16>
    %cst_38 = arith.constant dense<0.000000e+00> : vector<128x8xf32>
    %37 = tpu.matmul %33, %36, %cst_38 {dimension_numbers = #tpu.dot_dimension_numbers<[1], [0], [0], [1], [0, 0, 1, 1], [], []>} : vector<128x3xbf16>, vector<3x8xbf16>, vector<128x8xf32> -> vector<128x8xf32>
    %38 = arith.addf %34, %37 : vector<128x8xf32>
    %c0_39 = arith.constant 0 : index
    %c0_40 = arith.constant 0 : index
    %39 = vector.load %arg7[%c0_39, %c0_40] : memref<128x8xf32, #tpu.memory_space<vmem>>, vector<128x8xf32>
    tpu.vector_store %arg7[%c0_39, %c0_40], %38 {strides = array<i32>} : memref<128x8xf32, #tpu.memory_space<vmem>>, vector<128x8xf32>,
    %c0_41 = arith.constant 0 : index
    %c1_42 = arith.constant 1 : index
    %c0_43 = arith.constant 0 : index
    %40 = vector.load %arg6[%c0_41, %c1_42, %c0_43] : memref<10x18x3xbf16, #tpu.memory_space<vmem>>, vector<8x16x3xbf16>
    %41 = vector.shape_cast %40 : vector<8x16x3xbf16> to vector<128x3xbf16>
    %c0_44 = arith.constant 0 : index
    %c0_45 = arith.constant 0 : index
    %42 = vector.load %arg7[%c0_44, %c0_45] : memref<128x8xf32, #tpu.memory_space<vmem>>, vector<128x8xf32>
    %c0_46 = arith.constant 0 : index
    %c1_47 = arith.constant 1 : index
    %c0_48 = arith.constant 0 : index
    %c0_49 = arith.constant 0 : index
    %43 = vector.load %arg3[%c0_46, %c1_47, %c0_48, %c0_49] : memref<3x3x3x8xbf16, #tpu.memory_space<vmem>>, vector<1x1x3x8xbf16>
    %44 = vector.shape_cast %43 : vector<1x1x3x8xbf16> to vector<3x8xbf16>
    %cst_50 = arith.constant dense<0.000000e+00> : vector<128x8xf32>
    %45 = tpu.matmul %41, %44, %cst_50 {dimension_numbers = #tpu.dot_dimension_numbers<[1], [0], [0], [1], [0, 0, 1, 1], [], []>} : vector<128x3xbf16>, vector<3x8xbf16>, vector<128x8xf32> -> vector<128x8xf32>
    %46 = arith.addf %42, %45 : vector<128x8xf32>
    %c0_51 = arith.constant 0 : index
    %c0_52 = arith.constant 0 : index
    %47 = vector.load %arg7[%c0_51, %c0_52] : memref<128x8xf32, #tpu.memory_space<vmem>>, vector<128x8xf32>
    tpu.vector_store %arg7[%c0_51, %c0_52], %46 {strides = array<i32>} : memref<128x8xf32, #tpu.memory_space<vmem>>, vector<128x8xf32>,
    %c0_53 = arith.constant 0 : index
    %c2 = arith.constant 2 : index
    %c0_54 = arith.constant 0 : index
    %48 = vector.load %arg6[%c0_53, %c2, %c0_54] : memref<10x18x3xbf16, #tpu.memory_space<vmem>>, vector<8x16x3xbf16>
    %49 = vector.shape_cast %48 : vector<8x16x3xbf16> to vector<128x3xbf16>
    %c0_55 = arith.constant 0 : index
    %c0_56 = arith.constant 0 : index
    %50 = vector.load %arg7[%c0_55, %c0_56] : memref<128x8xf32, #tpu.memory_space<vmem>>, vector<128x8xf32>
    %c0_57 = arith.constant 0 : index
    %c2_58 = arith.constant 2 : index
    %c0_59 = arith.constant 0 : index
    %c0_60 = arith.constant 0 : index
    %51 = vector.load %arg3[%c0_57, %c2_58, %c0_59, %c0_60] : memref<3x3x3x8xbf16, #tpu.memory_space<vmem>>, vector<1x1x3x8xbf16>
    %52 = vector.shape_cast %51 : vector<1x1x3x8xbf16> to vector<3x8xbf16>
    %cst_61 = arith.constant dense<0.000000e+00> : vector<128x8xf32>
    %53 = tpu.matmul %49, %52, %cst_61 {dimension_numbers = #tpu.dot_dimension_numbers<[1], [0], [0], [1], [0, 0, 1, 1], [], []>} : vector<128x3xbf16>, vector<3x8xbf16>, vector<128x8xf32> -> vector<128x8xf32>
    %54 = arith.addf %50, %53 : vector<128x8xf32>
    %c0_62 = arith.constant 0 : index
    %c0_63 = arith.constant 0 : index
    %55 = vector.load %arg7[%c0_62, %c0_63] : memref<128x8xf32, #tpu.memory_space<vmem>>, vector<128x8xf32>
    tpu.vector_store %arg7[%c0_62, %c0_63], %54 {strides = array<i32>} : memref<128x8xf32, #tpu.memory_space<vmem>>, vector<128x8xf32>,
    %c1_64 = arith.constant 1 : index
    %c0_65 = arith.constant 0 : index
    %c0_66 = arith.constant 0 : index
    %56 = vector.load %arg6[%c1_64, %c0_65, %c0_66] : memref<10x18x3xbf16, #tpu.memory_space<vmem>>, vector<8x16x3xbf16>
    %57 = vector.shape_cast %56 : vector<8x16x3xbf16> to vector<128x3xbf16>
    %c0_67 = arith.constant 0 : index
    %c0_68 = arith.constant 0 : index
    %58 = vector.load %arg7[%c0_67, %c0_68] : memref<128x8xf32, #tpu.memory_space<vmem>>, vector<128x8xf32>
    %c1_69 = arith.constant 1 : index
    %c0_70 = arith.constant 0 : index
    %c0_71 = arith.constant 0 : index
    %c0_72 = arith.constant 0 : index
    %59 = vector.load %arg3[%c1_69, %c0_70, %c0_71, %c0_72] : memref<3x3x3x8xbf16, #tpu.memory_space<vmem>>, vector<1x1x3x8xbf16>
    %60 = vector.shape_cast %59 : vector<1x1x3x8xbf16> to vector<3x8xbf16>
    %cst_73 = arith.constant dense<0.000000e+00> : vector<128x8xf32>
    %61 = tpu.matmul %57, %60, %cst_73 {dimension_numbers = #tpu.dot_dimension_numbers<[1], [0], [0], [1], [0, 0, 1, 1], [], []>} : vector<128x3xbf16>, vector<3x8xbf16>, vector<128x8xf32> -> vector<128x8xf32>
    %62 = arith.addf %58, %61 : vector<128x8xf32>
    %c0_74 = arith.constant 0 : index
    %c0_75 = arith.constant 0 : index
    %63 = vector.load %arg7[%c0_74, %c0_75] : memref<128x8xf32, #tpu.memory_space<vmem>>, vector<128x8xf32>
    tpu.vector_store %arg7[%c0_74, %c0_75], %62 {strides = array<i32>} : memref<128x8xf32, #tpu.memory_space<vmem>>, vector<128x8xf32>,
    %c1_76 = arith.constant 1 : index
    %c1_77 = arith.constant 1 : index
    %c0_78 = arith.constant 0 : index
    %64 = vector.load %arg6[%c1_76, %c1_77, %c0_78] : memref<10x18x3xbf16, #tpu.memory_space<vmem>>, vector<8x16x3xbf16>
    %65 = vector.shape_cast %64 : vector<8x16x3xbf16> to vector<128x3xbf16>
    %c0_79 = arith.constant 0 : index
    %c0_80 = arith.constant 0 : index
    %66 = vector.load %arg7[%c0_79, %c0_80] : memref<128x8xf32, #tpu.memory_space<vmem>>, vector<128x8xf32>
    %c1_81 = arith.constant 1 : index
    %c1_82 = arith.constant 1 : index
    %c0_83 = arith.constant 0 : index
    %c0_84 = arith.constant 0 : index
    %67 = vector.load %arg3[%c1_81, %c1_82, %c0_83, %c0_84] : memref<3x3x3x8xbf16, #tpu.memory_space<vmem>>, vector<1x1x3x8xbf16>
    %68 = vector.shape_cast %67 : vector<1x1x3x8xbf16> to vector<3x8xbf16>
    %cst_85 = arith.constant dense<0.000000e+00> : vector<128x8xf32>
    %69 = tpu.matmul %65, %68, %cst_85 {dimension_numbers = #tpu.dot_dimension_numbers<[1], [0], [0], [1], [0, 0, 1, 1], [], []>} : vector<128x3xbf16>, vector<3x8xbf16>, vector<128x8xf32> -> vector<128x8xf32>
    %70 = arith.addf %66, %69 : vector<128x8xf32>
    %c0_86 = arith.constant 0 : index
    %c0_87 = arith.constant 0 : index
    %71 = vector.load %arg7[%c0_86, %c0_87] : memref<128x8xf32, #tpu.memory_space<vmem>>, vector<128x8xf32>
    tpu.vector_store %arg7[%c0_86, %c0_87], %70 {strides = array<i32>} : memref<128x8xf32, #tpu.memory_space<vmem>>, vector<128x8xf32>,
    %c1_88 = arith.constant 1 : index
    %c2_89 = arith.constant 2 : index
    %c0_90 = arith.constant 0 : index
    %72 = vector.load %arg6[%c1_88, %c2_89, %c0_90] : memref<10x18x3xbf16, #tpu.memory_space<vmem>>, vector<8x16x3xbf16>
    %73 = vector.shape_cast %72 : vector<8x16x3xbf16> to vector<128x3xbf16>
    %c0_91 = arith.constant 0 : index
    %c0_92 = arith.constant 0 : index
    %74 = vector.load %arg7[%c0_91, %c0_92] : memref<128x8xf32, #tpu.memory_space<vmem>>, vector<128x8xf32>
    %c1_93 = arith.constant 1 : index
    %c2_94 = arith.constant 2 : index
    %c0_95 = arith.constant 0 : index
    %c0_96 = arith.constant 0 : index
    %75 = vector.load %arg3[%c1_93, %c2_94, %c0_95, %c0_96] : memref<3x3x3x8xbf16, #tpu.memory_space<vmem>>, vector<1x1x3x8xbf16>
    %76 = vector.shape_cast %75 : vector<1x1x3x8xbf16> to vector<3x8xbf16>
    %cst_97 = arith.constant dense<0.000000e+00> : vector<128x8xf32>
    %77 = tpu.matmul %73, %76, %cst_97 {dimension_numbers = #tpu.dot_dimension_numbers<[1], [0], [0], [1], [0, 0, 1, 1], [], []>} : vector<128x3xbf16>, vector<3x8xbf16>, vector<128x8xf32> -> vector<128x8xf32>
    %78 = arith.addf %74, %77 : vector<128x8xf32>
    %c0_98 = arith.constant 0 : index
    %c0_99 = arith.constant 0 : index
    %79 = vector.load %arg7[%c0_98, %c0_99] : memref<128x8xf32, #tpu.memory_space<vmem>>, vector<128x8xf32>
    tpu.vector_store %arg7[%c0_98, %c0_99], %78 {strides = array<i32>} : memref<128x8xf32, #tpu.memory_space<vmem>>, vector<128x8xf32>,
    %c2_100 = arith.constant 2 : index
    %c0_101 = arith.constant 0 : index
    %c0_102 = arith.constant 0 : index
    %80 = vector.load %arg6[%c2_100, %c0_101, %c0_102] : memref<10x18x3xbf16, #tpu.memory_space<vmem>>, vector<8x16x3xbf16>
    %81 = vector.shape_cast %80 : vector<8x16x3xbf16> to vector<128x3xbf16>
    %c0_103 = arith.constant 0 : index
    %c0_104 = arith.constant 0 : index
    %82 = vector.load %arg7[%c0_103, %c0_104] : memref<128x8xf32, #tpu.memory_space<vmem>>, vector<128x8xf32>
    %c2_105 = arith.constant 2 : index
    %c0_106 = arith.constant 0 : index
    %c0_107 = arith.constant 0 : index
    %c0_108 = arith.constant 0 : index
    %83 = vector.load %arg3[%c2_105, %c0_106, %c0_107, %c0_108] : memref<3x3x3x8xbf16, #tpu.memory_space<vmem>>, vector<1x1x3x8xbf16>
    %84 = vector.shape_cast %83 : vector<1x1x3x8xbf16> to vector<3x8xbf16>
    %cst_109 = arith.constant dense<0.000000e+00> : vector<128x8xf32>
    %85 = tpu.matmul %81, %84, %cst_109 {dimension_numbers = #tpu.dot_dimension_numbers<[1], [0], [0], [1], [0, 0, 1, 1], [], []>} : vector<128x3xbf16>, vector<3x8xbf16>, vector<128x8xf32> -> vector<128x8xf32>
    %86 = arith.addf %82, %85 : vector<128x8xf32>
    %c0_110 = arith.constant 0 : index
    %c0_111 = arith.constant 0 : index
    %87 = vector.load %arg7[%c0_110, %c0_111] : memref<128x8xf32, #tpu.memory_space<vmem>>, vector<128x8xf32>
    tpu.vector_store %arg7[%c0_110, %c0_111], %86 {strides = array<i32>} : memref<128x8xf32, #tpu.memory_space<vmem>>, vector<128x8xf32>,
    %c2_112 = arith.constant 2 : index
    %c1_113 = arith.constant 1 : index
    %c0_114 = arith.constant 0 : index
    %88 = vector.load %arg6[%c2_112, %c1_113, %c0_114] : memref<10x18x3xbf16, #tpu.memory_space<vmem>>, vector<8x16x3xbf16>
    %89 = vector.shape_cast %88 : vector<8x16x3xbf16> to vector<128x3xbf16>
    %c0_115 = arith.constant 0 : index
    %c0_116 = arith.constant 0 : index
    %90 = vector.load %arg7[%c0_115, %c0_116] : memref<128x8xf32, #tpu.memory_space<vmem>>, vector<128x8xf32>
    %c2_117 = arith.constant 2 : index
    %c1_118 = arith.constant 1 : index
    %c0_119 = arith.constant 0 : index
    %c0_120 = arith.constant 0 : index
    %91 = vector.load %arg3[%c2_117, %c1_118, %c0_119, %c0_120] : memref<3x3x3x8xbf16, #tpu.memory_space<vmem>>, vector<1x1x3x8xbf16>
    %92 = vector.shape_cast %91 : vector<1x1x3x8xbf16> to vector<3x8xbf16>
    %cst_121 = arith.constant dense<0.000000e+00> : vector<128x8xf32>
    %93 = tpu.matmul %89, %92, %cst_121 {dimension_numbers = #tpu.dot_dimension_numbers<[1], [0], [0], [1], [0, 0, 1, 1], [], []>} : vector<128x3xbf16>, vector<3x8xbf16>, vector<128x8xf32> -> vector<128x8xf32>
    %94 = arith.addf %90, %93 : vector<128x8xf32>
    %c0_122 = arith.constant 0 : index
    %c0_123 = arith.constant 0 : index
    %95 = vector.load %arg7[%c0_122, %c0_123] : memref<128x8xf32, #tpu.memory_space<vmem>>, vector<128x8xf32>
    tpu.vector_store %arg7[%c0_122, %c0_123], %94 {strides = array<i32>} : memref<128x8xf32, #tpu.memory_space<vmem>>, vector<128x8xf32>,
    %c2_124 = arith.constant 2 : index
    %c2_125 = arith.constant 2 : index
    %c0_126 = arith.constant 0 : index
    %96 = vector.load %arg6[%c2_124, %c2_125, %c0_126] : memref<10x18x3xbf16, #tpu.memory_space<vmem>>, vector<8x16x3xbf16>
    %97 = vector.shape_cast %96 : vector<8x16x3xbf16> to vector<128x3xbf16>
    %c0_127 = arith.constant 0 : index
    %c0_128 = arith.constant 0 : index
    %98 = vector.load %arg7[%c0_127, %c0_128] : memref<128x8xf32, #tpu.memory_space<vmem>>, vector<128x8xf32>
    %c2_129 = arith.constant 2 : index
    %c2_130 = arith.constant 2 : index
    %c0_131 = arith.constant 0 : index
    %c0_132 = arith.constant 0 : index
    %99 = vector.load %arg3[%c2_129, %c2_130, %c0_131, %c0_132] : memref<3x3x3x8xbf16, #tpu.memory_space<vmem>>, vector<1x1x3x8xbf16>
    %100 = vector.shape_cast %99 : vector<1x1x3x8xbf16> to vector<3x8xbf16>
    %cst_133 = arith.constant dense<0.000000e+00> : vector<128x8xf32>
    %101 = tpu.matmul %97, %100, %cst_133 {dimension_numbers = #tpu.dot_dimension_numbers<[1], [0], [0], [1], [0, 0, 1, 1], [], []>} : vector<128x3xbf16>, vector<3x8xbf16>, vector<128x8xf32> -> vector<128x8xf32>
    %102 = arith.addf %98, %101 : vector<128x8xf32>
    %c0_134 = arith.constant 0 : index
    %c0_135 = arith.constant 0 : index
    %103 = vector.load %arg7[%c0_134, %c0_135] : memref<128x8xf32, #tpu.memory_space<vmem>>, vector<128x8xf32>
    tpu.vector_store %arg7[%c0_134, %c0_135], %102 {strides = array<i32>} : memref<128x8xf32, #tpu.memory_space<vmem>>, vector<128x8xf32>,
    %c0_136 = arith.constant 0 : index
    %c0_137 = arith.constant 0 : index
    %104 = vector.load %arg7[%c0_136, %c0_137] : memref<128x8xf32, #tpu.memory_space<vmem>>, vector<128x8xf32>
    %cst_138 = arith.constant 0.000000e+00 : f32
    %105 = vector.broadcast %cst_138 : f32 to vector<128x8xf32>
    %106 = arith.maximumf %104, %105 : vector<128x8xf32>
    %107 = vector.shape_cast %106 : vector<128x8xf32> to vector<1x8x16x8xf32>
    %108 = arith.truncf %107 : vector<1x8x16x8xf32> to vector<1x8x16x8xbf16>
    %c0_139 = arith.constant 0 : index
    %c0_140 = arith.constant 0 : index
    %c0_141 = arith.constant 0 : index
    %c0_142 = arith.constant 0 : index
    %109 = vector.load %arg5[%c0_139, %c0_140, %c0_141, %c0_142] : memref<1x8x16x8xbf16, #tpu.memory_space<vmem>>, vector<1x8x16x8xbf16>
    tpu.vector_store %arg5[%c0_139, %c0_140, %c0_141, %c0_142], %108 {strides = array<i32>} : memref<1x8x16x8xbf16, #tpu.memory_space<vmem>>, vector<1x8x16x8xbf16>,
    return
  }
  func.func @transform_0(%arg0: i32, %arg1: i32) -> (i32, i32, i32, i32) {
    %c0_i32 = arith.constant 0 : i32
    %c0_i32_0 = arith.constant 0 : i32
    %c0_i32_1 = arith.constant 0 : i32
    %c0_i32_2 = arith.constant 0 : i32
    return %arg0, %c0_i32, %c0_i32_0, %c0_i32_1 : i32, i32, i32, i32
  }
  func.func @transform_1(%arg0: i32, %arg1: i32) -> (i32, i32, i32, i32) {
    %c0_i32 = arith.constant 0 : i32
    %c0_i32_0 = arith.constant 0 : i32
    %c0_i32_1 = arith.constant 0 : i32
    %c0_i32_2 = arith.constant 0 : i32
    %c0_i32_3 = arith.constant 0 : i32
    return %c0_i32, %c0_i32_0, %c0_i32_1, %c0_i32_2 : i32, i32, i32, i32
  }
  func.func @transform_2(%arg0: i32, %arg1: i32) -> (i32, i32) {
    %c0_i32 = arith.constant 0 : i32
    %c0_i32_0 = arith.constant 0 : i32
    %c0_i32_1 = arith.constant 0 : i32
    return %c0_i32, %c0_i32_0 : i32, i32
  }
  func.func @transform_3(%arg0: i32, %arg1: i32) -> (i32, i32, i32, i32) {
    %c0_i32 = arith.constant 0 : i32
    %c0_i32_0 = arith.constant 0 : i32
    %c0_i32_1 = arith.constant 0 : i32
    return %arg0, %arg1, %c0_i32, %c0_i32_0 : i32, i32, i32, i32
  }
}

</mosaic_0001>

<llo_original>
// kernel: tpu_custom_call.1
$region0: #{tpu_custom_call.1}
  #allocation0 [shape = 'u32[]', space=smem, size = 0x4, offset = 0x4, fixed_abs, tag = 'smem constant byte address 0x4 - core index']
  #allocation1 [shape = 'u32[144,128]{1,0:T(1,128)}', space=vmem, size = 0x12000, scoped, tag = 'internal scratch']
  #allocation2 [shape = 'bf16[10,18,3]{2,1,0:T(8,128)(2,1)}', space=vmem, size = 0xf000, scoped, tag = 'scratch operand']
  #allocation3 [shape = 'f32[128,8]{1,0:T(8,128)}', space=vmem, size = 0x10000, scoped, tag = 'scratch operand']
  %s0 = inlined_call_operand.vmem [shape: bf16[2,16,16,3], index: 0, kind: input, shape index: {}]
  %s1 = inlined_call_operand.vmem [shape: bf16[3,3,3,8], index: 1, kind: input, shape index: {}]
  %s2 = inlined_call_operand.vmem [shape: f32[1,8], index: 2, kind: input, shape index: {}]
  %s3 = inlined_call_operand.vmem [shape: bf16[2,16,16,8], index: 3, kind: output, shape index: {}]
  %s4 = sld [smem:[#allocation0]]
  $region45: #{tpu_custom_call.1} parent=0
    _
  %s6 = ssub.s32 1, %s4
  %s7 = scalar_select 0, %s6, %s4
  loop: start=0, step=1, limit=6
  $region2: #{tpu_custom_call.1} parent=0 // loop_pre_header
    _
  $region3: #{tpu_custom_call.1} parent=0 // loop_header
    %s9 = sphi 0, %s13
    %p10 = scmp.ge.s32.totalorder %s9, 6
    %s16 = sphi 0, %s28
    %s17 = sphi 0, %s24
    %s18 = sphi 0, %s16
    %s19 = sphi 0, %s17
    %s20 = sphi 0, %s18
    %s21 = sphi 0, %s19
    %s31 = sphi 0, %s33
    %s34 = sphi 0, %s31
    %s35 = sphi 0, %s34
    %s51 = sphi 0, %s35
    %s55 = sphi 0, %s55
    %s57 = sphi 0, %s55
    %s58 = sphi 0, %s57
    %s72 = sphi 0, %s58
    %s76 = sphi 0, %s76
    %s78 = sphi 0, %s76
    %s79 = sphi 0, %s78
    %s93 = sphi 0, %s79
    %s101 = sphi 0, %s103
    %s104 = sphi 0, %s101
    %s105 = sphi 0, %s104
    %s121 = sphi 0, %s105
  $region4: #{tpu_custom_call.1} parent=0 // loop_header_branch
    %12 = sbr.rel (%p10) target = $region8
  $region5: #{tpu_custom_call.1} parent=0 // loop_body
    %s14 = ssub.s32 %s9, 1
    %s15 = ssub.s32 %s9, 2
    %s22 = sadd.s32 1, %s17
    %p23 = scmp.ge.s32.totalorder %s22, 2
    %s24 = scalar_select %p23, 0, %s22
    %s25 = sadd.s32 1, %s16
    %s26 = scalar_select %p23, %s25, %s16
    %p27 = scmp.ge.s32.totalorder %s26, 2
    %s28 = scalar_select %p27, 0, %s26
    %s29 = ssub.s32 %s16, %s28
    %p30 = scmp.eq.s32.totalorder %s29, 0
    %s32 = sadd.s32 %s31, 1
    %s33 = scalar_select %p30, %s31, %s32
    %p36 = pneg %p30
    %p37 = scmp.eq.s32.totalorder %s9, 3
    %p38 = por %p36, %p37
    %p39 = scmp.ne.s32.totalorder %s31, %s34
    %p40 = scmp.eq.s32.totalorder %s9, 0
    %p41 = por %p39, %p40
    %p42 = scmp.ne.s32.totalorder %s31, %s34
    %p43 = scmp.eq.s32.totalorder %s14, 3
    %p44 = por %p42, %p43
    %p45 = scmp.ne.s32.totalorder %s34, %s35
    %p46 = scmp.eq.s32.totalorder %s14, 0
    %p47 = por %p45, %p46
    %p48 = scmp.ne.s32.totalorder %s34, %s35
    %p49 = scmp.eq.s32.totalorder %s15, 3
    %p50 = por %p48, %p49
    %p52 = scmp.ne.s32.totalorder %s35, %s51
    %p53 = scmp.eq.s32.totalorder %s15, 0
    %p54 = por %p52, %p53
    %s56 = sadd.s32 %s55, 1
    %p59 = scmp.eq.s32.totalorder %s9, 3
    %p60 = scmp.ne.s32.totalorder %s55, %s57
    %p61 = scmp.eq.s32.totalorder %s9, 0
    %p62 = por %p60, %p61
    %p63 = scmp.ne.s32.totalorder %s55, %s57
    %p64 = scmp.eq.s32.totalorder %s14, 3
    %p65 = por %p63, %p64
    %p66 = scmp.ne.s32.totalorder %s57, %s58
    %p67 = scmp.eq.s32.totalorder %s14, 0
    %p68 = por %p66, %p67
    %p69 = scmp.ne.s32.totalorder %s57, %s58
    %p70 = scmp.eq.s32.totalorder %s15, 3
    %p71 = por %p69, %p70
    %p73 = scmp.ne.s32.totalorder %s58, %s72
    %p74 = scmp.eq.s32.totalorder %s15, 0
    %p75 = por %p73, %p74
    %s77 = sadd.s32 %s76, 1
    %p80 = scmp.eq.s32.totalorder %s9, 3
    %p81 = scmp.ne.s32.totalorder %s76, %s78
    %p82 = scmp.eq.s32.totalorder %s9, 0
    %p83 = por %p81, %p82
    %p84 = scmp.ne.s32.totalorder %s76, %s78
    %p85 = scmp.eq.s32.totalorder %s14, 3
    %p86 = por %p84, %p85
    %p87 = scmp.ne.s32.totalorder %s78, %s79
    %p88 = scmp.eq.s32.totalorder %s14, 0
    %p89 = por %p87, %p88
    %p90 = scmp.ne.s32.totalorder %s78, %s79
    %p91 = scmp.eq.s32.totalorder %s15, 3
    %p92 = por %p90, %p91
    %p94 = scmp.ne.s32.totalorder %s79, %s93
    %p95 = scmp.eq.s32.totalorder %s15, 0
    %p96 = por %p94, %p95
    %s97 = ssub.s32 %s16, %s28
    %s98 = ssub.s32 %s17, %s24
    %s99 = sor.u32 %s97, %s98
    %p100 = scmp.eq.s32.totalorder %s99, 0
    %s102 = sadd.s32 %s101, 1
    %s103 = scalar_select %p100, %s101, %s102
    %p106 = pneg %p100
    %p107 = scmp.eq.s32.totalorder %s9, 3
    %p108 = por %p106, %p107
    %p109 = scmp.ne.s32.totalorder %s101, %s104
    %p110 = scmp.eq.s32.totalorder %s9, 0
    %p111 = por %p109, %p110
    %p112 = scmp.ne.s32.totalorder %s101, %s104
    %p113 = scmp.eq.s32.totalorder %s14, 3
    %p114 = por %p112, %p113
    %p115 = scmp.ne.s32.totalorder %s104, %s105
    %p116 = scmp.eq.s32.totalorder %s14, 0
    %p117 = por %p115, %p116
    %p118 = scmp.ne.s32.totalorder %s104, %s105
    %p119 = scmp.eq.s32.totalorder %s15, 3
    %p120 = por %p118, %p119
    %p122 = scmp.ne.s32.totalorder %s105, %s121
    %p123 = scmp.eq.s32.totalorder %s15, 0
    %p124 = por %p122, %p123
    %p125 = scmp.le.s32.totalorder 1, %s9
    %p126 = scmp.lt.s32.totalorder %s9, 5
    %p127 = pnand %p125, %p126
    %p128 = pneg %p127
    // Predicated region
    $region9: #{tpu_custom_call.1} parent=5 // pred_check
      _
    $region10: #{tpu_custom_call.1} parent=5 // pred_check_branch
      %130 = sbr.rel (%p127) target = $region12
    $region11: #{tpu_custom_call.1} parent=5 // pred_region
      %s131 = ssub.s32 %s9, 1
      // Predicated region
      $region13: #{tpu_custom_call.1} parent=11 // pred_check
        %p132 = pneg %p68
      $region14: #{tpu_custom_call.1} parent=11 // pred_check_branch
        %134 = sbr.rel (%p132) target = $region16
      $region15: #{tpu_custom_call.1} parent=11 // pred_region
        _
      $region16: #{tpu_custom_call.1} parent=11 // pred_fallthru
        _
      // Predicated region
      $region17: #{tpu_custom_call.1} parent=11 // pred_check
        %p135 = pneg %p89
      $region18: #{tpu_custom_call.1} parent=11 // pred_check_branch
        %137 = sbr.rel (%p135) target = $region20
      $region19: #{tpu_custom_call.1} parent=11 // pred_region
        _
      $region20: #{tpu_custom_call.1} parent=11 // pred_fallthru
        _
    $region12: #{tpu_custom_call.1} parent=5 // pred_fallthru
      _
    %p138 = scmp.lt.s32.totalorder %s9, 4
    // Predicated region
    $region21: #{tpu_custom_call.1} parent=5 // pred_check
      %p139 = pneg %p138
    $region22: #{tpu_custom_call.1} parent=5 // pred_check_branch
      %141 = sbr.rel (%p139) target = $region24
    $region23: #{tpu_custom_call.1} parent=5 // pred_region
      // Predicated region
      $region25: #{tpu_custom_call.1} parent=23 // pred_check
        %p142 = pneg %p41
      $region26: #{tpu_custom_call.1} parent=23 // pred_check_branch
        %144 = sbr.rel (%p142) target = $region28
      $region27: #{tpu_custom_call.1} parent=23 // pred_region
        %p145 = scmp.lt.s32.totalorder %s16, 1
        %s146 = scalar_select %p145, %s16, 1
        %s147 = smul.addr %s146, 32
        %s148 = smul.addr %s147, 4
        %s149 = scalar_lea.vmem %s0, %s148
      $region28: #{tpu_custom_call.1} parent=23 // pred_fallthru
        _
    $region24: #{tpu_custom_call.1} parent=5 // pred_fallthru
      _
    %p150 = scmp.le.s32.totalorder 1, %s9
    %p151 = scmp.lt.s32.totalorder %s9, 5
    %p152 = pnand %p150, %p151
    %p153 = pneg %p152
    // Predicated region
    $region29: #{tpu_custom_call.1} parent=5 // pred_check
      _
    $region30: #{tpu_custom_call.1} parent=5 // pred_check_branch
      %155 = sbr.rel (%p152) target = $region32
    $region31: #{tpu_custom_call.1} parent=5 // pred_region
      %s156 = ssub.s32 %s9, 1
      %p157 = scmp.lt.s32.totalorder %s18, 1
      %s158 = scalar_select %p157, %s18, 1
      %s159 = smul.addr %s158, 32
      %s160 = smul.addr %s159, 4
      %s161 = scalar_lea.vmem %s0, %s160
      %p162 = pneg %p47
      %p163 = pneg %p44
      %p164 = pneg %p68
      %p165 = pneg %p65
      %p166 = pneg %p89
      %p167 = pneg %p86
      %p168 = pneg %p117
      %p169 = pneg %p114
      %s170 = smul.u32 8, %s19
      %p171 = scmp.lt.s32.totalorder %s18, 1
      %s172 = scalar_select %p171, %s18, 1
      %p173 = scmp.lt.s32.totalorder %s170, 15
      %s174 = scalar_select %p173, %s170, 15
      %s175 = smul.addr %s174, 2
      %s176 = smul.addr %s172, 32
      %s177 = sadd.s32 %s175, %s176
      %s178 = smul.addr %s177, 4
      %s179 = scalar_lea.vmem %s3, %s178
      %p180 = scmp.lt.s32.totalorder %s18, 1
      %s181 = scalar_select %p180, %s18, 1
      %s182 = smul.addr %s181, 32
      %s183 = smul.addr %s182, 4
      %s184 = scalar_lea.vmem %s0, %s183
      %s185 = smul.u32 8, %s19
      %p186 = scmp.lt.s32.totalorder %s18, 1
      %s187 = scalar_select %p186, %s18, 1
      %p188 = scmp.lt.s32.totalorder %s185, 15
      %s189 = scalar_select %p188, %s185, 15
      %s190 = smul.addr %s189, 2
      %s191 = smul.addr %s187, 32
      %s192 = sadd.s32 %s190, %s191
      %s193 = smul.addr %s192, 4
      %s194 = scalar_lea.vmem %s3, %s193
      %s195 = smul.u32 8, %s19
      %s197 = smul.u32 %s19, 8
      %vm198 = vcmask 16384
      %vm199 = vsmask.f32 256
      %vm200 = vmand %vm198, %vm199
      %v201 = vld [vmem:[#allocation2] sm:$0x1]
      %v202 = vsel %vm200, 0, %v201
      %203 = vst [vmem:[#allocation2] sm:$0x1] %v202
      %v204 = vld [vmem:[#allocation2 + $0xc] sm:$0x1]
      %v205 = vsel %vm200, 0, %v204
      %206 = vst [vmem:[#allocation2 + $0xc] sm:$0x1] %v205
      %v207 = vld [vmem:[#allocation2 + $0x18] sm:$0x1]
      %v208 = vsel %vm200, 0, %v207
      %209 = vst [vmem:[#allocation2 + $0x18] sm:$0x1] %v208
      %v210 = vld [vmem:[#allocation2 + $0x24] sm:$0x1]
      %v211 = vsel %vm200, 0, %v210
      %212 = vst [vmem:[#allocation2 + $0x24] sm:$0x1] %v211
      %v213 = vld [vmem:[#allocation2 + $0x30] sm:$0x1]
      %v214 = vsel %vm200, 0, %v213
      %215 = vst [vmem:[#allocation2 + $0x30] sm:$0x1] %v214
      %v216 = vld [vmem:[#allocation2 + $0x3c] sm:$0x1]
      %v217 = vsel %vm200, 0, %v216
      %218 = vst [vmem:[#allocation2 + $0x3c] sm:$0x1] %v217
      %v219 = vld [vmem:[#allocation2 + $0x48] sm:$0x1]
      %v220 = vsel %vm200, 0, %v219
      %221 = vst [vmem:[#allocation2 + $0x48] sm:$0x1] %v220
      %v222 = vld [vmem:[#allocation2 + $0x54] sm:$0x1]
      %v223 = vsel %vm200, 0, %v222
      %224 = vst [vmem:[#allocation2 + $0x54] sm:$0x1] %v223
      %v225 = vld [vmem:[#allocation2 + $0x60] sm:$0x1]
      %v226 = vsel %vm200, 0, %v225
      %227 = vst [vmem:[#allocation2 + $0x60] sm:$0x1] %v226
      %v228 = vld [vmem:[#allocation2 + $0x6c] sm:$0x1]
      %v229 = vsel %vm200, 0, %v228
      %230 = vst [vmem:[#allocation2 + $0x6c] sm:$0x1] %v229
      %vm231 = vsmask.f32 7938
      %vm232 = vmand %vm198, %vm231
      %v233 = vld [vmem:[#allocation2 + $0x8] sm:$0x1]
      %v234 = vsel %vm232, 0, %v233
      %235 = vst [vmem:[#allocation2 + $0x8] sm:$0x1] %v234
      %v236 = vld [vmem:[#allocation2 + $0x14] sm:$0x1]
      %v237 = vsel %vm232, 0, %v236
      %238 = vst [vmem:[#allocation2 + $0x14] sm:$0x1] %v237
      %v239 = vld [vmem:[#allocation2 + $0x20] sm:$0x1]
      %v240 = vsel %vm232, 0, %v239
      %241 = vst [vmem:[#allocation2 + $0x20] sm:$0x1] %v240
      %v242 = vld [vmem:[#allocation2 + $0x2c] sm:$0x1]
      %v243 = vsel %vm232, 0, %v242
      %244 = vst [vmem:[#allocation2 + $0x2c] sm:$0x1] %v243
      %v245 = vld [vmem:[#allocation2 + $0x38] sm:$0x1]
      %v246 = vsel %vm232, 0, %v245
      %247 = vst [vmem:[#allocation2 + $0x38] sm:$0x1] %v246
      %v248 = vld [vmem:[#allocation2 + $0x44] sm:$0x1]
      %v249 = vsel %vm232, 0, %v248
      %250 = vst [vmem:[#allocation2 + $0x44] sm:$0x1] %v249
      %v251 = vld [vmem:[#allocation2 + $0x50] sm:$0x1]
      %v252 = vsel %vm232, 0, %v251
      %253 = vst [vmem:[#allocation2 + $0x50] sm:$0x1] %v252
      %v254 = vld [vmem:[#allocation2 + $0x5c] sm:$0x1]
      %v255 = vsel %vm232, 0, %v254
      %256 = vst [vmem:[#allocation2 + $0x5c] sm:$0x1] %v255
      %v257 = vld [vmem:[#allocation2 + $0x68] sm:$0x1]
      %v258 = vsel %vm232, 0, %v257
      %259 = vst [vmem:[#allocation2 + $0x68] sm:$0x1] %v258
      %v260 = vld [vmem:[#allocation2 + $0x74] sm:$0x1]
      %v261 = vsel %vm232, 0, %v260
      %262 = vst [vmem:[#allocation2 + $0x74] sm:$0x1] %v261
      %s263 = smul.u32 %s197, 2
      %s264 = smul.addr %s263, 4
      %s265 = scalar_lea.vmem %s184, %s264
      %v266 = vld [vmem:[%s265] sm:$0xf]
      %v267 = vld [vmem:[%s265 + $0x4] sm:$0xf]
      %v268 = vld [vmem:[%s265 + $0x8] sm:$0xf]
      %v269 = vld [vmem:[%s265 + $0xc] sm:$0xf]
      %v270 = vld [vmem:[%s265 + $0x10] sm:$0xf]
      %v271 = vld [vmem:[%s265 + $0x14] sm:$0xf]
      %v272 = vld [vmem:[%s265 + $0x18] sm:$0xf]
      %v273 = vld [vmem:[%s265 + $0x1c] sm:$0xf]
      %v274 = vld [vmem:[%s265 + $0x20] sm:$0xf]
      %v275 = vld [vmem:[%s265 + $0x24] sm:$0xf]
      %v276 = vld [vmem:[%s265 + $0x28] sm:$0xf]
      %v277 = vld [vmem:[%s265 + $0x2c] sm:$0xf]
      %v278 = vld [vmem:[%s265 + $0x30] sm:$0xf]
      %v279 = vld [vmem:[%s265 + $0x34] sm:$0xf]
      %v280 = vld [vmem:[%s265 + $0x38] sm:$0xf]
      %v281 = vld [vmem:[%s265 + $0x3c] sm:$0xf]
      %vm282 = vsmask.f32 4368
      %vm283 = vmor %vm199, %vm282
      %v285 = vshrl.u32 %v266, 16
      %v287 = vrot.slane %v285, 7
      %v288 = vshll.u32 %v266, 16
      %v290 = vor.u32 %v287, %v288
      %v291 = vrot.slane %v287, 4
      %v293 = vshrl.u32 %v267, 16
      %v295 = vrot.slane %v293, 7
      %v296 = vshll.u32 %v267, 16
      %v298 = vor.u32 %v295, %v296
      %v299 = vsel %vm283, %v291, %v298
      %v300 = vrot.slane %v295, 4
      %v302 = vshrl.u32 %v268, 16
      %v304 = vrot.slane %v302, 7
      %v305 = vshll.u32 %v268, 16
      %v307 = vor.u32 %v304, %v305
      %v308 = vrot.slane %v304, 4
      %v310 = vshrl.u32 %v269, 16
      %v312 = vrot.slane %v310, 7
      %v313 = vshll.u32 %v269, 16
      %v315 = vor.u32 %v312, %v313
      %v316 = vsel %vm283, %v308, %v315
      %v317 = vrot.slane %v312, 4
      %v319 = vshrl.u32 %v270, 16
      %v321 = vrot.slane %v319, 7
      %v322 = vshll.u32 %v270, 16
      %v324 = vor.u32 %v321, %v322
      %v325 = vrot.slane %v321, 4
      %v327 = vshrl.u32 %v271, 16
      %v329 = vrot.slane %v327, 7
      %v330 = vshll.u32 %v271, 16
      %v332 = vor.u32 %v329, %v330
      %v333 = vsel %vm283, %v325, %v332
      %v334 = vrot.slane %v329, 4
      %v336 = vshrl.u32 %v272, 16
      %v338 = vrot.slane %v336, 7
      %v339 = vshll.u32 %v272, 16
      %v341 = vor.u32 %v338, %v339
      %v342 = vrot.slane %v338, 4
      %v344 = vshrl.u32 %v273, 16
      %v346 = vrot.slane %v344, 7
      %v347 = vshll.u32 %v273, 16
      %v349 = vor.u32 %v346, %v347
      %v350 = vsel %vm283, %v342, %v349
      %v351 = vrot.slane %v346, 4
      %v353 = vshrl.u32 %v274, 16
      %v355 = vrot.slane %v353, 7
      %v356 = vshll.u32 %v274, 16
      %v358 = vor.u32 %v355, %v356
      %v359 = vrot.slane %v355, 4
      %v361 = vshrl.u32 %v275, 16
      %v363 = vrot.slane %v361, 7
      %v364 = vshll.u32 %v275, 16
      %v366 = vor.u32 %v363, %v364
      %v367 = vsel %vm283, %v359, %v366
      %v368 = vrot.slane %v363, 4
      %v370 = vshrl.u32 %v276, 16
      %v372 = vrot.slane %v370, 7
      %v373 = vshll.u32 %v276, 16
      %v375 = vor.u32 %v372, %v373
      %v376 = vrot.slane %v372, 4
      %v378 = vshrl.u32 %v277, 16
      %v380 = vrot.slane %v378, 7
      %v381 = vshll.u32 %v277, 16
      %v383 = vor.u32 %v380, %v381
      %v384 = vsel %vm283, %v376, %v383
      %v385 = vrot.slane %v380, 4
      %v387 = vshrl.u32 %v278, 16
      %v389 = vrot.slane %v387, 7
      %v390 = vshll.u32 %v278, 16
      %v392 = vor.u32 %v389, %v390
      %v393 = vrot.slane %v389, 4
      %v395 = vshrl.u32 %v279, 16
      %v397 = vrot.slane %v395, 7
      %v398 = vshll.u32 %v279, 16
      %v400 = vor.u32 %v397, %v398
      %v401 = vsel %vm283, %v393, %v400
      %v402 = vrot.slane %v397, 4
      %v404 = vshrl.u32 %v280, 16
      %v406 = vrot.slane %v404, 7
      %v407 = vshll.u32 %v280, 16
      %v409 = vor.u32 %v406, %v407
      %v410 = vrot.slane %v406, 4
      %v412 = vshrl.u32 %v281, 16
      %v414 = vrot.slane %v412, 7
      %v415 = vshll.u32 %v281, 16
      %v417 = vor.u32 %v414, %v415
      %v418 = vsel %vm283, %v410, %v417
      %v419 = vrot.slane %v414, 4
      %s444 = scalar_lea.vmem [#allocation2], 12
      %vm445 = vcmask 19456
      %vm446 = vmand %vm445, %vm231
      %v447 = vld [vmem:[%s444] sm:$0xf]
      %v448 = vsel %vm446, %v290, %v447
      %449 = vst [vmem:[%s444] sm:$0xf] %v448
      %vm450 = vcmask 19456
      %451 = vst.msk [vmem:[%s444 + $0x4] sm:$0xf] %vm450, %v299
      %v452 = vld [vmem:[%s444 + $0x8] sm:$0x1]
      %v453 = vsel %vm200, %v300, %v452
      %454 = vst [vmem:[%s444 + $0x8] sm:$0x1] %v453
      %v455 = vld [vmem:[%s444 + $0xc] sm:$0xf]
      %v456 = vsel %vm446, %v307, %v455
      %457 = vst [vmem:[%s444 + $0xc] sm:$0xf] %v456
      %458 = vst.msk [vmem:[%s444 + $0x10] sm:$0xf] %vm450, %v316
      %v459 = vld [vmem:[%s444 + $0x14] sm:$0x1]
      %v460 = vsel %vm200, %v317, %v459
      %461 = vst [vmem:[%s444 + $0x14] sm:$0x1] %v460
      %v462 = vld [vmem:[%s444 + $0x18] sm:$0xf]
      %v463 = vsel %vm446, %v324, %v462
      %464 = vst [vmem:[%s444 + $0x18] sm:$0xf] %v463
      %465 = vst.msk [vmem:[%s444 + $0x1c] sm:$0xf] %vm450, %v333
      %v466 = vld [vmem:[%s444 + $0x20] sm:$0x1]
      %v467 = vsel %vm200, %v334, %v466
      %468 = vst [vmem:[%s444 + $0x20] sm:$0x1] %v467
      %v469 = vld [vmem:[%s444 + $0x24] sm:$0xf]
      %v470 = vsel %vm446, %v341, %v469
      %471 = vst [vmem:[%s444 + $0x24] sm:$0xf] %v470
      %472 = vst.msk [vmem:[%s444 + $0x28] sm:$0xf] %vm450, %v350
      %v473 = vld [vmem:[%s444 + $0x2c] sm:$0x1]
      %v474 = vsel %vm200, %v351, %v473
      %475 = vst [vmem:[%s444 + $0x2c] sm:$0x1] %v474
      %v476 = vld [vmem:[%s444 + $0x30] sm:$0xf]
      %v477 = vsel %vm446, %v358, %v476
      %478 = vst [vmem:[%s444 + $0x30] sm:$0xf] %v477
      %479 = vst.msk [vmem:[%s444 + $0x34] sm:$0xf] %vm450, %v367
      %v480 = vld [vmem:[%s444 + $0x38] sm:$0x1]
      %v481 = vsel %vm200, %v368, %v480
      %482 = vst [vmem:[%s444 + $0x38] sm:$0x1] %v481
      %v483 = vld [vmem:[%s444 + $0x3c] sm:$0xf]
      %v484 = vsel %vm446, %v375, %v483
      %485 = vst [vmem:[%s444 + $0x3c] sm:$0xf] %v484
      %486 = vst.msk [vmem:[%s444 + $0x40] sm:$0xf] %vm450, %v384
      %v487 = vld [vmem:[%s444 + $0x44] sm:$0x1]
      %v488 = vsel %vm200, %v385, %v487
      %489 = vst [vmem:[%s444 + $0x44] sm:$0x1] %v488
      %v490 = vld [vmem:[%s444 + $0x48] sm:$0xf]
      %v491 = vsel %vm446, %v392, %v490
      %492 = vst [vmem:[%s444 + $0x48] sm:$0xf] %v491
      %493 = vst.msk [vmem:[%s444 + $0x4c] sm:$0xf] %vm450, %v401
      %v494 = vld [vmem:[%s444 + $0x50] sm:$0x1]
      %v495 = vsel %vm200, %v402, %v494
      %496 = vst [vmem:[%s444 + $0x50] sm:$0x1] %v495
      %v497 = vld [vmem:[%s444 + $0x54] sm:$0xf]
      %v498 = vsel %vm446, %v409, %v497
      %499 = vst [vmem:[%s444 + $0x54] sm:$0xf] %v498
      %500 = vst.msk [vmem:[%s444 + $0x58] sm:$0xf] %vm450, %v418
      %v501 = vld [vmem:[%s444 + $0x5c] sm:$0x1]
      %v502 = vsel %vm200, %v419, %v501
      %503 = vst [vmem:[%s444 + $0x5c] sm:$0x1] %v502
      %s504 = ssub.s32 %s197, 1
      %p505 = scmp.gt.s32.totalorder %s504, 0
      %s506 = scalar_select %p505, %s504, 0
      %s507 = smul.u32 %s506, 2
      %s508 = smul.addr %s507, 4
      %s509 = scalar_lea.vmem %s184, %s508
      %v510 = vld [vmem:[%s509] sm:$0xf]
      %v511 = vld [vmem:[%s509 + $0x4] sm:$0xf]
      %p512 = scmp.gt.s32.totalorder %s197, 0
      %s513 = scalar_select %p512, 1, 0
      %v514 = vstv %s513
      %vm515 = vcmp.eq.s32.totalorder %v514, 1
      %v516 = vsel %vm515, %v510, 0
      %v517 = vsel %vm515, %v511, 0
      %v519 = vshrl.u32 %v516, 16
      %v521 = vrot.slane %v519, 7
      %v522 = vshll.u32 %v516, 16
      %v524 = vor.u32 %v521, %v522
      %v525 = vrot.slane %v521, 4
      %v527 = vshrl.u32 %v517, 16
      %v529 = vrot.slane %v527, 7
      %v530 = vshll.u32 %v517, 16
      %v532 = vor.u32 %v529, %v530
      %v533 = vsel %vm283, %v525, %v532
      %v534 = vrot.slane %v529, 4
      %v538 = vld [vmem:[#allocation2] sm:$0xf]
      %v539 = vsel %vm446, %v524, %v538
      %540 = vst [vmem:[#allocation2] sm:$0xf] %v539
      %541 = vst.msk [vmem:[#allocation2 + $0x4] sm:$0xf] %vm450, %v533
      %v542 = vld [vmem:[#allocation2 + $0x8] sm:$0x1]
      %v543 = vsel %vm200, %v534, %v542
      %544 = vst [vmem:[#allocation2 + $0x8] sm:$0x1] %v543
      %s545 = sadd.s32 %s197, 8
      %p546 = scmp.lt.s32.totalorder %s545, 15
      %s547 = scalar_select %p546, %s545, 15
      %s548 = smul.u32 %s547, 2
      %s549 = smul.addr %s548, 4
      %s550 = scalar_lea.vmem %s184, %s549
      %v551 = vld [vmem:[%s550] sm:$0xf]
      %v552 = vld [vmem:[%s550 + $0x4] sm:$0xf]
      %p553 = scmp.lt.s32.totalorder %s545, 16
      %s554 = scalar_select %p553, 1, 0
      %v555 = vstv %s554
      %vm556 = vcmp.eq.s32.totalorder %v555, 1
      %v557 = vsel %vm556, %v551, 0
      %v558 = vsel %vm556, %v552, 0
      %v560 = vshrl.u32 %v557, 16
      %v562 = vrot.slane %v560, 7
      %v563 = vshll.u32 %v557, 16
      %v565 = vor.u32 %v562, %v563
      %v566 = vrot.slane %v562, 4
      %v568 = vshrl.u32 %v558, 16
      %v570 = vrot.slane %v568, 7
      %v571 = vshll.u32 %v558, 16
      %v573 = vor.u32 %v570, %v571
      %v574 = vsel %vm283, %v566, %v573
      %v575 = vrot.slane %v570, 4
      %s579 = scalar_lea.vmem [#allocation2], 108
      %v580 = vld [vmem:[%s579] sm:$0xf]
      %v581 = vsel %vm446, %v565, %v580
      %582 = vst [vmem:[%s579] sm:$0xf] %v581
      %583 = vst.msk [vmem:[%s579 + $0x4] sm:$0xf] %vm450, %v574
      %v584 = vld [vmem:[%s579 + $0x8] sm:$0x1]
      %v585 = vsel %vm200, %v575, %v584
      %586 = vst [vmem:[%s579 + $0x8] sm:$0x1] %v585
      %v587 = vld [vmem:[%s2] sm:$0x1]
      %v589 = vlaneseq
      %v590 = vshrl.u32 %v589, 7
      %v591 = vsub.s32 0, %v590
      %v592 = vrot.slane %v587, %v591
      %vm594 = vcmask 64512
      %595 = vst.msk [vmem:[#allocation3] sm:$0xff] %vm594, %v592
      %596 = vst.msk [vmem:[#allocation3 + $0x8] sm:$0xff] %vm594, %v592
      %597 = vst.msk [vmem:[#allocation3 + $0x10] sm:$0xff] %vm594, %v592
      %598 = vst.msk [vmem:[#allocation3 + $0x18] sm:$0xff] %vm594, %v592
      %599 = vst.msk [vmem:[#allocation3 + $0x20] sm:$0xff] %vm594, %v592
      %600 = vst.msk [vmem:[#allocation3 + $0x28] sm:$0xff] %vm594, %v592
      %601 = vst.msk [vmem:[#allocation3 + $0x30] sm:$0xff] %vm594, %v592
      %602 = vst.msk [vmem:[#allocation3 + $0x38] sm:$0xff] %vm594, %v592
      %603 = vst.msk [vmem:[#allocation3 + $0x40] sm:$0xff] %vm594, %v592
      %604 = vst.msk [vmem:[#allocation3 + $0x48] sm:$0xff] %vm594, %v592
      %605 = vst.msk [vmem:[#allocation3 + $0x50] sm:$0xff] %vm594, %v592
      %606 = vst.msk [vmem:[#allocation3 + $0x58] sm:$0xff] %vm594, %v592
      %607 = vst.msk [vmem:[#allocation3 + $0x60] sm:$0xff] %vm594, %v592
      %608 = vst.msk [vmem:[#allocation3 + $0x68] sm:$0xff] %vm594, %v592
      %609 = vst.msk [vmem:[#allocation3 + $0x70] sm:$0xff] %vm594, %v592
      %610 = vst.msk [vmem:[#allocation3 + $0x78] sm:$0xff] %vm594, %v592
      %v611 = vld [vmem:[#allocation2] sm:$0xf]
      %v612 = vld [vmem:[#allocation2 + $0x4] sm:$0xf]
      %v613 = vld [vmem:[#allocation2 + $0xc] sm:$0xf]
      %v614 = vld [vmem:[#allocation2 + $0x10] sm:$0xf]
      %v615 = vld [vmem:[#allocation2 + $0x18] sm:$0xf]
      %v616 = vld [vmem:[#allocation2 + $0x1c] sm:$0xf]
      %v617 = vld [vmem:[#allocation2 + $0x24] sm:$0xf]
      %v618 = vld [vmem:[#allocation2 + $0x28] sm:$0xf]
      %v619 = vld [vmem:[#allocation2 + $0x30] sm:$0xf]
      %v620 = vld [vmem:[#allocation2 + $0x34] sm:$0xf]
      %v621 = vld [vmem:[#allocation2 + $0x3c] sm:$0xf]
      %v622 = vld [vmem:[#allocation2 + $0x40] sm:$0xf]
      %v623 = vld [vmem:[#allocation2 + $0x48] sm:$0xf]
      %v624 = vld [vmem:[#allocation2 + $0x4c] sm:$0xf]
      %v625 = vld [vmem:[#allocation2 + $0x54] sm:$0xf]
      %v626 = vld [vmem:[#allocation2 + $0x58] sm:$0xf]
      %v627 = vld [vmem:[#allocation3] sm:$0xff]
      %v628 = vld [vmem:[#allocation3 + $0x8] sm:$0xff]
      %v629 = vld [vmem:[#allocation3 + $0x10] sm:$0xff]
      %v630 = vld [vmem:[#allocation3 + $0x18] sm:$0xff]
      %v631 = vld [vmem:[#allocation3 + $0x20] sm:$0xff]
      %v632 = vld [vmem:[#allocation3 + $0x28] sm:$0xff]
      %v633 = vld [vmem:[#allocation3 + $0x30] sm:$0xff]
      %v634 = vld [vmem:[#allocation3 + $0x38] sm:$0xff]
      %v635 = vld [vmem:[#allocation3 + $0x40] sm:$0xff]
      %v636 = vld [vmem:[#allocation3 + $0x48] sm:$0xff]
      %v637 = vld [vmem:[#allocation3 + $0x50] sm:$0xff]
      %v638 = vld [vmem:[#allocation3 + $0x58] sm:$0xff]
      %v639 = vld [vmem:[#allocation3 + $0x60] sm:$0xff]
      %v640 = vld [vmem:[#allocation3 + $0x68] sm:$0xff]
      %v641 = vld [vmem:[#allocation3 + $0x70] sm:$0xff]
      %v642 = vld [vmem:[#allocation3 + $0x78] sm:$0xff]
      %v643 = vld [vmem:[%s1] sm:$0x3]
      %v660 = vunpack.c.l.b16 %v611
      %v661 = vunpack.c.l.b16 %v612
      %v662 = vunpack.c.l.b16 %v613
      %v663 = vunpack.c.l.b16 %v614
      %v664 = vunpack.c.l.b16 %v615
      %v665 = vunpack.c.l.b16 %v616
      %v666 = vunpack.c.l.b16 %v617
      %v667 = vunpack.c.l.b16 %v618
      %v668 = vunpack.c.l.b16 %v619
      %v669 = vunpack.c.l.b16 %v620
      %v670 = vunpack.c.l.b16 %v621
      %v671 = vunpack.c.l.b16 %v622
      %v672 = vunpack.c.l.b16 %v623
      %v673 = vunpack.c.l.b16 %v624
      %v674 = vunpack.c.l.b16 %v625
      %v675 = vunpack.c.l.b16 %v626
      %v676 = vpack.c.b16 %v661, %v660
      %v677 = vpack.c.b16 %v663, %v662
      %v678 = vpack.c.b16 %v665, %v664
      %v679 = vpack.c.b16 %v667, %v666
      %v680 = vpack.c.b16 %v669, %v668
      %v681 = vpack.c.b16 %v671, %v670
      %v682 = vpack.c.b16 %v673, %v672
      %v683 = vpack.c.b16 %v675, %v674
      %vm684 = vcmask 23552
      %v686 = vsel %vm684, %v676, 0
      %v689 = vsel %vm684, %v677, 0
      %v692 = vsel %vm684, %v678, 0
      %v695 = vsel %vm684, %v679, 0
      %v698 = vsel %vm684, %v680, 0
      %v701 = vsel %vm684, %v681, 0
      %v704 = vsel %vm684, %v682, 0
      %v707 = vsel %vm684, %v683, 0
      %vm709 = vcmask 1040384
      %vm710 = vcmask 1041408
      %v711 = vsel %vm709, 4294967295, 65535
      %v712 = vsel %vm710, %v711, 0
      %v714 = vand.u32 %v643, %v712
      %716 = vmatprep.subr.bf16.mxu0 0
      %717 = vmatpush1.bf16.msra.mxu0 %v714
      %718 = vmatprep.subr.bf16.mxu0 0
      %719 = vmatpush1.bf16.msra.mxu0 0
      %720 = vmatprep.subr.bf16.mxu0 0
      %721 = vmatpush1.bf16.msra.mxu0 0
      %722 = vmatprep.subr.bf16.mxu0 0
      %723 = vmatpush1.bf16.msra.mxu0 0
      %724 = vmatprep.subr.bf16.mxu0 0
      %725 = vmatpush1.bf16.msra.mxu0 0
      %726 = vmatprep.subr.bf16.mxu0 0
      %727 = vmatpush1.bf16.msra.mxu0 0
      %728 = vmatprep.subr.bf16.mxu0 0
      %729 = vmatpush1.bf16.msra.mxu0 0
      %730 = vmatprep.subr.bf16.mxu0 0
      %731 = vmatpush1.bf16.msra.mxu0 0
      %732 = vmatprep.subr.bf16.mxu0 0
      %733 = vmatpush1.bf16.msra.mxu0 0
      %734 = vmatprep.subr.bf16.mxu0 0
      %735 = vmatpush1.bf16.msra.mxu0 0
      %736 = vmatprep.subr.bf16.mxu0 0
      %737 = vmatpush1.bf16.msra.mxu0 0
      %738 = vmatprep.subr.bf16.mxu0 0
      %739 = vmatpush1.bf16.msra.mxu0 0
      %740 = vmatprep.subr.bf16.mxu0 0
      %741 = vmatpush1.bf16.msra.mxu0 0
      %742 = vmatprep.subr.bf16.mxu0 0
      %743 = vmatpush1.bf16.msra.mxu0 0
      %744 = vmatprep.subr.bf16.mxu0 0
      %745 = vmatpush1.bf16.msra.mxu0 0
      %746 = vmatprep.subr.bf16.mxu0 0
      %747 = vmatpush1.bf16.msra.mxu0 0
      %748 = vmatprep.mubr.bf16.mxu0 0
      %749 = vmatmul.mubr.bf16.gmra.mrb[0].mxu0 %v686
      %v750 = vpop.f32.mrb[0].mxu0
      %v751 = vadd.f32 0.0, %v750
      %v752 = vpop.f32.mrb[0].mxu0
      %v753 = vpop.f32.mrb[0].mxu0
      %v754 = vadd.f32 0.0, %v753
      %v755 = vpop.f32.mrb[0].mxu0
      %756 = vmatprep.mubr.bf16.mxu0 0
      %757 = vmatmul.mubr.bf16.gmra.mrb[0].mxu0 %v689
      %v758 = vpop.f32.mrb[0].mxu0
      %v759 = vadd.f32 0.0, %v758
      %v760 = vpop.f32.mrb[0].mxu0
      %v761 = vpop.f32.mrb[0].mxu0
      %v762 = vadd.f32 0.0, %v761
      %v763 = vpop.f32.mrb[0].mxu0
      %764 = vmatprep.mubr.bf16.mxu0 0
      %765 = vmatmul.mubr.bf16.gmra.mrb[0].mxu0 %v692
      %v766 = vpop.f32.mrb[0].mxu0
      %v767 = vadd.f32 0.0, %v766
      %v768 = vpop.f32.mrb[0].mxu0
      %v769 = vpop.f32.mrb[0].mxu0
      %v770 = vadd.f32 0.0, %v769
      %v771 = vpop.f32.mrb[0].mxu0
      %772 = vmatprep.mubr.bf16.mxu0 0
      %773 = vmatmul.mubr.bf16.gmra.mrb[0].mxu0 %v695
      %v774 = vpop.f32.mrb[0].mxu0
      %v775 = vadd.f32 0.0, %v774
      %v776 = vpop.f32.mrb[0].mxu0
      %v777 = vpop.f32.mrb[0].mxu0
      %v778 = vadd.f32 0.0, %v777
      %v779 = vpop.f32.mrb[0].mxu0
      %780 = vmatprep.mubr.bf16.mxu0 0
      %781 = vmatmul.mubr.bf16.gmra.mrb[0].mxu0 %v698
      %v782 = vpop.f32.mrb[0].mxu0
      %v783 = vadd.f32 0.0, %v782
      %v784 = vpop.f32.mrb[0].mxu0
      %v785 = vpop.f32.mrb[0].mxu0
      %v786 = vadd.f32 0.0, %v785
      %v787 = vpop.f32.mrb[0].mxu0
      %788 = vmatprep.mubr.bf16.mxu0 0
      %789 = vmatmul.mubr.bf16.gmra.mrb[0].mxu0 %v701
      %v790 = vpop.f32.mrb[0].mxu0
      %v791 = vadd.f32 0.0, %v790
      %v792 = vpop.f32.mrb[0].mxu0
      %v793 = vpop.f32.mrb[0].mxu0
      %v794 = vadd.f32 0.0, %v793
      %v795 = vpop.f32.mrb[0].mxu0
      %796 = vmatprep.mubr.bf16.mxu0 0
      %797 = vmatmul.mubr.bf16.gmra.mrb[0].mxu0 %v704
      %v798 = vpop.f32.mrb[0].mxu0
      %v799 = vadd.f32 0.0, %v798
      %v800 = vpop.f32.mrb[0].mxu0
      %v801 = vpop.f32.mrb[0].mxu0
      %v802 = vadd.f32 0.0, %v801
      %v803 = vpop.f32.mrb[0].mxu0
      %804 = vmatprep.mubr.bf16.mxu0 0
      %805 = vmatmul.mubr.bf16.gmra.mrb[0].mxu0 %v707
      %v806 = vpop.f32.mrb[0].mxu0
      %v807 = vadd.f32 0.0, %v806
      %v808 = vpop.f32.mrb[0].mxu0
      %v809 = vpop.f32.mrb[0].mxu0
      %v810 = vadd.f32 0.0, %v809
      %v811 = vpop.f32.mrb[0].mxu0
      %812 = vdwg.mxu0
      %v813 = vadd.f32 %v627, %v751
      %v814 = vadd.f32 %v628, %v754
      %v815 = vadd.f32 %v629, %v759
      %v816 = vadd.f32 %v630, %v762
      %v817 = vadd.f32 %v631, %v767
      %v818 = vadd.f32 %v632, %v770
      %v819 = vadd.f32 %v633, %v775
      %v820 = vadd.f32 %v634, %v778
      %v821 = vadd.f32 %v635, %v783
      %v822 = vadd.f32 %v636, %v786
      %v823 = vadd.f32 %v637, %v791
      %v824 = vadd.f32 %v638, %v794
      %v825 = vadd.f32 %v639, %v799
      %v826 = vadd.f32 %v640, %v802
      %v827 = vadd.f32 %v641, %v807
      %v828 = vadd.f32 %v642, %v810
      %829 = vst.msk [vmem:[#allocation3] sm:$0xff] %vm594, %v813
      %830 = vst.msk [vmem:[#allocation3 + $0x8] sm:$0xff] %vm594, %v814
      %831 = vst.msk [vmem:[#allocation3 + $0x10] sm:$0xff] %vm594, %v815
      %832 = vst.msk [vmem:[#allocation3 + $0x18] sm:$0xff] %vm594, %v816
      %833 = vst.msk [vmem:[#allocation3 + $0x20] sm:$0xff] %vm594, %v817
      %834 = vst.msk [vmem:[#allocation3 + $0x28] sm:$0xff] %vm594, %v818
      %835 = vst.msk [vmem:[#allocation3 + $0x30] sm:$0xff] %vm594, %v819
      %836 = vst.msk [vmem:[#allocation3 + $0x38] sm:$0xff] %vm594, %v820
      %837 = vst.msk [vmem:[#allocation3 + $0x40] sm:$0xff] %vm594, %v821
      %838 = vst.msk [vmem:[#allocation3 + $0x48] sm:$0xff] %vm594, %v822
      %839 = vst.msk [vmem:[#allocation3 + $0x50] sm:$0xff] %vm594, %v823
      %840 = vst.msk [vmem:[#allocation3 + $0x58] sm:$0xff] %vm594, %v824
      %841 = vst.msk [vmem:[#allocation3 + $0x60] sm:$0xff] %vm594, %v825
      %842 = vst.msk [vmem:[#allocation3 + $0x68] sm:$0xff] %vm594, %v826
      %843 = vst.msk [vmem:[#allocation3 + $0x70] sm:$0xff] %vm594, %v827
      %844 = vst.msk [vmem:[#allocation3 + $0x78] sm:$0xff] %vm594, %v828
      %v845 = vld [vmem:[#allocation2] sm:$0xf]
      %v846 = vld [vmem:[#allocation2 + $0x4] sm:$0xf]
      %v847 = vld [vmem:[#allocation2 + $0x8] sm:$0x1]
      %v848 = vld [vmem:[#allocation2 + $0xc] sm:$0xf]
      %v849 = vld [vmem:[#allocation2 + $0x10] sm:$0xf]
      %v850 = vld [vmem:[#allocation2 + $0x14] sm:$0x1]
      %v851 = vld [vmem:[#allocation2 + $0x18] sm:$0xf]
      %v852 = vld [vmem:[#allocation2 + $0x1c] sm:$0xf]
      %v853 = vld [vmem:[#allocation2 + $0x20] sm:$0x1]
      %v854 = vld [vmem:[#allocation2 + $0x24] sm:$0xf]
      %v855 = vld [vmem:[#allocation2 + $0x28] sm:$0xf]
      %v856 = vld [vmem:[#allocation2 + $0x2c] sm:$0x1]
      %v857 = vld [vmem:[#allocation2 + $0x30] sm:$0xf]
      %v858 = vld [vmem:[#allocation2 + $0x34] sm:$0xf]
      %v859 = vld [vmem:[#allocation2 + $0x38] sm:$0x1]
      %v860 = vld [vmem:[#allocation2 + $0x3c] sm:$0xf]
      %v861 = vld [vmem:[#allocation2 + $0x40] sm:$0xf]
      %v862 = vld [vmem:[#allocation2 + $0x44] sm:$0x1]
      %v863 = vld [vmem:[#allocation2 + $0x48] sm:$0xf]
      %v864 = vld [vmem:[#allocation2 + $0x4c] sm:$0xf]
      %v865 = vld [vmem:[#allocation2 + $0x50] sm:$0x1]
      %v866 = vld [vmem:[#allocation2 + $0x54] sm:$0xf]
      %v867 = vld [vmem:[#allocation2 + $0x58] sm:$0xf]
      %v868 = vld [vmem:[#allocation2 + $0x5c] sm:$0x1]
      %vm869 = vsmask.f32 3328
      %vm870 = vsmask.f32 7440
      %vm871 = vmor %vm869, %vm870
      %v873 = vshrl.u32 %v845, 16
      %v875 = vrot.slane %v873, 4
      %v876 = vshll.u32 %v845, 16
      %v878 = vrot.slane %v876, 5
      %v879 = vor.u32 %v875, %v878
      %v880 = vrot.slane %v879, 4
      %v882 = vshll.u32 %v846, 16
      %v884 = vrot.slane %v882, 5
      %v885 = vsel %vm871, %v880, %v884
      %v886 = vshrl.u32 %v846, 16
      %v888 = vrot.slane %v886, 4
      %v889 = vor.u32 %v888, %v884
      %v890 = vrot.slane %v889, 4
      %v892 = vshll.u32 %v847, 16
      %v894 = vrot.slane %v892, 5
      %v895 = vsel %vm871, %v890, %v894
      %v897 = vshrl.u32 %v848, 16
      %v899 = vrot.slane %v897, 4
      %v900 = vshll.u32 %v848, 16
      %v902 = vrot.slane %v900, 5
      %v903 = vor.u32 %v899, %v902
      %v904 = vrot.slane %v903, 4
      %v906 = vshll.u32 %v849, 16
      %v908 = vrot.slane %v906, 5
      %v909 = vsel %vm871, %v904, %v908
      %v910 = vshrl.u32 %v849, 16
      %v912 = vrot.slane %v910, 4
      %v913 = vor.u32 %v912, %v908
      %v914 = vrot.slane %v913, 4
      %v916 = vshll.u32 %v850, 16
      %v918 = vrot.slane %v916, 5
      %v919 = vsel %vm871, %v914, %v918
      %v921 = vshrl.u32 %v851, 16
      %v923 = vrot.slane %v921, 4
      %v924 = vshll.u32 %v851, 16
      %v926 = vrot.slane %v924, 5
      %v927 = vor.u32 %v923, %v926
      %v928 = vrot.slane %v927, 4
      %v930 = vshll.u32 %v852, 16
      %v932 = vrot.slane %v930, 5
      %v933 = vsel %vm871, %v928, %v932
      %v934 = vshrl.u32 %v852, 16
      %v936 = vrot.slane %v934, 4
      %v937 = vor.u32 %v936, %v932
      %v938 = vrot.slane %v937, 4
      %v940 = vshll.u32 %v853, 16
      %v942 = vrot.slane %v940, 5
      %v943 = vsel %vm871, %v938, %v942
      %v945 = vshrl.u32 %v854, 16
      %v947 = vrot.slane %v945, 4
      %v948 = vshll.u32 %v854, 16
      %v950 = vrot.slane %v948, 5
      %v951 = vor.u32 %v947, %v950
      %v952 = vrot.slane %v951, 4
      %v954 = vshll.u32 %v855, 16
      %v956 = vrot.slane %v954, 5
      %v957 = vsel %vm871, %v952, %v956
      %v958 = vshrl.u32 %v855, 16
      %v960 = vrot.slane %v958, 4
      %v961 = vor.u32 %v960, %v956
      %v962 = vrot.slane %v961, 4
      %v964 = vshll.u32 %v856, 16
      %v966 = vrot.slane %v964, 5
      %v967 = vsel %vm871, %v962, %v966
      %v969 = vshrl.u32 %v857, 16
      %v971 = vrot.slane %v969, 4
      %v972 = vshll.u32 %v857, 16
      %v974 = vrot.slane %v972, 5
      %v975 = vor.u32 %v971, %v974
      %v976 = vrot.slane %v975, 4
      %v978 = vshll.u32 %v858, 16
      %v980 = vrot.slane %v978, 5
      %v981 = vsel %vm871, %v976, %v980
      %v982 = vshrl.u32 %v858, 16
      %v984 = vrot.slane %v982, 4
      %v985 = vor.u32 %v984, %v980
      %v986 = vrot.slane %v985, 4
      %v988 = vshll.u32 %v859, 16
      %v990 = vrot.slane %v988, 5
      %v991 = vsel %vm871, %v986, %v990
      %v993 = vshrl.u32 %v860, 16
      %v995 = vrot.slane %v993, 4
      %v996 = vshll.u32 %v860, 16
      %v998 = vrot.slane %v996, 5
      %v999 = vor.u32 %v995, %v998
      %v1000 = vrot.slane %v999, 4
      %v1002 = vshll.u32 %v861, 16
      %v1004 = vrot.slane %v1002, 5
      %v1005 = vsel %vm871, %v1000, %v1004
      %v1006 = vshrl.u32 %v861, 16
      %v1008 = vrot.slane %v1006, 4
      %v1009 = vor.u32 %v1008, %v1004
      %v1010 = vrot.slane %v1009, 4
      %v1012 = vshll.u32 %v862, 16
      %v1014 = vrot.slane %v1012, 5
      %v1015 = vsel %vm871, %v1010, %v1014
      %v1017 = vshrl.u32 %v863, 16
      %v1019 = vrot.slane %v1017, 4
      %v1020 = vshll.u32 %v863, 16
      %v1022 = vrot.slane %v1020, 5
      %v1023 = vor.u32 %v1019, %v1022
      %v1024 = vrot.slane %v1023, 4
      %v1026 = vshll.u32 %v864, 16
      %v1028 = vrot.slane %v1026, 5
      %v1029 = vsel %vm871, %v1024, %v1028
      %v1030 = vshrl.u32 %v864, 16
      %v1032 = vrot.slane %v1030, 4
      %v1033 = vor.u32 %v1032, %v1028
      %v1034 = vrot.slane %v1033, 4
      %v1036 = vshll.u32 %v865, 16
      %v1038 = vrot.slane %v1036, 5
      %v1039 = vsel %vm871, %v1034, %v1038
      %v1041 = vshrl.u32 %v866, 16
      %v1043 = vrot.slane %v1041, 4
      %v1044 = vshll.u32 %v866, 16
      %v1046 = vrot.slane %v1044, 5
      %v1047 = vor.u32 %v1043, %v1046
      %v1048 = vrot.slane %v1047, 4
      %v1050 = vshll.u32 %v867, 16
      %v1052 = vrot.slane %v1050, 5
      %v1053 = vsel %vm871, %v1048, %v1052
      %v1054 = vshrl.u32 %v867, 16
      %v1056 = vrot.slane %v1054, 4
      %v1057 = vor.u32 %v1056, %v1052
      %v1058 = vrot.slane %v1057, 4
      %v1060 = vshll.u32 %v868, 16
      %v1062 = vrot.slane %v1060, 5
      %v1063 = vsel %vm871, %v1058, %v1062
      %v1064 = vld [vmem:[#allocation3] sm:$0xff]
      %v1065 = vld [vmem:[#allocation3 + $0x8] sm:$0xff]
      %v1066 = vld [vmem:[#allocation3 + $0x10] sm:$0xff]
      %v1067 = vld [vmem:[#allocation3 + $0x18] sm:$0xff]
      %v1068 = vld [vmem:[#allocation3 + $0x20] sm:$0xff]
      %v1069 = vld [vmem:[#allocation3 + $0x28] sm:$0xff]
      %v1070 = vld [vmem:[#allocation3 + $0x30] sm:$0xff]
      %v1071 = vld [vmem:[#allocation3 + $0x38] sm:$0xff]
      %v1072 = vld [vmem:[#allocation3 + $0x40] sm:$0xff]
      %v1073 = vld [vmem:[#allocation3 + $0x48] sm:$0xff]
      %v1074 = vld [vmem:[#allocation3 + $0x50] sm:$0xff]
      %v1075 = vld [vmem:[#allocation3 + $0x58] sm:$0xff]
      %v1076 = vld [vmem:[#allocation3 + $0x60] sm:$0xff]
      %v1077 = vld [vmem:[#allocation3 + $0x68] sm:$0xff]
      %v1078 = vld [vmem:[#allocation3 + $0x70] sm:$0xff]
      %v1079 = vld [vmem:[#allocation3 + $0x78] sm:$0xff]
      %s1080 = scalar_lea.vmem %s1, 2
      %v1081 = vld [vmem:[%s1080] sm:$0x3]
      %v1082 = vunpack.c.l.b16 %v885
      %v1083 = vunpack.c.l.b16 %v895
      %v1084 = vunpack.c.l.b16 %v909
      %v1085 = vunpack.c.l.b16 %v919
      %v1086 = vunpack.c.l.b16 %v933
      %v1087 = vunpack.c.l.b16 %v943
      %v1088 = vunpack.c.l.b16 %v957
      %v1089 = vunpack.c.l.b16 %v967
      %v1090 = vunpack.c.l.b16 %v981
      %v1091 = vunpack.c.l.b16 %v991
      %v1092 = vunpack.c.l.b16 %v1005
      %v1093 = vunpack.c.l.b16 %v1015
      %v1094 = vunpack.c.l.b16 %v1029
      %v1095 = vunpack.c.l.b16 %v1039
      %v1096 = vunpack.c.l.b16 %v1053
      %v1097 = vunpack.c.l.b16 %v1063
      %v1098 = vpack.c.b16 %v1083, %v1082
      %v1099 = vpack.c.b16 %v1085, %v1084
      %v1100 = vpack.c.b16 %v1087, %v1086
      %v1101 = vpack.c.b16 %v1089, %v1088
      %v1102 = vpack.c.b16 %v1091, %v1090
      %v1103 = vpack.c.b16 %v1093, %v1092
      %v1104 = vpack.c.b16 %v1095, %v1094
      %v1105 = vpack.c.b16 %v1097, %v1096
      %v1107 = vsel %vm684, %v1098, 0
      %v1110 = vsel %vm684, %v1099, 0
      %v1113 = vsel %vm684, %v1100, 0
      %v1116 = vsel %vm684, %v1101, 0
      %v1119 = vsel %vm684, %v1102, 0
      %v1122 = vsel %vm684, %v1103, 0
      %v1125 = vsel %vm684, %v1104, 0
      %v1128 = vsel %vm684, %v1105, 0
      %v1131 = vand.u32 %v1081, %v712
      %1133 = vmatprep.subr.bf16.mxu0 0
      %1134 = vmatpush1.bf16.msra.mxu0 %v1131
      %1135 = vmatprep.subr.bf16.mxu0 0
      %1136 = vmatpush1.bf16.msra.mxu0 0
      %1137 = vmatprep.subr.bf16.mxu0 0
      %1138 = vmatpush1.bf16.msra.mxu0 0
      %1139 = vmatprep.subr.bf16.mxu0 0
      %1140 = vmatpush1.bf16.msra.mxu0 0
      %1141 = vmatprep.subr.bf16.mxu0 0
      %1142 = vmatpush1.bf16.msra.mxu0 0
      %1143 = vmatprep.subr.bf16.mxu0 0
      %1144 = vmatpush1.bf16.msra.mxu0 0
      %1145 = vmatprep.subr.bf16.mxu0 0
      %1146 = vmatpush1.bf16.msra.mxu0 0
      %1147 = vmatprep.subr.bf16.mxu0 0
      %1148 = vmatpush1.bf16.msra.mxu0 0
      %1149 = vmatprep.subr.bf16.mxu0 0
      %1150 = vmatpush1.bf16.msra.mxu0 0
      %1151 = vmatprep.subr.bf16.mxu0 0
      %1152 = vmatpush1.bf16.msra.mxu0 0
      %1153 = vmatprep.subr.bf16.mxu0 0
      %1154 = vmatpush1.bf16.msra.mxu0 0
      %1155 = vmatprep.subr.bf16.mxu0 0
      %1156 = vmatpush1.bf16.msra.mxu0 0
      %1157 = vmatprep.subr.bf16.mxu0 0
      %1158 = vmatpush1.bf16.msra.mxu0 0
      %1159 = vmatprep.subr.bf16.mxu0 0
      %1160 = vmatpush1.bf16.msra.mxu0 0
      %1161 = vmatprep.subr.bf16.mxu0 0
      %1162 = vmatpush1.bf16.msra.mxu0 0
      %1163 = vmatprep.subr.bf16.mxu0 0
      %1164 = vmatpush1.bf16.msra.mxu0 0
      %1165 = vmatprep.mubr.bf16.mxu0 0
      %1166 = vmatmul.mubr.bf16.gmra.mrb[0].mxu0 %v1107
      %v1167 = vpop.f32.mrb[0].mxu0
      %v1168 = vadd.f32 0.0, %v1167
      %v1169 = vpop.f32.mrb[0].mxu0
      %v1170 = vpop.f32.mrb[0].mxu0
      %v1171 = vadd.f32 0.0, %v1170
      %v1172 = vpop.f32.mrb[0].mxu0
      %1173 = vmatprep.mubr.bf16.mxu0 0
      %1174 = vmatmul.mubr.bf16.gmra.mrb[0].mxu0 %v1110
      %v1175 = vpop.f32.mrb[0].mxu0
      %v1176 = vadd.f32 0.0, %v1175
      %v1177 = vpop.f32.mrb[0].mxu0
      %v1178 = vpop.f32.mrb[0].mxu0
      %v1179 = vadd.f32 0.0, %v1178
      %v1180 = vpop.f32.mrb[0].mxu0
      %1181 = vmatprep.mubr.bf16.mxu0 0
      %1182 = vmatmul.mubr.bf16.gmra.mrb[0].mxu0 %v1113
      %v1183 = vpop.f32.mrb[0].mxu0
      %v1184 = vadd.f32 0.0, %v1183
      %v1185 = vpop.f32.mrb[0].mxu0
      %v1186 = vpop.f32.mrb[0].mxu0
      %v1187 = vadd.f32 0.0, %v1186
      %v1188 = vpop.f32.mrb[0].mxu0
      %1189 = vmatprep.mubr.bf16.mxu0 0
      %1190 = vmatmul.mubr.bf16.gmra.mrb[0].mxu0 %v1116
      %v1191 = vpop.f32.mrb[0].mxu0
      %v1192 = vadd.f32 0.0, %v1191
      %v1193 = vpop.f32.mrb[0].mxu0
      %v1194 = vpop.f32.mrb[0].mxu0
      %v1195 = vadd.f32 0.0, %v1194
      %v1196 = vpop.f32.mrb[0].mxu0
      %1197 = vmatprep.mubr.bf16.mxu0 0
      %1198 = vmatmul.mubr.bf16.gmra.mrb[0].mxu0 %v1119
      %v1199 = vpop.f32.mrb[0].mxu0
      %v1200 = vadd.f32 0.0, %v1199
      %v1201 = vpop.f32.mrb[0].mxu0
      %v1202 = vpop.f32.mrb[0].mxu0
      %v1203 = vadd.f32 0.0, %v1202
      %v1204 = vpop.f32.mrb[0].mxu0
      %1205 = vmatprep.mubr.bf16.mxu0 0
      %1206 = vmatmul.mubr.bf16.gmra.mrb[0].mxu0 %v1122
      %v1207 = vpop.f32.mrb[0].mxu0
      %v1208 = vadd.f32 0.0, %v1207
      %v1209 = vpop.f32.mrb[0].mxu0
      %v1210 = vpop.f32.mrb[0].mxu0
      %v1211 = vadd.f32 0.0, %v1210
      %v1212 = vpop.f32.mrb[0].mxu0
      %1213 = vmatprep.mubr.bf16.mxu0 0
      %1214 = vmatmul.mubr.bf16.gmra.mrb[0].mxu0 %v1125
      %v1215 = vpop.f32.mrb[0].mxu0
      %v1216 = vadd.f32 0.0, %v1215
      %v1217 = vpop.f32.mrb[0].mxu0
      %v1218 = vpop.f32.mrb[0].mxu0
      %v1219 = vadd.f32 0.0, %v1218
      %v1220 = vpop.f32.mrb[0].mxu0
      %1221 = vmatprep.mubr.bf16.mxu0 0
      %1222 = vmatmul.mubr.bf16.gmra.mrb[0].mxu0 %v1128
      %v1223 = vpop.f32.mrb[0].mxu0
      %v1224 = vadd.f32 0.0, %v1223
      %v1225 = vpop.f32.mrb[0].mxu0
      %v1226 = vpop.f32.mrb[0].mxu0
      %v1227 = vadd.f32 0.0, %v1226
      %v1228 = vpop.f32.mrb[0].mxu0
      %1229 = vdwg.mxu0
      %v1230 = vadd.f32 %v1064, %v1168
      %v1231 = vadd.f32 %v1065, %v1171
      %v1232 = vadd.f32 %v1066, %v1176
      %v1233 = vadd.f32 %v1067, %v1179
      %v1234 = vadd.f32 %v1068, %v1184
      %v1235 = vadd.f32 %v1069, %v1187
      %v1236 = vadd.f32 %v1070, %v1192
      %v1237 = vadd.f32 %v1071, %v1195
      %v1238 = vadd.f32 %v1072, %v1200
      %v1239 = vadd.f32 %v1073, %v1203
      %v1240 = vadd.f32 %v1074, %v1208
      %v1241 = vadd.f32 %v1075, %v1211
      %v1242 = vadd.f32 %v1076, %v1216
      %v1243 = vadd.f32 %v1077, %v1219
      %v1244 = vadd.f32 %v1078, %v1224
      %v1245 = vadd.f32 %v1079, %v1227
      %1246 = vst.msk [vmem:[#allocation3] sm:$0xff] %vm594, %v1230
      %1247 = vst.msk [vmem:[#allocation3 + $0x8] sm:$0xff] %vm594, %v1231
      %1248 = vst.msk [vmem:[#allocation3 + $0x10] sm:$0xff] %vm594, %v1232
      %1249 = vst.msk [vmem:[#allocation3 + $0x18] sm:$0xff] %vm594, %v1233
      %1250 = vst.msk [vmem:[#allocation3 + $0x20] sm:$0xff] %vm594, %v1234
      %1251 = vst.msk [vmem:[#allocation3 + $0x28] sm:$0xff] %vm594, %v1235
      %1252 = vst.msk [vmem:[#allocation3 + $0x30] sm:$0xff] %vm594, %v1236
      %1253 = vst.msk [vmem:[#allocation3 + $0x38] sm:$0xff] %vm594, %v1237
      %1254 = vst.msk [vmem:[#allocation3 + $0x40] sm:$0xff] %vm594, %v1238
      %1255 = vst.msk [vmem:[#allocation3 + $0x48] sm:$0xff] %vm594, %v1239
      %1256 = vst.msk [vmem:[#allocation3 + $0x50] sm:$0xff] %vm594, %v1240
      %1257 = vst.msk [vmem:[#allocation3 + $0x58] sm:$0xff] %vm594, %v1241
      %1258 = vst.msk [vmem:[#allocation3 + $0x60] sm:$0xff] %vm594, %v1242
      %1259 = vst.msk [vmem:[#allocation3 + $0x68] sm:$0xff] %vm594, %v1243
      %1260 = vst.msk [vmem:[#allocation3 + $0x70] sm:$0xff] %vm594, %v1244
      %1261 = vst.msk [vmem:[#allocation3 + $0x78] sm:$0xff] %vm594, %v1245
      %v1262 = vld [vmem:[#allocation2] sm:$0xe]
      %v1263 = vld [vmem:[#allocation2 + $0x4] sm:$0xf]
      %v1264 = vld [vmem:[#allocation2 + $0x8] sm:$0x1]
      %v1265 = vld [vmem:[#allocation2 + $0xc] sm:$0xe]
      %v1266 = vld [vmem:[#allocation2 + $0x10] sm:$0xf]
      %v1267 = vld [vmem:[#allocation2 + $0x14] sm:$0x1]
      %v1268 = vld [vmem:[#allocation2 + $0x18] sm:$0xe]
      %v1269 = vld [vmem:[#allocation2 + $0x1c] sm:$0xf]
      %v1270 = vld [vmem:[#allocation2 + $0x20] sm:$0x1]
      %v1271 = vld [vmem:[#allocation2 + $0x24] sm:$0xe]
      %v1272 = vld [vmem:[#allocation2 + $0x28] sm:$0xf]
      %v1273 = vld [vmem:[#allocation2 + $0x2c] sm:$0x1]
      %v1274 = vld [vmem:[#allocation2 + $0x30] sm:$0xe]
      %v1275 = vld [vmem:[#allocation2 + $0x34] sm:$0xf]
      %v1276 = vld [vmem:[#allocation2 + $0x38] sm:$0x1]
      %v1277 = vld [vmem:[#allocation2 + $0x3c] sm:$0xe]
      %v1278 = vld [vmem:[#allocation2 + $0x40] sm:$0xf]
      %v1279 = vld [vmem:[#allocation2 + $0x44] sm:$0x1]
      %v1280 = vld [vmem:[#allocation2 + $0x48] sm:$0xe]
      %v1281 = vld [vmem:[#allocation2 + $0x4c] sm:$0xf]
      %v1282 = vld [vmem:[#allocation2 + $0x50] sm:$0x1]
      %v1283 = vld [vmem:[#allocation2 + $0x54] sm:$0xe]
      %v1284 = vld [vmem:[#allocation2 + $0x58] sm:$0xf]
      %v1285 = vld [vmem:[#allocation2 + $0x5c] sm:$0x1]
      %vm1310 = vcmask 1042432
      %vm1311 = vcmask 1046532
      %vm1312 = vmor %vm1310, %vm1311
      %v1313 = vrot.slane %v1262, 5
      %v1314 = vrot.slane %v1313, 4
      %v1315 = vrot.slane %v1263, 5
      %v1316 = vsel %vm1312, %v1314, %v1315
      %v1317 = vrot.slane %v1315, 4
      %v1318 = vrot.slane %v1264, 5
      %v1319 = vsel %vm1312, %v1317, %v1318
      %v1320 = vrot.slane %v1265, 5
      %v1321 = vrot.slane %v1320, 4
      %v1322 = vrot.slane %v1266, 5
      %v1323 = vsel %vm1312, %v1321, %v1322
      %v1324 = vrot.slane %v1322, 4
      %v1325 = vrot.slane %v1267, 5
      %v1326 = vsel %vm1312, %v1324, %v1325
      %v1327 = vrot.slane %v1268, 5
      %v1328 = vrot.slane %v1327, 4
      %v1329 = vrot.slane %v1269, 5
      %v1330 = vsel %vm1312, %v1328, %v1329
      %v1331 = vrot.slane %v1329, 4
      %v1332 = vrot.slane %v1270, 5
      %v1333 = vsel %vm1312, %v1331, %v1332
      %v1334 = vrot.slane %v1271, 5
      %v1335 = vrot.slane %v1334, 4
      %v1336 = vrot.slane %v1272, 5
      %v1337 = vsel %vm1312, %v1335, %v1336
      %v1338 = vrot.slane %v1336, 4
      %v1339 = vrot.slane %v1273, 5
      %v1340 = vsel %vm1312, %v1338, %v1339
      %v1341 = vrot.slane %v1274, 5
      %v1342 = vrot.slane %v1341, 4
      %v1343 = vrot.slane %v1275, 5
      %v1344 = vsel %vm1312, %v1342, %v1343
      %v1345 = vrot.slane %v1343, 4
      %v1346 = vrot.slane %v1276, 5
      %v1347 = vsel %vm1312, %v1345, %v1346
      %v1348 = vrot.slane %v1277, 5
      %v1349 = vrot.slane %v1348, 4
      %v1350 = vrot.slane %v1278, 5
      %v1351 = vsel %vm1312, %v1349, %v1350
      %v1352 = vrot.slane %v1350, 4
      %v1353 = vrot.slane %v1279, 5
      %v1354 = vsel %vm1312, %v1352, %v1353
      %v1355 = vrot.slane %v1280, 5
      %v1356 = vrot.slane %v1355, 4
      %v1357 = vrot.slane %v1281, 5
      %v1358 = vsel %vm1312, %v1356, %v1357
      %v1359 = vrot.slane %v1357, 4
      %v1360 = vrot.slane %v1282, 5
      %v1361 = vsel %vm1312, %v1359, %v1360
      %v1362 = vrot.slane %v1283, 5
      %v1363 = vrot.slane %v1362, 4
      %v1364 = vrot.slane %v1284, 5
      %v1365 = vsel %vm1312, %v1363, %v1364
      %v1366 = vrot.slane %v1364, 4
      %v1367 = vrot.slane %v1285, 5
      %v1368 = vsel %vm1312, %v1366, %v1367
      %v1369 = vld [vmem:[#allocation3] sm:$0xff]
      %v1370 = vld [vmem:[#allocation3 + $0x8] sm:$0xff]
      %v1371 = vld [vmem:[#allocation3 + $0x10] sm:$0xff]
      %v1372 = vld [vmem:[#allocation3 + $0x18] sm:$0xff]
      %v1373 = vld [vmem:[#allocation3 + $0x20] sm:$0xff]
      %v1374 = vld [vmem:[#allocation3 + $0x28] sm:$0xff]
      %v1375 = vld [vmem:[#allocation3 + $0x30] sm:$0xff]
      %v1376 = vld [vmem:[#allocation3 + $0x38] sm:$0xff]
      %v1377 = vld [vmem:[#allocation3 + $0x40] sm:$0xff]
      %v1378 = vld [vmem:[#allocation3 + $0x48] sm:$0xff]
      %v1379 = vld [vmem:[#allocation3 + $0x50] sm:$0xff]
      %v1380 = vld [vmem:[#allocation3 + $0x58] sm:$0xff]
      %v1381 = vld [vmem:[#allocation3 + $0x60] sm:$0xff]
      %v1382 = vld [vmem:[#allocation3 + $0x68] sm:$0xff]
      %v1383 = vld [vmem:[#allocation3 + $0x70] sm:$0xff]
      %v1384 = vld [vmem:[#allocation3 + $0x78] sm:$0xff]
      %s1385 = scalar_lea.vmem %s1, 4
      %v1386 = vld [vmem:[%s1385] sm:$0x3]
      %v1387 = vunpack.c.l.b16 %v1316
      %v1388 = vunpack.c.l.b16 %v1319
      %v1389 = vunpack.c.l.b16 %v1323
      %v1390 = vunpack.c.l.b16 %v1326
      %v1391 = vunpack.c.l.b16 %v1330
      %v1392 = vunpack.c.l.b16 %v1333
      %v1393 = vunpack.c.l.b16 %v1337
      %v1394 = vunpack.c.l.b16 %v1340
      %v1395 = vunpack.c.l.b16 %v1344
      %v1396 = vunpack.c.l.b16 %v1347
      %v1397 = vunpack.c.l.b16 %v1351
      %v1398 = vunpack.c.l.b16 %v1354
      %v1399 = vunpack.c.l.b16 %v1358
      %v1400 = vunpack.c.l.b16 %v1361
      %v1401 = vunpack.c.l.b16 %v1365
      %v1402 = vunpack.c.l.b16 %v1368
      %v1403 = vpack.c.b16 %v1388, %v1387
      %v1404 = vpack.c.b16 %v1390, %v1389
      %v1405 = vpack.c.b16 %v1392, %v1391
      %v1406 = vpack.c.b16 %v1394, %v1393
      %v1407 = vpack.c.b16 %v1396, %v1395
      %v1408 = vpack.c.b16 %v1398, %v1397
      %v1409 = vpack.c.b16 %v1400, %v1399
      %v1410 = vpack.c.b16 %v1402, %v1401
      %v1412 = vsel %vm684, %v1403, 0
      %v1415 = vsel %vm684, %v1404, 0
      %v1418 = vsel %vm684, %v1405, 0
      %v1421 = vsel %vm684, %v1406, 0
      %v1424 = vsel %vm684, %v1407, 0
      %v1427 = vsel %vm684, %v1408, 0
      %v1430 = vsel %vm684, %v1409, 0
      %v1433 = vsel %vm684, %v1410, 0
      %v1436 = vand.u32 %v1386, %v712
      %1438 = vmatprep.subr.bf16.mxu0 0
      %1439 = vmatpush1.bf16.msra.mxu0 %v1436
      %1440 = vmatprep.subr.bf16.mxu0 0
      %1441 = vmatpush1.bf16.msra.mxu0 0
      %1442 = vmatprep.subr.bf16.mxu0 0
      %1443 = vmatpush1.bf16.msra.mxu0 0
      %1444 = vmatprep.subr.bf16.mxu0 0
      %1445 = vmatpush1.bf16.msra.mxu0 0
      %1446 = vmatprep.subr.bf16.mxu0 0
      %1447 = vmatpush1.bf16.msra.mxu0 0
      %1448 = vmatprep.subr.bf16.mxu0 0
      %1449 = vmatpush1.bf16.msra.mxu0 0
      %1450 = vmatprep.subr.bf16.mxu0 0
      %1451 = vmatpush1.bf16.msra.mxu0 0
      %1452 = vmatprep.subr.bf16.mxu0 0
      %1453 = vmatpush1.bf16.msra.mxu0 0
      %1454 = vmatprep.subr.bf16.mxu0 0
      %1455 = vmatpush1.bf16.msra.mxu0 0
      %1456 = vmatprep.subr.bf16.mxu0 0
      %1457 = vmatpush1.bf16.msra.mxu0 0
      %1458 = vmatprep.subr.bf16.mxu0 0
      %1459 = vmatpush1.bf16.msra.mxu0 0
      %1460 = vmatprep.subr.bf16.mxu0 0
      %1461 = vmatpush1.bf16.msra.mxu0 0
      %1462 = vmatprep.subr.bf16.mxu0 0
      %1463 = vmatpush1.bf16.msra.mxu0 0
      %1464 = vmatprep.subr.bf16.mxu0 0
      %1465 = vmatpush1.bf16.msra.mxu0 0
      %1466 = vmatprep.subr.bf16.mxu0 0
      %1467 = vmatpush1.bf16.msra.mxu0 0
      %1468 = vmatprep.subr.bf16.mxu0 0
      %1469 = vmatpush1.bf16.msra.mxu0 0
      %1470 = vmatprep.mubr.bf16.mxu0 0
      %1471 = vmatmul.mubr.bf16.gmra.mrb[0].mxu0 %v1412
      %v1472 = vpop.f32.mrb[0].mxu0
      %v1473 = vadd.f32 0.0, %v1472
      %v1474 = vpop.f32.mrb[0].mxu0
      %v1475 = vpop.f32.mrb[0].mxu0
      %v1476 = vadd.f32 0.0, %v1475
      %v1477 = vpop.f32.mrb[0].mxu0
      %1478 = vmatprep.mubr.bf16.mxu0 0
      %1479 = vmatmul.mubr.bf16.gmra.mrb[0].mxu0 %v1415
      %v1480 = vpop.f32.mrb[0].mxu0
      %v1481 = vadd.f32 0.0, %v1480
      %v1482 = vpop.f32.mrb[0].mxu0
      %v1483 = vpop.f32.mrb[0].mxu0
      %v1484 = vadd.f32 0.0, %v1483
      %v1485 = vpop.f32.mrb[0].mxu0
      %1486 = vmatprep.mubr.bf16.mxu0 0
      %1487 = vmatmul.mubr.bf16.gmra.mrb[0].mxu0 %v1418
      %v1488 = vpop.f32.mrb[0].mxu0
      %v1489 = vadd.f32 0.0, %v1488
      %v1490 = vpop.f32.mrb[0].mxu0
      %v1491 = vpop.f32.mrb[0].mxu0
      %v1492 = vadd.f32 0.0, %v1491
      %v1493 = vpop.f32.mrb[0].mxu0
      %1494 = vmatprep.mubr.bf16.mxu0 0
      %1495 = vmatmul.mubr.bf16.gmra.mrb[0].mxu0 %v1421
      %v1496 = vpop.f32.mrb[0].mxu0
      %v1497 = vadd.f32 0.0, %v1496
      %v1498 = vpop.f32.mrb[0].mxu0
      %v1499 = vpop.f32.mrb[0].mxu0
      %v1500 = vadd.f32 0.0, %v1499
      %v1501 = vpop.f32.mrb[0].mxu0
      %1502 = vmatprep.mubr.bf16.mxu0 0
      %1503 = vmatmul.mubr.bf16.gmra.mrb[0].mxu0 %v1424
      %v1504 = vpop.f32.mrb[0].mxu0
      %v1505 = vadd.f32 0.0, %v1504
      %v1506 = vpop.f32.mrb[0].mxu0
      %v1507 = vpop.f32.mrb[0].mxu0
      %v1508 = vadd.f32 0.0, %v1507
      %v1509 = vpop.f32.mrb[0].mxu0
      %1510 = vmatprep.mubr.bf16.mxu0 0
      %1511 = vmatmul.mubr.bf16.gmra.mrb[0].mxu0 %v1427
      %v1512 = vpop.f32.mrb[0].mxu0
      %v1513 = vadd.f32 0.0, %v1512
      %v1514 = vpop.f32.mrb[0].mxu0
      %v1515 = vpop.f32.mrb[0].mxu0
      %v1516 = vadd.f32 0.0, %v1515
      %v1517 = vpop.f32.mrb[0].mxu0
      %1518 = vmatprep.mubr.bf16.mxu0 0
      %1519 = vmatmul.mubr.bf16.gmra.mrb[0].mxu0 %v1430
      %v1520 = vpop.f32.mrb[0].mxu0
      %v1521 = vadd.f32 0.0, %v1520
      %v1522 = vpop.f32.mrb[0].mxu0
      %v1523 = vpop.f32.mrb[0].mxu0
      %v1524 = vadd.f32 0.0, %v1523
      %v1525 = vpop.f32.mrb[0].mxu0
      %1526 = vmatprep.mubr.bf16.mxu0 0
      %1527 = vmatmul.mubr.bf16.gmra.mrb[0].mxu0 %v1433
      %v1528 = vpop.f32.mrb[0].mxu0
      %v1529 = vadd.f32 0.0, %v1528
      %v1530 = vpop.f32.mrb[0].mxu0
      %v1531 = vpop.f32.mrb[0].mxu0
      %v1532 = vadd.f32 0.0, %v1531
      %v1533 = vpop.f32.mrb[0].mxu0
      %1534 = vdwg.mxu0
      %v1535 = vadd.f32 %v1369, %v1473
      %v1536 = vadd.f32 %v1370, %v1476
      %v1537 = vadd.f32 %v1371, %v1481
      %v1538 = vadd.f32 %v1372, %v1484
      %v1539 = vadd.f32 %v1373, %v1489
      %v1540 = vadd.f32 %v1374, %v1492
      %v1541 = vadd.f32 %v1375, %v1497
      %v1542 = vadd.f32 %v1376, %v1500
      %v1543 = vadd.f32 %v1377, %v1505
      %v1544 = vadd.f32 %v1378, %v1508
      %v1545 = vadd.f32 %v1379, %v1513
      %v1546 = vadd.f32 %v1380, %v1516
      %v1547 = vadd.f32 %v1381, %v1521
      %v1548 = vadd.f32 %v1382, %v1524
      %v1549 = vadd.f32 %v1383, %v1529
      %v1550 = vadd.f32 %v1384, %v1532
      %1551 = vst.msk [vmem:[#allocation3] sm:$0xff] %vm594, %v1535
      %1552 = vst.msk [vmem:[#allocation3 + $0x8] sm:$0xff] %vm594, %v1536
      %1553 = vst.msk [vmem:[#allocation3 + $0x10] sm:$0xff] %vm594, %v1537
      %1554 = vst.msk [vmem:[#allocation3 + $0x18] sm:$0xff] %vm594, %v1538
      %1555 = vst.msk [vmem:[#allocation3 + $0x20] sm:$0xff] %vm594, %v1539
      %1556 = vst.msk [vmem:[#allocation3 + $0x28] sm:$0xff] %vm594, %v1540
      %1557 = vst.msk [vmem:[#allocation3 + $0x30] sm:$0xff] %vm594, %v1541
      %1558 = vst.msk [vmem:[#allocation3 + $0x38] sm:$0xff] %vm594, %v1542
      %1559 = vst.msk [vmem:[#allocation3 + $0x40] sm:$0xff] %vm594, %v1543
      %1560 = vst.msk [vmem:[#allocation3 + $0x48] sm:$0xff] %vm594, %v1544
      %1561 = vst.msk [vmem:[#allocation3 + $0x50] sm:$0xff] %vm594, %v1545
      %1562 = vst.msk [vmem:[#allocation3 + $0x58] sm:$0xff] %vm594, %v1546
      %1563 = vst.msk [vmem:[#allocation3 + $0x60] sm:$0xff] %vm594, %v1547
      %1564 = vst.msk [vmem:[#allocation3 + $0x68] sm:$0xff] %vm594, %v1548
      %1565 = vst.msk [vmem:[#allocation3 + $0x70] sm:$0xff] %vm594, %v1549
      %1566 = vst.msk [vmem:[#allocation3 + $0x78] sm:$0xff] %vm594, %v1550
      %v1567 = vld [vmem:[%s444] sm:$0xf]
      %v1568 = vld [vmem:[%s444 + $0x4] sm:$0xf]
      %v1569 = vld [vmem:[%s444 + $0xc] sm:$0xf]
      %v1570 = vld [vmem:[%s444 + $0x10] sm:$0xf]
      %v1571 = vld [vmem:[%s444 + $0x18] sm:$0xf]
      %v1572 = vld [vmem:[%s444 + $0x1c] sm:$0xf]
      %v1573 = vld [vmem:[%s444 + $0x24] sm:$0xf]
      %v1574 = vld [vmem:[%s444 + $0x28] sm:$0xf]
      %v1575 = vld [vmem:[%s444 + $0x30] sm:$0xf]
      %v1576 = vld [vmem:[%s444 + $0x34] sm:$0xf]
      %v1577 = vld [vmem:[%s444 + $0x3c] sm:$0xf]
      %v1578 = vld [vmem:[%s444 + $0x40] sm:$0xf]
      %v1579 = vld [vmem:[%s444 + $0x48] sm:$0xf]
      %v1580 = vld [vmem:[%s444 + $0x4c] sm:$0xf]
      %v1581 = vld [vmem:[%s444 + $0x54] sm:$0xf]
      %v1582 = vld [vmem:[%s444 + $0x58] sm:$0xf]
      %v1583 = vld [vmem:[#allocation3] sm:$0xff]
      %v1584 = vld [vmem:[#allocation3 + $0x8] sm:$0xff]
      %v1585 = vld [vmem:[#allocation3 + $0x10] sm:$0xff]
      %v1586 = vld [vmem:[#allocation3 + $0x18] sm:$0xff]
      %v1587 = vld [vmem:[#allocation3 + $0x20] sm:$0xff]
      %v1588 = vld [vmem:[#allocation3 + $0x28] sm:$0xff]
      %v1589 = vld [vmem:[#allocation3 + $0x30] sm:$0xff]
      %v1590 = vld [vmem:[#allocation3 + $0x38] sm:$0xff]
      %v1591 = vld [vmem:[#allocation3 + $0x40] sm:$0xff]
      %v1592 = vld [vmem:[#allocation3 + $0x48] sm:$0xff]
      %v1593 = vld [vmem:[#allocation3 + $0x50] sm:$0xff]
      %v1594 = vld [vmem:[#allocation3 + $0x58] sm:$0xff]
      %v1595 = vld [vmem:[#allocation3 + $0x60] sm:$0xff]
      %v1596 = vld [vmem:[#allocation3 + $0x68] sm:$0xff]
      %v1597 = vld [vmem:[#allocation3 + $0x70] sm:$0xff]
      %v1598 = vld [vmem:[#allocation3 + $0x78] sm:$0xff]
      %s1599 = scalar_lea.vmem %s1, 6
      %v1600 = vld [vmem:[%s1599] sm:$0x3]
      %v1617 = vunpack.c.l.b16 %v1567
      %v1618 = vunpack.c.l.b16 %v1568
      %v1619 = vunpack.c.l.b16 %v1569
      %v1620 = vunpack.c.l.b16 %v1570
      %v1621 = vunpack.c.l.b16 %v1571
      %v1622 = vunpack.c.l.b16 %v1572
      %v1623 = vunpack.c.l.b16 %v1573
      %v1624 = vunpack.c.l.b16 %v1574
      %v1625 = vunpack.c.l.b16 %v1575
      %v1626 = vunpack.c.l.b16 %v1576
      %v1627 = vunpack.c.l.b16 %v1577
      %v1628 = vunpack.c.l.b16 %v1578
      %v1629 = vunpack.c.l.b16 %v1579
      %v1630 = vunpack.c.l.b16 %v1580
      %v1631 = vunpack.c.l.b16 %v1581
      %v1632 = vunpack.c.l.b16 %v1582
      %v1633 = vpack.c.b16 %v1618, %v1617
      %v1634 = vpack.c.b16 %v1620, %v1619
      %v1635 = vpack.c.b16 %v1622, %v1621
      %v1636 = vpack.c.b16 %v1624, %v1623
      %v1637 = vpack.c.b16 %v1626, %v1625
      %v1638 = vpack.c.b16 %v1628, %v1627
      %v1639 = vpack.c.b16 %v1630, %v1629
      %v1640 = vpack.c.b16 %v1632, %v1631
      %v1642 = vsel %vm684, %v1633, 0
      %v1645 = vsel %vm684, %v1634, 0
      %v1648 = vsel %vm684, %v1635, 0
      %v1651 = vsel %vm684, %v1636, 0
      %v1654 = vsel %vm684, %v1637, 0
      %v1657 = vsel %vm684, %v1638, 0
      %v1660 = vsel %vm684, %v1639, 0
      %v1663 = vsel %vm684, %v1640, 0
      %v1666 = vand.u32 %v1600, %v712
      %1668 = vmatprep.subr.bf16.mxu0 0
      %1669 = vmatpush1.bf16.msra.mxu0 %v1666
      %1670 = vmatprep.subr.bf16.mxu0 0
      %1671 = vmatpush1.bf16.msra.mxu0 0
      %1672 = vmatprep.subr.bf16.mxu0 0
      %1673 = vmatpush1.bf16.msra.mxu0 0
      %1674 = vmatprep.subr.bf16.mxu0 0
      %1675 = vmatpush1.bf16.msra.mxu0 0
      %1676 = vmatprep.subr.bf16.mxu0 0
      %1677 = vmatpush1.bf16.msra.mxu0 0
      %1678 = vmatprep.subr.bf16.mxu0 0
      %1679 = vmatpush1.bf16.msra.mxu0 0
      %1680 = vmatprep.subr.bf16.mxu0 0
      %1681 = vmatpush1.bf16.msra.mxu0 0
      %1682 = vmatprep.subr.bf16.mxu0 0
      %1683 = vmatpush1.bf16.msra.mxu0 0
      %1684 = vmatprep.subr.bf16.mxu0 0
      %1685 = vmatpush1.bf16.msra.mxu0 0
      %1686 = vmatprep.subr.bf16.mxu0 0
      %1687 = vmatpush1.bf16.msra.mxu0 0
      %1688 = vmatprep.subr.bf16.mxu0 0
      %1689 = vmatpush1.bf16.msra.mxu0 0
      %1690 = vmatprep.subr.bf16.mxu0 0
      %1691 = vmatpush1.bf16.msra.mxu0 0
      %1692 = vmatprep.subr.bf16.mxu0 0
      %1693 = vmatpush1.bf16.msra.mxu0 0
      %1694 = vmatprep.subr.bf16.mxu0 0
      %1695 = vmatpush1.bf16.msra.mxu0 0
      %1696 = vmatprep.subr.bf16.mxu0 0
      %1697 = vmatpush1.bf16.msra.mxu0 0
      %1698 = vmatprep.subr.bf16.mxu0 0
      %1699 = vmatpush1.bf16.msra.mxu0 0
      %1700 = vmatprep.mubr.bf16.mxu0 0
      %1701 = vmatmul.mubr.bf16.gmra.mrb[0].mxu0 %v1642
      %v1702 = vpop.f32.mrb[0].mxu0
      %v1703 = vadd.f32 0.0, %v1702
      %v1704 = vpop.f32.mrb[0].mxu0
      %v1705 = vpop.f32.mrb[0].mxu0
      %v1706 = vadd.f32 0.0, %v1705
      %v1707 = vpop.f32.mrb[0].mxu0
      %1708 = vmatprep.mubr.bf16.mxu0 0
      %1709 = vmatmul.mubr.bf16.gmra.mrb[0].mxu0 %v1645
      %v1710 = vpop.f32.mrb[0].mxu0
      %v1711 = vadd.f32 0.0, %v1710
      %v1712 = vpop.f32.mrb[0].mxu0
      %v1713 = vpop.f32.mrb[0].mxu0
      %v1714 = vadd.f32 0.0, %v1713
      %v1715 = vpop.f32.mrb[0].mxu0
      %1716 = vmatprep.mubr.bf16.mxu0 0
      %1717 = vmatmul.mubr.bf16.gmra.mrb[0].mxu0 %v1648
      %v1718 = vpop.f32.mrb[0].mxu0
      %v1719 = vadd.f32 0.0, %v1718
      %v1720 = vpop.f32.mrb[0].mxu0
      %v1721 = vpop.f32.mrb[0].mxu0
      %v1722 = vadd.f32 0.0, %v1721
      %v1723 = vpop.f32.mrb[0].mxu0
      %1724 = vmatprep.mubr.bf16.mxu0 0
      %1725 = vmatmul.mubr.bf16.gmra.mrb[0].mxu0 %v1651
      %v1726 = vpop.f32.mrb[0].mxu0
      %v1727 = vadd.f32 0.0, %v1726
      %v1728 = vpop.f32.mrb[0].mxu0
      %v1729 = vpop.f32.mrb[0].mxu0
      %v1730 = vadd.f32 0.0, %v1729
      %v1731 = vpop.f32.mrb[0].mxu0
      %1732 = vmatprep.mubr.bf16.mxu0 0
      %1733 = vmatmul.mubr.bf16.gmra.mrb[0].mxu0 %v1654
      %v1734 = vpop.f32.mrb[0].mxu0
      %v1735 = vadd.f32 0.0, %v1734
      %v1736 = vpop.f32.mrb[0].mxu0
      %v1737 = vpop.f32.mrb[0].mxu0
      %v1738 = vadd.f32 0.0, %v1737
      %v1739 = vpop.f32.mrb[0].mxu0
      %1740 = vmatprep.mubr.bf16.mxu0 0
      %1741 = vmatmul.mubr.bf16.gmra.mrb[0].mxu0 %v1657
      %v1742 = vpop.f32.mrb[0].mxu0
      %v1743 = vadd.f32 0.0, %v1742
      %v1744 = vpop.f32.mrb[0].mxu0
      %v1745 = vpop.f32.mrb[0].mxu0
      %v1746 = vadd.f32 0.0, %v1745
      %v1747 = vpop.f32.mrb[0].mxu0
      %1748 = vmatprep.mubr.bf16.mxu0 0
      %1749 = vmatmul.mubr.bf16.gmra.mrb[0].mxu0 %v1660
      %v1750 = vpop.f32.mrb[0].mxu0
      %v1751 = vadd.f32 0.0, %v1750
      %v1752 = vpop.f32.mrb[0].mxu0
      %v1753 = vpop.f32.mrb[0].mxu0
      %v1754 = vadd.f32 0.0, %v1753
      %v1755 = vpop.f32.mrb[0].mxu0
      %1756 = vmatprep.mubr.bf16.mxu0 0
      %1757 = vmatmul.mubr.bf16.gmra.mrb[0].mxu0 %v1663
      %v1758 = vpop.f32.mrb[0].mxu0
      %v1759 = vadd.f32 0.0, %v1758
      %v1760 = vpop.f32.mrb[0].mxu0
      %v1761 = vpop.f32.mrb[0].mxu0
      %v1762 = vadd.f32 0.0, %v1761
      %v1763 = vpop.f32.mrb[0].mxu0
      %1764 = vdwg.mxu0
      %v1765 = vadd.f32 %v1583, %v1703
      %v1766 = vadd.f32 %v1584, %v1706
      %v1767 = vadd.f32 %v1585, %v1711
      %v1768 = vadd.f32 %v1586, %v1714
      %v1769 = vadd.f32 %v1587, %v1719
      %v1770 = vadd.f32 %v1588, %v1722
      %v1771 = vadd.f32 %v1589, %v1727
      %v1772 = vadd.f32 %v1590, %v1730
      %v1773 = vadd.f32 %v1591, %v1735
      %v1774 = vadd.f32 %v1592, %v1738
      %v1775 = vadd.f32 %v1593, %v1743
      %v1776 = vadd.f32 %v1594, %v1746
      %v1777 = vadd.f32 %v1595, %v1751
      %v1778 = vadd.f32 %v1596, %v1754
      %v1779 = vadd.f32 %v1597, %v1759
      %v1780 = vadd.f32 %v1598, %v1762
      %1781 = vst.msk [vmem:[#allocation3] sm:$0xff] %vm594, %v1765
      %1782 = vst.msk [vmem:[#allocation3 + $0x8] sm:$0xff] %vm594, %v1766
      %1783 = vst.msk [vmem:[#allocation3 + $0x10] sm:$0xff] %vm594, %v1767
      %1784 = vst.msk [vmem:[#allocation3 + $0x18] sm:$0xff] %vm594, %v1768
      %1785 = vst.msk [vmem:[#allocation3 + $0x20] sm:$0xff] %vm594, %v1769
      %1786 = vst.msk [vmem:[#allocation3 + $0x28] sm:$0xff] %vm594, %v1770
      %1787 = vst.msk [vmem:[#allocation3 + $0x30] sm:$0xff] %vm594, %v1771
      %1788 = vst.msk [vmem:[#allocation3 + $0x38] sm:$0xff] %vm594, %v1772
      %1789 = vst.msk [vmem:[#allocation3 + $0x40] sm:$0xff] %vm594, %v1773
      %1790 = vst.msk [vmem:[#allocation3 + $0x48] sm:$0xff] %vm594, %v1774
      %1791 = vst.msk [vmem:[#allocation3 + $0x50] sm:$0xff] %vm594, %v1775
      %1792 = vst.msk [vmem:[#allocation3 + $0x58] sm:$0xff] %vm594, %v1776
      %1793 = vst.msk [vmem:[#allocation3 + $0x60] sm:$0xff] %vm594, %v1777
      %1794 = vst.msk [vmem:[#allocation3 + $0x68] sm:$0xff] %vm594, %v1778
      %1795 = vst.msk [vmem:[#allocation3 + $0x70] sm:$0xff] %vm594, %v1779
      %1796 = vst.msk [vmem:[#allocation3 + $0x78] sm:$0xff] %vm594, %v1780
      %v1797 = vld [vmem:[%s444] sm:$0xf]
      %v1798 = vld [vmem:[%s444 + $0x4] sm:$0xf]
      %v1799 = vld [vmem:[%s444 + $0x8] sm:$0x1]
      %v1800 = vld [vmem:[%s444 + $0xc] sm:$0xf]
      %v1801 = vld [vmem:[%s444 + $0x10] sm:$0xf]
      %v1802 = vld [vmem:[%s444 + $0x14] sm:$0x1]
      %v1803 = vld [vmem:[%s444 + $0x18] sm:$0xf]
      %v1804 = vld [vmem:[%s444 + $0x1c] sm:$0xf]
      %v1805 = vld [vmem:[%s444 + $0x20] sm:$0x1]
      %v1806 = vld [vmem:[%s444 + $0x24] sm:$0xf]
      %v1807 = vld [vmem:[%s444 + $0x28] sm:$0xf]
      %v1808 = vld [vmem:[%s444 + $0x2c] sm:$0x1]
      %v1809 = vld [vmem:[%s444 + $0x30] sm:$0xf]
      %v1810 = vld [vmem:[%s444 + $0x34] sm:$0xf]
      %v1811 = vld [vmem:[%s444 + $0x38] sm:$0x1]
      %v1812 = vld [vmem:[%s444 + $0x3c] sm:$0xf]
      %v1813 = vld [vmem:[%s444 + $0x40] sm:$0xf]
      %v1814 = vld [vmem:[%s444 + $0x44] sm:$0x1]
      %v1815 = vld [vmem:[%s444 + $0x48] sm:$0xf]
      %v1816 = vld [vmem:[%s444 + $0x4c] sm:$0xf]
      %v1817 = vld [vmem:[%s444 + $0x50] sm:$0x1]
      %v1818 = vld [vmem:[%s444 + $0x54] sm:$0xf]
      %v1819 = vld [vmem:[%s444 + $0x58] sm:$0xf]
      %v1820 = vld [vmem:[%s444 + $0x5c] sm:$0x1]
      %v1822 = vshrl.u32 %v1797, 16
      %v1824 = vrot.slane %v1822, 4
      %v1825 = vshll.u32 %v1797, 16
      %v1827 = vrot.slane %v1825, 5
      %v1828 = vor.u32 %v1824, %v1827
      %v1829 = vrot.slane %v1828, 4
      %v1831 = vshll.u32 %v1798, 16
      %v1833 = vrot.slane %v1831, 5
      %v1834 = vsel %vm871, %v1829, %v1833
      %v1835 = vshrl.u32 %v1798, 16
      %v1837 = vrot.slane %v1835, 4
      %v1838 = vor.u32 %v1837, %v1833
      %v1839 = vrot.slane %v1838, 4
      %v1841 = vshll.u32 %v1799, 16
      %v1843 = vrot.slane %v1841, 5
      %v1844 = vsel %vm871, %v1839, %v1843
      %v1846 = vshrl.u32 %v1800, 16
      %v1848 = vrot.slane %v1846, 4
      %v1849 = vshll.u32 %v1800, 16
      %v1851 = vrot.slane %v1849, 5
      %v1852 = vor.u32 %v1848, %v1851
      %v1853 = vrot.slane %v1852, 4
      %v1855 = vshll.u32 %v1801, 16
      %v1857 = vrot.slane %v1855, 5
      %v1858 = vsel %vm871, %v1853, %v1857
      %v1859 = vshrl.u32 %v1801, 16
      %v1861 = vrot.slane %v1859, 4
      %v1862 = vor.u32 %v1861, %v1857
      %v1863 = vrot.slane %v1862, 4
      %v1865 = vshll.u32 %v1802, 16
      %v1867 = vrot.slane %v1865, 5
      %v1868 = vsel %vm871, %v1863, %v1867
      %v1870 = vshrl.u32 %v1803, 16
      %v1872 = vrot.slane %v1870, 4
      %v1873 = vshll.u32 %v1803, 16
      %v1875 = vrot.slane %v1873, 5
      %v1876 = vor.u32 %v1872, %v1875
      %v1877 = vrot.slane %v1876, 4
      %v1879 = vshll.u32 %v1804, 16
      %v1881 = vrot.slane %v1879, 5
      %v1882 = vsel %vm871, %v1877, %v1881
      %v1883 = vshrl.u32 %v1804, 16
      %v1885 = vrot.slane %v1883, 4
      %v1886 = vor.u32 %v1885, %v1881
      %v1887 = vrot.slane %v1886, 4
      %v1889 = vshll.u32 %v1805, 16
      %v1891 = vrot.slane %v1889, 5
      %v1892 = vsel %vm871, %v1887, %v1891
      %v1894 = vshrl.u32 %v1806, 16
      %v1896 = vrot.slane %v1894, 4
      %v1897 = vshll.u32 %v1806, 16
      %v1899 = vrot.slane %v1897, 5
      %v1900 = vor.u32 %v1896, %v1899
      %v1901 = vrot.slane %v1900, 4
      %v1903 = vshll.u32 %v1807, 16
      %v1905 = vrot.slane %v1903, 5
      %v1906 = vsel %vm871, %v1901, %v1905
      %v1907 = vshrl.u32 %v1807, 16
      %v1909 = vrot.slane %v1907, 4
      %v1910 = vor.u32 %v1909, %v1905
      %v1911 = vrot.slane %v1910, 4
      %v1913 = vshll.u32 %v1808, 16
      %v1915 = vrot.slane %v1913, 5
      %v1916 = vsel %vm871, %v1911, %v1915
      %v1918 = vshrl.u32 %v1809, 16
      %v1920 = vrot.slane %v1918, 4
      %v1921 = vshll.u32 %v1809, 16
      %v1923 = vrot.slane %v1921, 5
      %v1924 = vor.u32 %v1920, %v1923
      %v1925 = vrot.slane %v1924, 4
      %v1927 = vshll.u32 %v1810, 16
      %v1929 = vrot.slane %v1927, 5
      %v1930 = vsel %vm871, %v1925, %v1929
      %v1931 = vshrl.u32 %v1810, 16
      %v1933 = vrot.slane %v1931, 4
      %v1934 = vor.u32 %v1933, %v1929
      %v1935 = vrot.slane %v1934, 4
      %v1937 = vshll.u32 %v1811, 16
      %v1939 = vrot.slane %v1937, 5
      %v1940 = vsel %vm871, %v1935, %v1939
      %v1942 = vshrl.u32 %v1812, 16
      %v1944 = vrot.slane %v1942, 4
      %v1945 = vshll.u32 %v1812, 16
      %v1947 = vrot.slane %v1945, 5
      %v1948 = vor.u32 %v1944, %v1947
      %v1949 = vrot.slane %v1948, 4
      %v1951 = vshll.u32 %v1813, 16
      %v1953 = vrot.slane %v1951, 5
      %v1954 = vsel %vm871, %v1949, %v1953
      %v1955 = vshrl.u32 %v1813, 16
      %v1957 = vrot.slane %v1955, 4
      %v1958 = vor.u32 %v1957, %v1953
      %v1959 = vrot.slane %v1958, 4
      %v1961 = vshll.u32 %v1814, 16
      %v1963 = vrot.slane %v1961, 5
      %v1964 = vsel %vm871, %v1959, %v1963
      %v1966 = vshrl.u32 %v1815, 16
      %v1968 = vrot.slane %v1966, 4
      %v1969 = vshll.u32 %v1815, 16
      %v1971 = vrot.slane %v1969, 5
      %v1972 = vor.u32 %v1968, %v1971
      %v1973 = vrot.slane %v1972, 4
      %v1975 = vshll.u32 %v1816, 16
      %v1977 = vrot.slane %v1975, 5
      %v1978 = vsel %vm871, %v1973, %v1977
      %v1979 = vshrl.u32 %v1816, 16
      %v1981 = vrot.slane %v1979, 4
      %v1982 = vor.u32 %v1981, %v1977
      %v1983 = vrot.slane %v1982, 4
      %v1985 = vshll.u32 %v1817, 16
      %v1987 = vrot.slane %v1985, 5
      %v1988 = vsel %vm871, %v1983, %v1987
      %v1990 = vshrl.u32 %v1818, 16
      %v1992 = vrot.slane %v1990, 4
      %v1993 = vshll.u32 %v1818, 16
      %v1995 = vrot.slane %v1993, 5
      %v1996 = vor.u32 %v1992, %v1995
      %v1997 = vrot.slane %v1996, 4
      %v1999 = vshll.u32 %v1819, 16
      %v2001 = vrot.slane %v1999, 5
      %v2002 = vsel %vm871, %v1997, %v2001
      %v2003 = vshrl.u32 %v1819, 16
      %v2005 = vrot.slane %v2003, 4
      %v2006 = vor.u32 %v2005, %v2001
      %v2007 = vrot.slane %v2006, 4
      %v2009 = vshll.u32 %v1820, 16
      %v2011 = vrot.slane %v2009, 5
      %v2012 = vsel %vm871, %v2007, %v2011
      %v2013 = vld [vmem:[#allocation3] sm:$0xff]
      %v2014 = vld [vmem:[#allocation3 + $0x8] sm:$0xff]
      %v2015 = vld [vmem:[#allocation3 + $0x10] sm:$0xff]
      %v2016 = vld [vmem:[#allocation3 + $0x18] sm:$0xff]
      %v2017 = vld [vmem:[#allocation3 + $0x20] sm:$0xff]
      %v2018 = vld [vmem:[#allocation3 + $0x28] sm:$0xff]
      %v2019 = vld [vmem:[#allocation3 + $0x30] sm:$0xff]
      %v2020 = vld [vmem:[#allocation3 + $0x38] sm:$0xff]
      %v2021 = vld [vmem:[#allocation3 + $0x40] sm:$0xff]
      %v2022 = vld [vmem:[#allocation3 + $0x48] sm:$0xff]
      %v2023 = vld [vmem:[#allocation3 + $0x50] sm:$0xff]
      %v2024 = vld [vmem:[#allocation3 + $0x58] sm:$0xff]
      %v2025 = vld [vmem:[#allocation3 + $0x60] sm:$0xff]
      %v2026 = vld [vmem:[#allocation3 + $0x68] sm:$0xff]
      %v2027 = vld [vmem:[#allocation3 + $0x70] sm:$0xff]
      %v2028 = vld [vmem:[#allocation3 + $0x78] sm:$0xff]
      %s2029 = scalar_lea.vmem %s1, 8
      %v2030 = vld [vmem:[%s2029] sm:$0x3]
      %v2031 = vunpack.c.l.b16 %v1834
      %v2032 = vunpack.c.l.b16 %v1844
      %v2033 = vunpack.c.l.b16 %v1858
      %v2034 = vunpack.c.l.b16 %v1868
      %v2035 = vunpack.c.l.b16 %v1882
      %v2036 = vunpack.c.l.b16 %v1892
      %v2037 = vunpack.c.l.b16 %v1906
      %v2038 = vunpack.c.l.b16 %v1916
      %v2039 = vunpack.c.l.b16 %v1930
      %v2040 = vunpack.c.l.b16 %v1940
      %v2041 = vunpack.c.l.b16 %v1954
      %v2042 = vunpack.c.l.b16 %v1964
      %v2043 = vunpack.c.l.b16 %v1978
      %v2044 = vunpack.c.l.b16 %v1988
      %v2045 = vunpack.c.l.b16 %v2002
      %v2046 = vunpack.c.l.b16 %v2012
      %v2047 = vpack.c.b16 %v2032, %v2031
      %v2048 = vpack.c.b16 %v2034, %v2033
      %v2049 = vpack.c.b16 %v2036, %v2035
      %v2050 = vpack.c.b16 %v2038, %v2037
      %v2051 = vpack.c.b16 %v2040, %v2039
      %v2052 = vpack.c.b16 %v2042, %v2041
      %v2053 = vpack.c.b16 %v2044, %v2043
      %v2054 = vpack.c.b16 %v2046, %v2045
      %v2056 = vsel %vm684, %v2047, 0
      %v2059 = vsel %vm684, %v2048, 0
      %v2062 = vsel %vm684, %v2049, 0
      %v2065 = vsel %vm684, %v2050, 0
      %v2068 = vsel %vm684, %v2051, 0
      %v2071 = vsel %vm684, %v2052, 0
      %v2074 = vsel %vm684, %v2053, 0
      %v2077 = vsel %vm684, %v2054, 0
      %v2080 = vand.u32 %v2030, %v712
      %2082 = vmatprep.subr.bf16.mxu0 0
      %2083 = vmatpush1.bf16.msra.mxu0 %v2080
      %2084 = vmatprep.subr.bf16.mxu0 0
      %2085 = vmatpush1.bf16.msra.mxu0 0
      %2086 = vmatprep.subr.bf16.mxu0 0
      %2087 = vmatpush1.bf16.msra.mxu0 0
      %2088 = vmatprep.subr.bf16.mxu0 0
      %2089 = vmatpush1.bf16.msra.mxu0 0
      %2090 = vmatprep.subr.bf16.mxu0 0
      %2091 = vmatpush1.bf16.msra.mxu0 0
      %2092 = vmatprep.subr.bf16.mxu0 0
      %2093 = vmatpush1.bf16.msra.mxu0 0
      %2094 = vmatprep.subr.bf16.mxu0 0
      %2095 = vmatpush1.bf16.msra.mxu0 0
      %2096 = vmatprep.subr.bf16.mxu0 0
      %2097 = vmatpush1.bf16.msra.mxu0 0
      %2098 = vmatprep.subr.bf16.mxu0 0
      %2099 = vmatpush1.bf16.msra.mxu0 0
      %2100 = vmatprep.subr.bf16.mxu0 0
      %2101 = vmatpush1.bf16.msra.mxu0 0
      %2102 = vmatprep.subr.bf16.mxu0 0
      %2103 = vmatpush1.bf16.msra.mxu0 0
      %2104 = vmatprep.subr.bf16.mxu0 0
      %2105 = vmatpush1.bf16.msra.mxu0 0
      %2106 = vmatprep.subr.bf16.mxu0 0
      %2107 = vmatpush1.bf16.msra.mxu0 0
      %2108 = vmatprep.subr.bf16.mxu0 0
      %2109 = vmatpush1.bf16.msra.mxu0 0
      %2110 = vmatprep.subr.bf16.mxu0 0
      %2111 = vmatpush1.bf16.msra.mxu0 0
      %2112 = vmatprep.subr.bf16.mxu0 0
      %2113 = vmatpush1.bf16.msra.mxu0 0
      %2114 = vmatprep.mubr.bf16.mxu0 0
      %2115 = vmatmul.mubr.bf16.gmra.mrb[0].mxu0 %v2056
      %v2116 = vpop.f32.mrb[0].mxu0
      %v2117 = vadd.f32 0.0, %v2116
      %v2118 = vpop.f32.mrb[0].mxu0
      %v2119 = vpop.f32.mrb[0].mxu0
      %v2120 = vadd.f32 0.0, %v2119
      %v2121 = vpop.f32.mrb[0].mxu0
      %2122 = vmatprep.mubr.bf16.mxu0 0
      %2123 = vmatmul.mubr.bf16.gmra.mrb[0].mxu0 %v2059
      %v2124 = vpop.f32.mrb[0].mxu0
      %v2125 = vadd.f32 0.0, %v2124
      %v2126 = vpop.f32.mrb[0].mxu0
      %v2127 = vpop.f32.mrb[0].mxu0
      %v2128 = vadd.f32 0.0, %v2127
      %v2129 = vpop.f32.mrb[0].mxu0
      %2130 = vmatprep.mubr.bf16.mxu0 0
      %2131 = vmatmul.mubr.bf16.gmra.mrb[0].mxu0 %v2062
      %v2132 = vpop.f32.mrb[0].mxu0
      %v2133 = vadd.f32 0.0, %v2132
      %v2134 = vpop.f32.mrb[0].mxu0
      %v2135 = vpop.f32.mrb[0].mxu0
      %v2136 = vadd.f32 0.0, %v2135
      %v2137 = vpop.f32.mrb[0].mxu0
      %2138 = vmatprep.mubr.bf16.mxu0 0
      %2139 = vmatmul.mubr.bf16.gmra.mrb[0].mxu0 %v2065
      %v2140 = vpop.f32.mrb[0].mxu0
      %v2141 = vadd.f32 0.0, %v2140
      %v2142 = vpop.f32.mrb[0].mxu0
      %v2143 = vpop.f32.mrb[0].mxu0
      %v2144 = vadd.f32 0.0, %v2143
      %v2145 = vpop.f32.mrb[0].mxu0
      %2146 = vmatprep.mubr.bf16.mxu0 0
      %2147 = vmatmul.mubr.bf16.gmra.mrb[0].mxu0 %v2068
      %v2148 = vpop.f32.mrb[0].mxu0
      %v2149 = vadd.f32 0.0, %v2148
      %v2150 = vpop.f32.mrb[0].mxu0
      %v2151 = vpop.f32.mrb[0].mxu0
      %v2152 = vadd.f32 0.0, %v2151
      %v2153 = vpop.f32.mrb[0].mxu0
      %2154 = vmatprep.mubr.bf16.mxu0 0
      %2155 = vmatmul.mubr.bf16.gmra.mrb[0].mxu0 %v2071
      %v2156 = vpop.f32.mrb[0].mxu0
      %v2157 = vadd.f32 0.0, %v2156
      %v2158 = vpop.f32.mrb[0].mxu0
      %v2159 = vpop.f32.mrb[0].mxu0
      %v2160 = vadd.f32 0.0, %v2159
      %v2161 = vpop.f32.mrb[0].mxu0
      %2162 = vmatprep.mubr.bf16.mxu0 0
      %2163 = vmatmul.mubr.bf16.gmra.mrb[0].mxu0 %v2074
      %v2164 = vpop.f32.mrb[0].mxu0
      %v2165 = vadd.f32 0.0, %v2164
      %v2166 = vpop.f32.mrb[0].mxu0
      %v2167 = vpop.f32.mrb[0].mxu0
      %v2168 = vadd.f32 0.0, %v2167
      %v2169 = vpop.f32.mrb[0].mxu0
      %2170 = vmatprep.mubr.bf16.mxu0 0
      %2171 = vmatmul.mubr.bf16.gmra.mrb[0].mxu0 %v2077
      %v2172 = vpop.f32.mrb[0].mxu0
      %v2173 = vadd.f32 0.0, %v2172
      %v2174 = vpop.f32.mrb[0].mxu0
      %v2175 = vpop.f32.mrb[0].mxu0
      %v2176 = vadd.f32 0.0, %v2175
      %v2177 = vpop.f32.mrb[0].mxu0
      %2178 = vdwg.mxu0
      %v2179 = vadd.f32 %v2013, %v2117
      %v2180 = vadd.f32 %v2014, %v2120
      %v2181 = vadd.f32 %v2015, %v2125
      %v2182 = vadd.f32 %v2016, %v2128
      %v2183 = vadd.f32 %v2017, %v2133
      %v2184 = vadd.f32 %v2018, %v2136
      %v2185 = vadd.f32 %v2019, %v2141
      %v2186 = vadd.f32 %v2020, %v2144
      %v2187 = vadd.f32 %v2021, %v2149
      %v2188 = vadd.f32 %v2022, %v2152
      %v2189 = vadd.f32 %v2023, %v2157
      %v2190 = vadd.f32 %v2024, %v2160
      %v2191 = vadd.f32 %v2025, %v2165
      %v2192 = vadd.f32 %v2026, %v2168
      %v2193 = vadd.f32 %v2027, %v2173
      %v2194 = vadd.f32 %v2028, %v2176
      %2195 = vst.msk [vmem:[#allocation3] sm:$0xff] %vm594, %v2179
      %2196 = vst.msk [vmem:[#allocation3 + $0x8] sm:$0xff] %vm594, %v2180
      %2197 = vst.msk [vmem:[#allocation3 + $0x10] sm:$0xff] %vm594, %v2181
      %2198 = vst.msk [vmem:[#allocation3 + $0x18] sm:$0xff] %vm594, %v2182
      %2199 = vst.msk [vmem:[#allocation3 + $0x20] sm:$0xff] %vm594, %v2183
      %2200 = vst.msk [vmem:[#allocation3 + $0x28] sm:$0xff] %vm594, %v2184
      %2201 = vst.msk [vmem:[#allocation3 + $0x30] sm:$0xff] %vm594, %v2185
      %2202 = vst.msk [vmem:[#allocation3 + $0x38] sm:$0xff] %vm594, %v2186
      %2203 = vst.msk [vmem:[#allocation3 + $0x40] sm:$0xff] %vm594, %v2187
      %2204 = vst.msk [vmem:[#allocation3 + $0x48] sm:$0xff] %vm594, %v2188
      %2205 = vst.msk [vmem:[#allocation3 + $0x50] sm:$0xff] %vm594, %v2189
      %2206 = vst.msk [vmem:[#allocation3 + $0x58] sm:$0xff] %vm594, %v2190
      %2207 = vst.msk [vmem:[#allocation3 + $0x60] sm:$0xff] %vm594, %v2191
      %2208 = vst.msk [vmem:[#allocation3 + $0x68] sm:$0xff] %vm594, %v2192
      %2209 = vst.msk [vmem:[#allocation3 + $0x70] sm:$0xff] %vm594, %v2193
      %2210 = vst.msk [vmem:[#allocation3 + $0x78] sm:$0xff] %vm594, %v2194
      %v2211 = vld [vmem:[%s444] sm:$0xe]
      %v2212 = vld [vmem:[%s444 + $0x4] sm:$0xf]
      %v2213 = vld [vmem:[%s444 + $0x8] sm:$0x1]
      %v2214 = vld [vmem:[%s444 + $0xc] sm:$0xe]
      %v2215 = vld [vmem:[%s444 + $0x10] sm:$0xf]
      %v2216 = vld [vmem:[%s444 + $0x14] sm:$0x1]
      %v2217 = vld [vmem:[%s444 + $0x18] sm:$0xe]
      %v2218 = vld [vmem:[%s444 + $0x1c] sm:$0xf]
      %v2219 = vld [vmem:[%s444 + $0x20] sm:$0x1]
      %v2220 = vld [vmem:[%s444 + $0x24] sm:$0xe]
      %v2221 = vld [vmem:[%s444 + $0x28] sm:$0xf]
      %v2222 = vld [vmem:[%s444 + $0x2c] sm:$0x1]
      %v2223 = vld [vmem:[%s444 + $0x30] sm:$0xe]
      %v2224 = vld [vmem:[%s444 + $0x34] sm:$0xf]
      %v2225 = vld [vmem:[%s444 + $0x38] sm:$0x1]
      %v2226 = vld [vmem:[%s444 + $0x3c] sm:$0xe]
      %v2227 = vld [vmem:[%s444 + $0x40] sm:$0xf]
      %v2228 = vld [vmem:[%s444 + $0x44] sm:$0x1]
      %v2229 = vld [vmem:[%s444 + $0x48] sm:$0xe]
      %v2230 = vld [vmem:[%s444 + $0x4c] sm:$0xf]
      %v2231 = vld [vmem:[%s444 + $0x50] sm:$0x1]
      %v2232 = vld [vmem:[%s444 + $0x54] sm:$0xe]
      %v2233 = vld [vmem:[%s444 + $0x58] sm:$0xf]
      %v2234 = vld [vmem:[%s444 + $0x5c] sm:$0x1]
      %v2259 = vrot.slane %v2211, 5
      %v2260 = vrot.slane %v2259, 4
      %v2261 = vrot.slane %v2212, 5
      %v2262 = vsel %vm1312, %v2260, %v2261
      %v2263 = vrot.slane %v2261, 4
      %v2264 = vrot.slane %v2213, 5
      %v2265 = vsel %vm1312, %v2263, %v2264
      %v2266 = vrot.slane %v2214, 5
      %v2267 = vrot.slane %v2266, 4
      %v2268 = vrot.slane %v2215, 5
      %v2269 = vsel %vm1312, %v2267, %v2268
      %v2270 = vrot.slane %v2268, 4
      %v2271 = vrot.slane %v2216, 5
      %v2272 = vsel %vm1312, %v2270, %v2271
      %v2273 = vrot.slane %v2217, 5
      %v2274 = vrot.slane %v2273, 4
      %v2275 = vrot.slane %v2218, 5
      %v2276 = vsel %vm1312, %v2274, %v2275
      %v2277 = vrot.slane %v2275, 4
      %v2278 = vrot.slane %v2219, 5
      %v2279 = vsel %vm1312, %v2277, %v2278
      %v2280 = vrot.slane %v2220, 5
      %v2281 = vrot.slane %v2280, 4
      %v2282 = vrot.slane %v2221, 5
      %v2283 = vsel %vm1312, %v2281, %v2282
      %v2284 = vrot.slane %v2282, 4
      %v2285 = vrot.slane %v2222, 5
      %v2286 = vsel %vm1312, %v2284, %v2285
      %v2287 = vrot.slane %v2223, 5
      %v2288 = vrot.slane %v2287, 4
      %v2289 = vrot.slane %v2224, 5
      %v2290 = vsel %vm1312, %v2288, %v2289
      %v2291 = vrot.slane %v2289, 4
      %v2292 = vrot.slane %v2225, 5
      %v2293 = vsel %vm1312, %v2291, %v2292
      %v2294 = vrot.slane %v2226, 5
      %v2295 = vrot.slane %v2294, 4
      %v2296 = vrot.slane %v2227, 5
      %v2297 = vsel %vm1312, %v2295, %v2296
      %v2298 = vrot.slane %v2296, 4
      %v2299 = vrot.slane %v2228, 5
      %v2300 = vsel %vm1312, %v2298, %v2299
      %v2301 = vrot.slane %v2229, 5
      %v2302 = vrot.slane %v2301, 4
      %v2303 = vrot.slane %v2230, 5
      %v2304 = vsel %vm1312, %v2302, %v2303
      %v2305 = vrot.slane %v2303, 4
      %v2306 = vrot.slane %v2231, 5
      %v2307 = vsel %vm1312, %v2305, %v2306
      %v2308 = vrot.slane %v2232, 5
      %v2309 = vrot.slane %v2308, 4
      %v2310 = vrot.slane %v2233, 5
      %v2311 = vsel %vm1312, %v2309, %v2310
      %v2312 = vrot.slane %v2310, 4
      %v2313 = vrot.slane %v2234, 5
      %v2314 = vsel %vm1312, %v2312, %v2313
      %v2315 = vld [vmem:[#allocation3] sm:$0xff]
      %v2316 = vld [vmem:[#allocation3 + $0x8] sm:$0xff]
      %v2317 = vld [vmem:[#allocation3 + $0x10] sm:$0xff]
      %v2318 = vld [vmem:[#allocation3 + $0x18] sm:$0xff]
      %v2319 = vld [vmem:[#allocation3 + $0x20] sm:$0xff]
      %v2320 = vld [vmem:[#allocation3 + $0x28] sm:$0xff]
      %v2321 = vld [vmem:[#allocation3 + $0x30] sm:$0xff]
      %v2322 = vld [vmem:[#allocation3 + $0x38] sm:$0xff]
      %v2323 = vld [vmem:[#allocation3 + $0x40] sm:$0xff]
      %v2324 = vld [vmem:[#allocation3 + $0x48] sm:$0xff]
      %v2325 = vld [vmem:[#allocation3 + $0x50] sm:$0xff]
      %v2326 = vld [vmem:[#allocation3 + $0x58] sm:$0xff]
      %v2327 = vld [vmem:[#allocation3 + $0x60] sm:$0xff]
      %v2328 = vld [vmem:[#allocation3 + $0x68] sm:$0xff]
      %v2329 = vld [vmem:[#allocation3 + $0x70] sm:$0xff]
      %v2330 = vld [vmem:[#allocation3 + $0x78] sm:$0xff]
      %s2331 = scalar_lea.vmem %s1, 10
      %v2332 = vld [vmem:[%s2331] sm:$0x3]
      %v2333 = vunpack.c.l.b16 %v2262
      %v2334 = vunpack.c.l.b16 %v2265
      %v2335 = vunpack.c.l.b16 %v2269
      %v2336 = vunpack.c.l.b16 %v2272
      %v2337 = vunpack.c.l.b16 %v2276
      %v2338 = vunpack.c.l.b16 %v2279
      %v2339 = vunpack.c.l.b16 %v2283
      %v2340 = vunpack.c.l.b16 %v2286
      %v2341 = vunpack.c.l.b16 %v2290
      %v2342 = vunpack.c.l.b16 %v2293
      %v2343 = vunpack.c.l.b16 %v2297
      %v2344 = vunpack.c.l.b16 %v2300
      %v2345 = vunpack.c.l.b16 %v2304
      %v2346 = vunpack.c.l.b16 %v2307
      %v2347 = vunpack.c.l.b16 %v2311
      %v2348 = vunpack.c.l.b16 %v2314
      %v2349 = vpack.c.b16 %v2334, %v2333
      %v2350 = vpack.c.b16 %v2336, %v2335
      %v2351 = vpack.c.b16 %v2338, %v2337
      %v2352 = vpack.c.b16 %v2340, %v2339
      %v2353 = vpack.c.b16 %v2342, %v2341
      %v2354 = vpack.c.b16 %v2344, %v2343
      %v2355 = vpack.c.b16 %v2346, %v2345
      %v2356 = vpack.c.b16 %v2348, %v2347
      %v2358 = vsel %vm684, %v2349, 0
      %v2361 = vsel %vm684, %v2350, 0
      %v2364 = vsel %vm684, %v2351, 0
      %v2367 = vsel %vm684, %v2352, 0
      %v2370 = vsel %vm684, %v2353, 0
      %v2373 = vsel %vm684, %v2354, 0
      %v2376 = vsel %vm684, %v2355, 0
      %v2379 = vsel %vm684, %v2356, 0
      %v2382 = vand.u32 %v2332, %v712
      %2384 = vmatprep.subr.bf16.mxu0 0
      %2385 = vmatpush1.bf16.msra.mxu0 %v2382
      %2386 = vmatprep.subr.bf16.mxu0 0
      %2387 = vmatpush1.bf16.msra.mxu0 0
      %2388 = vmatprep.subr.bf16.mxu0 0
      %2389 = vmatpush1.bf16.msra.mxu0 0
      %2390 = vmatprep.subr.bf16.mxu0 0
      %2391 = vmatpush1.bf16.msra.mxu0 0
      %2392 = vmatprep.subr.bf16.mxu0 0
      %2393 = vmatpush1.bf16.msra.mxu0 0
      %2394 = vmatprep.subr.bf16.mxu0 0
      %2395 = vmatpush1.bf16.msra.mxu0 0
      %2396 = vmatprep.subr.bf16.mxu0 0
      %2397 = vmatpush1.bf16.msra.mxu0 0
      %2398 = vmatprep.subr.bf16.mxu0 0
      %2399 = vmatpush1.bf16.msra.mxu0 0
      %2400 = vmatprep.subr.bf16.mxu0 0
      %2401 = vmatpush1.bf16.msra.mxu0 0
      %2402 = vmatprep.subr.bf16.mxu0 0
      %2403 = vmatpush1.bf16.msra.mxu0 0
      %2404 = vmatprep.subr.bf16.mxu0 0
      %2405 = vmatpush1.bf16.msra.mxu0 0
      %2406 = vmatprep.subr.bf16.mxu0 0
      %2407 = vmatpush1.bf16.msra.mxu0 0
      %2408 = vmatprep.subr.bf16.mxu0 0
      %2409 = vmatpush1.bf16.msra.mxu0 0
      %2410 = vmatprep.subr.bf16.mxu0 0
      %2411 = vmatpush1.bf16.msra.mxu0 0
      %2412 = vmatprep.subr.bf16.mxu0 0
      %2413 = vmatpush1.bf16.msra.mxu0 0
      %2414 = vmatprep.subr.bf16.mxu0 0
      %2415 = vmatpush1.bf16.msra.mxu0 0
      %2416 = vmatprep.mubr.bf16.mxu0 0
      %2417 = vmatmul.mubr.bf16.gmra.mrb[0].mxu0 %v2358
      %v2418 = vpop.f32.mrb[0].mxu0
      %v2419 = vadd.f32 0.0, %v2418
      %v2420 = vpop.f32.mrb[0].mxu0
      %v2421 = vpop.f32.mrb[0].mxu0
      %v2422 = vadd.f32 0.0, %v2421
      %v2423 = vpop.f32.mrb[0].mxu0
      %2424 = vmatprep.mubr.bf16.mxu0 0
      %2425 = vmatmul.mubr.bf16.gmra.mrb[0].mxu0 %v2361
      %v2426 = vpop.f32.mrb[0].mxu0
      %v2427 = vadd.f32 0.0, %v2426
      %v2428 = vpop.f32.mrb[0].mxu0
      %v2429 = vpop.f32.mrb[0].mxu0
      %v2430 = vadd.f32 0.0, %v2429
      %v2431 = vpop.f32.mrb[0].mxu0
      %2432 = vmatprep.mubr.bf16.mxu0 0
      %2433 = vmatmul.mubr.bf16.gmra.mrb[0].mxu0 %v2364
      %v2434 = vpop.f32.mrb[0].mxu0
      %v2435 = vadd.f32 0.0, %v2434
      %v2436 = vpop.f32.mrb[0].mxu0
      %v2437 = vpop.f32.mrb[0].mxu0
      %v2438 = vadd.f32 0.0, %v2437
      %v2439 = vpop.f32.mrb[0].mxu0
      %2440 = vmatprep.mubr.bf16.mxu0 0
      %2441 = vmatmul.mubr.bf16.gmra.mrb[0].mxu0 %v2367
      %v2442 = vpop.f32.mrb[0].mxu0
      %v2443 = vadd.f32 0.0, %v2442
      %v2444 = vpop.f32.mrb[0].mxu0
      %v2445 = vpop.f32.mrb[0].mxu0
      %v2446 = vadd.f32 0.0, %v2445
      %v2447 = vpop.f32.mrb[0].mxu0
      %2448 = vmatprep.mubr.bf16.mxu0 0
      %2449 = vmatmul.mubr.bf16.gmra.mrb[0].mxu0 %v2370
      %v2450 = vpop.f32.mrb[0].mxu0
      %v2451 = vadd.f32 0.0, %v2450
      %v2452 = vpop.f32.mrb[0].mxu0
      %v2453 = vpop.f32.mrb[0].mxu0
      %v2454 = vadd.f32 0.0, %v2453
      %v2455 = vpop.f32.mrb[0].mxu0
      %2456 = vmatprep.mubr.bf16.mxu0 0
      %2457 = vmatmul.mubr.bf16.gmra.mrb[0].mxu0 %v2373
      %v2458 = vpop.f32.mrb[0].mxu0
      %v2459 = vadd.f32 0.0, %v2458
      %v2460 = vpop.f32.mrb[0].mxu0
      %v2461 = vpop.f32.mrb[0].mxu0
      %v2462 = vadd.f32 0.0, %v2461
      %v2463 = vpop.f32.mrb[0].mxu0
      %2464 = vmatprep.mubr.bf16.mxu0 0
      %2465 = vmatmul.mubr.bf16.gmra.mrb[0].mxu0 %v2376
      %v2466 = vpop.f32.mrb[0].mxu0
      %v2467 = vadd.f32 0.0, %v2466
      %v2468 = vpop.f32.mrb[0].mxu0
      %v2469 = vpop.f32.mrb[0].mxu0
      %v2470 = vadd.f32 0.0, %v2469
      %v2471 = vpop.f32.mrb[0].mxu0
      %2472 = vmatprep.mubr.bf16.mxu0 0
      %2473 = vmatmul.mubr.bf16.gmra.mrb[0].mxu0 %v2379
      %v2474 = vpop.f32.mrb[0].mxu0
      %v2475 = vadd.f32 0.0, %v2474
      %v2476 = vpop.f32.mrb[0].mxu0
      %v2477 = vpop.f32.mrb[0].mxu0
      %v2478 = vadd.f32 0.0, %v2477
      %v2479 = vpop.f32.mrb[0].mxu0
      %2480 = vdwg.mxu0
      %v2481 = vadd.f32 %v2315, %v2419
      %v2482 = vadd.f32 %v2316, %v2422
      %v2483 = vadd.f32 %v2317, %v2427
      %v2484 = vadd.f32 %v2318, %v2430
      %v2485 = vadd.f32 %v2319, %v2435
      %v2486 = vadd.f32 %v2320, %v2438
      %v2487 = vadd.f32 %v2321, %v2443
      %v2488 = vadd.f32 %v2322, %v2446
      %v2489 = vadd.f32 %v2323, %v2451
      %v2490 = vadd.f32 %v2324, %v2454
      %v2491 = vadd.f32 %v2325, %v2459
      %v2492 = vadd.f32 %v2326, %v2462
      %v2493 = vadd.f32 %v2327, %v2467
      %v2494 = vadd.f32 %v2328, %v2470
      %v2495 = vadd.f32 %v2329, %v2475
      %v2496 = vadd.f32 %v2330, %v2478
      %2497 = vst.msk [vmem:[#allocation3] sm:$0xff] %vm594, %v2481
      %2498 = vst.msk [vmem:[#allocation3 + $0x8] sm:$0xff] %vm594, %v2482
      %2499 = vst.msk [vmem:[#allocation3 + $0x10] sm:$0xff] %vm594, %v2483
      %2500 = vst.msk [vmem:[#allocation3 + $0x18] sm:$0xff] %vm594, %v2484
      %2501 = vst.msk [vmem:[#allocation3 + $0x20] sm:$0xff] %vm594, %v2485
      %2502 = vst.msk [vmem:[#allocation3 + $0x28] sm:$0xff] %vm594, %v2486
      %2503 = vst.msk [vmem:[#allocation3 + $0x30] sm:$0xff] %vm594, %v2487
      %2504 = vst.msk [vmem:[#allocation3 + $0x38] sm:$0xff] %vm594, %v2488
      %2505 = vst.msk [vmem:[#allocation3 + $0x40] sm:$0xff] %vm594, %v2489
      %2506 = vst.msk [vmem:[#allocation3 + $0x48] sm:$0xff] %vm594, %v2490
      %2507 = vst.msk [vmem:[#allocation3 + $0x50] sm:$0xff] %vm594, %v2491
      %2508 = vst.msk [vmem:[#allocation3 + $0x58] sm:$0xff] %vm594, %v2492
      %2509 = vst.msk [vmem:[#allocation3 + $0x60] sm:$0xff] %vm594, %v2493
      %2510 = vst.msk [vmem:[#allocation3 + $0x68] sm:$0xff] %vm594, %v2494
      %2511 = vst.msk [vmem:[#allocation3 + $0x70] sm:$0xff] %vm594, %v2495
      %2512 = vst.msk [vmem:[#allocation3 + $0x78] sm:$0xff] %vm594, %v2496
      %s2513 = scalar_lea.vmem [#allocation2], 24
      %v2514 = vld [vmem:[%s2513] sm:$0xf]
      %v2515 = vld [vmem:[%s2513 + $0x4] sm:$0xf]
      %v2516 = vld [vmem:[%s2513 + $0xc] sm:$0xf]
      %v2517 = vld [vmem:[%s2513 + $0x10] sm:$0xf]
      %v2518 = vld [vmem:[%s2513 + $0x18] sm:$0xf]
      %v2519 = vld [vmem:[%s2513 + $0x1c] sm:$0xf]
      %v2520 = vld [vmem:[%s2513 + $0x24] sm:$0xf]
      %v2521 = vld [vmem:[%s2513 + $0x28] sm:$0xf]
      %v2522 = vld [vmem:[%s2513 + $0x30] sm:$0xf]
      %v2523 = vld [vmem:[%s2513 + $0x34] sm:$0xf]
      %v2524 = vld [vmem:[%s2513 + $0x3c] sm:$0xf]
      %v2525 = vld [vmem:[%s2513 + $0x40] sm:$0xf]
      %v2526 = vld [vmem:[%s2513 + $0x48] sm:$0xf]
      %v2527 = vld [vmem:[%s2513 + $0x4c] sm:$0xf]
      %v2528 = vld [vmem:[%s2513 + $0x54] sm:$0xf]
      %v2529 = vld [vmem:[%s2513 + $0x58] sm:$0xf]
      %v2530 = vld [vmem:[#allocation3] sm:$0xff]
      %v2531 = vld [vmem:[#allocation3 + $0x8] sm:$0xff]
      %v2532 = vld [vmem:[#allocation3 + $0x10] sm:$0xff]
      %v2533 = vld [vmem:[#allocation3 + $0x18] sm:$0xff]
      %v2534 = vld [vmem:[#allocation3 + $0x20] sm:$0xff]
      %v2535 = vld [vmem:[#allocation3 + $0x28] sm:$0xff]
      %v2536 = vld [vmem:[#allocation3 + $0x30] sm:$0xff]
      %v2537 = vld [vmem:[#allocation3 + $0x38] sm:$0xff]
      %v2538 = vld [vmem:[#allocation3 + $0x40] sm:$0xff]
      %v2539 = vld [vmem:[#allocation3 + $0x48] sm:$0xff]
      %v2540 = vld [vmem:[#allocation3 + $0x50] sm:$0xff]
      %v2541 = vld [vmem:[#allocation3 + $0x58] sm:$0xff]
      %v2542 = vld [vmem:[#allocation3 + $0x60] sm:$0xff]
      %v2543 = vld [vmem:[#allocation3 + $0x68] sm:$0xff]
      %v2544 = vld [vmem:[#allocation3 + $0x70] sm:$0xff]
      %v2545 = vld [vmem:[#allocation3 + $0x78] sm:$0xff]
      %s2546 = scalar_lea.vmem %s1, 12
      %v2547 = vld [vmem:[%s2546] sm:$0x3]
      %v2564 = vunpack.c.l.b16 %v2514
      %v2565 = vunpack.c.l.b16 %v2515
      %v2566 = vunpack.c.l.b16 %v2516
      %v2567 = vunpack.c.l.b16 %v2517
      %v2568 = vunpack.c.l.b16 %v2518
      %v2569 = vunpack.c.l.b16 %v2519
      %v2570 = vunpack.c.l.b16 %v2520
      %v2571 = vunpack.c.l.b16 %v2521
      %v2572 = vunpack.c.l.b16 %v2522
      %v2573 = vunpack.c.l.b16 %v2523
      %v2574 = vunpack.c.l.b16 %v2524
      %v2575 = vunpack.c.l.b16 %v2525
      %v2576 = vunpack.c.l.b16 %v2526
      %v2577 = vunpack.c.l.b16 %v2527
      %v2578 = vunpack.c.l.b16 %v2528
      %v2579 = vunpack.c.l.b16 %v2529
      %v2580 = vpack.c.b16 %v2565, %v2564
      %v2581 = vpack.c.b16 %v2567, %v2566
      %v2582 = vpack.c.b16 %v2569, %v2568
      %v2583 = vpack.c.b16 %v2571, %v2570
      %v2584 = vpack.c.b16 %v2573, %v2572
      %v2585 = vpack.c.b16 %v2575, %v2574
      %v2586 = vpack.c.b16 %v2577, %v2576
      %v2587 = vpack.c.b16 %v2579, %v2578
      %v2589 = vsel %vm684, %v2580, 0
      %v2592 = vsel %vm684, %v2581, 0
      %v2595 = vsel %vm684, %v2582, 0
      %v2598 = vsel %vm684, %v2583, 0
      %v2601 = vsel %vm684, %v2584, 0
      %v2604 = vsel %vm684, %v2585, 0
      %v2607 = vsel %vm684, %v2586, 0
      %v2610 = vsel %vm684, %v2587, 0
      %v2613 = vand.u32 %v2547, %v712
      %2615 = vmatprep.subr.bf16.mxu0 0
      %2616 = vmatpush1.bf16.msra.mxu0 %v2613
      %2617 = vmatprep.subr.bf16.mxu0 0
      %2618 = vmatpush1.bf16.msra.mxu0 0
      %2619 = vmatprep.subr.bf16.mxu0 0
      %2620 = vmatpush1.bf16.msra.mxu0 0
      %2621 = vmatprep.subr.bf16.mxu0 0
      %2622 = vmatpush1.bf16.msra.mxu0 0
      %2623 = vmatprep.subr.bf16.mxu0 0
      %2624 = vmatpush1.bf16.msra.mxu0 0
      %2625 = vmatprep.subr.bf16.mxu0 0
      %2626 = vmatpush1.bf16.msra.mxu0 0
      %2627 = vmatprep.subr.bf16.mxu0 0
      %2628 = vmatpush1.bf16.msra.mxu0 0
      %2629 = vmatprep.subr.bf16.mxu0 0
      %2630 = vmatpush1.bf16.msra.mxu0 0
      %2631 = vmatprep.subr.bf16.mxu0 0
      %2632 = vmatpush1.bf16.msra.mxu0 0
      %2633 = vmatprep.subr.bf16.mxu0 0
      %2634 = vmatpush1.bf16.msra.mxu0 0
      %2635 = vmatprep.subr.bf16.mxu0 0
      %2636 = vmatpush1.bf16.msra.mxu0 0
      %2637 = vmatprep.subr.bf16.mxu0 0
      %2638 = vmatpush1.bf16.msra.mxu0 0
      %2639 = vmatprep.subr.bf16.mxu0 0
      %2640 = vmatpush1.bf16.msra.mxu0 0
      %2641 = vmatprep.subr.bf16.mxu0 0
      %2642 = vmatpush1.bf16.msra.mxu0 0
      %2643 = vmatprep.subr.bf16.mxu0 0
      %2644 = vmatpush1.bf16.msra.mxu0 0
      %2645 = vmatprep.subr.bf16.mxu0 0
      %2646 = vmatpush1.bf16.msra.mxu0 0
      %2647 = vmatprep.mubr.bf16.mxu0 0
      %2648 = vmatmul.mubr.bf16.gmra.mrb[0].mxu0 %v2589
      %v2649 = vpop.f32.mrb[0].mxu0
      %v2650 = vadd.f32 0.0, %v2649
      %v2651 = vpop.f32.mrb[0].mxu0
      %v2652 = vpop.f32.mrb[0].mxu0
      %v2653 = vadd.f32 0.0, %v2652
      %v2654 = vpop.f32.mrb[0].mxu0
      %2655 = vmatprep.mubr.bf16.mxu0 0
      %2656 = vmatmul.mubr.bf16.gmra.mrb[0].mxu0 %v2592
      %v2657 = vpop.f32.mrb[0].mxu0
      %v2658 = vadd.f32 0.0, %v2657
      %v2659 = vpop.f32.mrb[0].mxu0
      %v2660 = vpop.f32.mrb[0].mxu0
      %v2661 = vadd.f32 0.0, %v2660
      %v2662 = vpop.f32.mrb[0].mxu0
      %2663 = vmatprep.mubr.bf16.mxu0 0
      %2664 = vmatmul.mubr.bf16.gmra.mrb[0].mxu0 %v2595
      %v2665 = vpop.f32.mrb[0].mxu0
      %v2666 = vadd.f32 0.0, %v2665
      %v2667 = vpop.f32.mrb[0].mxu0
      %v2668 = vpop.f32.mrb[0].mxu0
      %v2669 = vadd.f32 0.0, %v2668
      %v2670 = vpop.f32.mrb[0].mxu0
      %2671 = vmatprep.mubr.bf16.mxu0 0
      %2672 = vmatmul.mubr.bf16.gmra.mrb[0].mxu0 %v2598
      %v2673 = vpop.f32.mrb[0].mxu0
      %v2674 = vadd.f32 0.0, %v2673
      %v2675 = vpop.f32.mrb[0].mxu0
      %v2676 = vpop.f32.mrb[0].mxu0
      %v2677 = vadd.f32 0.0, %v2676
      %v2678 = vpop.f32.mrb[0].mxu0
      %2679 = vmatprep.mubr.bf16.mxu0 0
      %2680 = vmatmul.mubr.bf16.gmra.mrb[0].mxu0 %v2601
      %v2681 = vpop.f32.mrb[0].mxu0
      %v2682 = vadd.f32 0.0, %v2681
      %v2683 = vpop.f32.mrb[0].mxu0
      %v2684 = vpop.f32.mrb[0].mxu0
      %v2685 = vadd.f32 0.0, %v2684
      %v2686 = vpop.f32.mrb[0].mxu0
      %2687 = vmatprep.mubr.bf16.mxu0 0
      %2688 = vmatmul.mubr.bf16.gmra.mrb[0].mxu0 %v2604
      %v2689 = vpop.f32.mrb[0].mxu0
      %v2690 = vadd.f32 0.0, %v2689
      %v2691 = vpop.f32.mrb[0].mxu0
      %v2692 = vpop.f32.mrb[0].mxu0
      %v2693 = vadd.f32 0.0, %v2692
      %v2694 = vpop.f32.mrb[0].mxu0
      %2695 = vmatprep.mubr.bf16.mxu0 0
      %2696 = vmatmul.mubr.bf16.gmra.mrb[0].mxu0 %v2607
      %v2697 = vpop.f32.mrb[0].mxu0
      %v2698 = vadd.f32 0.0, %v2697
      %v2699 = vpop.f32.mrb[0].mxu0
      %v2700 = vpop.f32.mrb[0].mxu0
      %v2701 = vadd.f32 0.0, %v2700
      %v2702 = vpop.f32.mrb[0].mxu0
      %2703 = vmatprep.mubr.bf16.mxu0 0
      %2704 = vmatmul.mubr.bf16.gmra.mrb[0].mxu0 %v2610
      %v2705 = vpop.f32.mrb[0].mxu0
      %v2706 = vadd.f32 0.0, %v2705
      %v2707 = vpop.f32.mrb[0].mxu0
      %v2708 = vpop.f32.mrb[0].mxu0
      %v2709 = vadd.f32 0.0, %v2708
      %v2710 = vpop.f32.mrb[0].mxu0
      %2711 = vdwg.mxu0
      %v2712 = vadd.f32 %v2530, %v2650
      %v2713 = vadd.f32 %v2531, %v2653
      %v2714 = vadd.f32 %v2532, %v2658
      %v2715 = vadd.f32 %v2533, %v2661
      %v2716 = vadd.f32 %v2534, %v2666
      %v2717 = vadd.f32 %v2535, %v2669
      %v2718 = vadd.f32 %v2536, %v2674
      %v2719 = vadd.f32 %v2537, %v2677
      %v2720 = vadd.f32 %v2538, %v2682
      %v2721 = vadd.f32 %v2539, %v2685
      %v2722 = vadd.f32 %v2540, %v2690
      %v2723 = vadd.f32 %v2541, %v2693
      %v2724 = vadd.f32 %v2542, %v2698
      %v2725 = vadd.f32 %v2543, %v2701
      %v2726 = vadd.f32 %v2544, %v2706
      %v2727 = vadd.f32 %v2545, %v2709
      %2728 = vst.msk [vmem:[#allocation3] sm:$0xff] %vm594, %v2712
      %2729 = vst.msk [vmem:[#allocation3 + $0x8] sm:$0xff] %vm594, %v2713
      %2730 = vst.msk [vmem:[#allocation3 + $0x10] sm:$0xff] %vm594, %v2714
      %2731 = vst.msk [vmem:[#allocation3 + $0x18] sm:$0xff] %vm594, %v2715
      %2732 = vst.msk [vmem:[#allocation3 + $0x20] sm:$0xff] %vm594, %v2716
      %2733 = vst.msk [vmem:[#allocation3 + $0x28] sm:$0xff] %vm594, %v2717
      %2734 = vst.msk [vmem:[#allocation3 + $0x30] sm:$0xff] %vm594, %v2718
      %2735 = vst.msk [vmem:[#allocation3 + $0x38] sm:$0xff] %vm594, %v2719
      %2736 = vst.msk [vmem:[#allocation3 + $0x40] sm:$0xff] %vm594, %v2720
      %2737 = vst.msk [vmem:[#allocation3 + $0x48] sm:$0xff] %vm594, %v2721
      %2738 = vst.msk [vmem:[#allocation3 + $0x50] sm:$0xff] %vm594, %v2722
      %2739 = vst.msk [vmem:[#allocation3 + $0x58] sm:$0xff] %vm594, %v2723
      %2740 = vst.msk [vmem:[#allocation3 + $0x60] sm:$0xff] %vm594, %v2724
      %2741 = vst.msk [vmem:[#allocation3 + $0x68] sm:$0xff] %vm594, %v2725
      %2742 = vst.msk [vmem:[#allocation3 + $0x70] sm:$0xff] %vm594, %v2726
      %2743 = vst.msk [vmem:[#allocation3 + $0x78] sm:$0xff] %vm594, %v2727
      %v2744 = vld [vmem:[%s2513] sm:$0xf]
      %v2745 = vld [vmem:[%s2513 + $0x4] sm:$0xf]
      %v2746 = vld [vmem:[%s2513 + $0x8] sm:$0x1]
      %v2747 = vld [vmem:[%s2513 + $0xc] sm:$0xf]
      %v2748 = vld [vmem:[%s2513 + $0x10] sm:$0xf]
      %v2749 = vld [vmem:[%s2513 + $0x14] sm:$0x1]
      %v2750 = vld [vmem:[%s2513 + $0x18] sm:$0xf]
      %v2751 = vld [vmem:[%s2513 + $0x1c] sm:$0xf]
      %v2752 = vld [vmem:[%s2513 + $0x20] sm:$0x1]
      %v2753 = vld [vmem:[%s2513 + $0x24] sm:$0xf]
      %v2754 = vld [vmem:[%s2513 + $0x28] sm:$0xf]
      %v2755 = vld [vmem:[%s2513 + $0x2c] sm:$0x1]
      %v2756 = vld [vmem:[%s2513 + $0x30] sm:$0xf]
      %v2757 = vld [vmem:[%s2513 + $0x34] sm:$0xf]
      %v2758 = vld [vmem:[%s2513 + $0x38] sm:$0x1]
      %v2759 = vld [vmem:[%s2513 + $0x3c] sm:$0xf]
      %v2760 = vld [vmem:[%s2513 + $0x40] sm:$0xf]
      %v2761 = vld [vmem:[%s2513 + $0x44] sm:$0x1]
      %v2762 = vld [vmem:[%s2513 + $0x48] sm:$0xf]
      %v2763 = vld [vmem:[%s2513 + $0x4c] sm:$0xf]
      %v2764 = vld [vmem:[%s2513 + $0x50] sm:$0x1]
      %v2765 = vld [vmem:[%s2513 + $0x54] sm:$0xf]
      %v2766 = vld [vmem:[%s2513 + $0x58] sm:$0xf]
      %v2767 = vld [vmem:[%s2513 + $0x5c] sm:$0x1]
      %v2769 = vshrl.u32 %v2744, 16
      %v2771 = vrot.slane %v2769, 4
      %v2772 = vshll.u32 %v2744, 16
      %v2774 = vrot.slane %v2772, 5
      %v2775 = vor.u32 %v2771, %v2774
      %v2776 = vrot.slane %v2775, 4
      %v2778 = vshll.u32 %v2745, 16
      %v2780 = vrot.slane %v2778, 5
      %v2781 = vsel %vm871, %v2776, %v2780
      %v2782 = vshrl.u32 %v2745, 16
      %v2784 = vrot.slane %v2782, 4
      %v2785 = vor.u32 %v2784, %v2780
      %v2786 = vrot.slane %v2785, 4
      %v2788 = vshll.u32 %v2746, 16
      %v2790 = vrot.slane %v2788, 5
      %v2791 = vsel %vm871, %v2786, %v2790
      %v2793 = vshrl.u32 %v2747, 16
      %v2795 = vrot.slane %v2793, 4
      %v2796 = vshll.u32 %v2747, 16
      %v2798 = vrot.slane %v2796, 5
      %v2799 = vor.u32 %v2795, %v2798
      %v2800 = vrot.slane %v2799, 4
      %v2802 = vshll.u32 %v2748, 16
      %v2804 = vrot.slane %v2802, 5
      %v2805 = vsel %vm871, %v2800, %v2804
      %v2806 = vshrl.u32 %v2748, 16
      %v2808 = vrot.slane %v2806, 4
      %v2809 = vor.u32 %v2808, %v2804
      %v2810 = vrot.slane %v2809, 4
      %v2812 = vshll.u32 %v2749, 16
      %v2814 = vrot.slane %v2812, 5
      %v2815 = vsel %vm871, %v2810, %v2814
      %v2817 = vshrl.u32 %v2750, 16
      %v2819 = vrot.slane %v2817, 4
      %v2820 = vshll.u32 %v2750, 16
      %v2822 = vrot.slane %v2820, 5
      %v2823 = vor.u32 %v2819, %v2822
      %v2824 = vrot.slane %v2823, 4
      %v2826 = vshll.u32 %v2751, 16
      %v2828 = vrot.slane %v2826, 5
      %v2829 = vsel %vm871, %v2824, %v2828
      %v2830 = vshrl.u32 %v2751, 16
      %v2832 = vrot.slane %v2830, 4
      %v2833 = vor.u32 %v2832, %v2828
      %v2834 = vrot.slane %v2833, 4
      %v2836 = vshll.u32 %v2752, 16
      %v2838 = vrot.slane %v2836, 5
      %v2839 = vsel %vm871, %v2834, %v2838
      %v2841 = vshrl.u32 %v2753, 16
      %v2843 = vrot.slane %v2841, 4
      %v2844 = vshll.u32 %v2753, 16
      %v2846 = vrot.slane %v2844, 5
      %v2847 = vor.u32 %v2843, %v2846
      %v2848 = vrot.slane %v2847, 4
      %v2850 = vshll.u32 %v2754, 16
      %v2852 = vrot.slane %v2850, 5
      %v2853 = vsel %vm871, %v2848, %v2852
      %v2854 = vshrl.u32 %v2754, 16
      %v2856 = vrot.slane %v2854, 4
      %v2857 = vor.u32 %v2856, %v2852
      %v2858 = vrot.slane %v2857, 4
      %v2860 = vshll.u32 %v2755, 16
      %v2862 = vrot.slane %v2860, 5
      %v2863 = vsel %vm871, %v2858, %v2862
      %v2865 = vshrl.u32 %v2756, 16
      %v2867 = vrot.slane %v2865, 4
      %v2868 = vshll.u32 %v2756, 16
      %v2870 = vrot.slane %v2868, 5
      %v2871 = vor.u32 %v2867, %v2870
      %v2872 = vrot.slane %v2871, 4
      %v2874 = vshll.u32 %v2757, 16
      %v2876 = vrot.slane %v2874, 5
      %v2877 = vsel %vm871, %v2872, %v2876
      %v2878 = vshrl.u32 %v2757, 16
      %v2880 = vrot.slane %v2878, 4
      %v2881 = vor.u32 %v2880, %v2876
      %v2882 = vrot.slane %v2881, 4
      %v2884 = vshll.u32 %v2758, 16
      %v2886 = vrot.slane %v2884, 5
      %v2887 = vsel %vm871, %v2882, %v2886
      %v2889 = vshrl.u32 %v2759, 16
      %v2891 = vrot.slane %v2889, 4
      %v2892 = vshll.u32 %v2759, 16
      %v2894 = vrot.slane %v2892, 5
      %v2895 = vor.u32 %v2891, %v2894
      %v2896 = vrot.slane %v2895, 4
      %v2898 = vshll.u32 %v2760, 16
      %v2900 = vrot.slane %v2898, 5
      %v2901 = vsel %vm871, %v2896, %v2900
      %v2902 = vshrl.u32 %v2760, 16
      %v2904 = vrot.slane %v2902, 4
      %v2905 = vor.u32 %v2904, %v2900
      %v2906 = vrot.slane %v2905, 4
      %v2908 = vshll.u32 %v2761, 16
      %v2910 = vrot.slane %v2908, 5
      %v2911 = vsel %vm871, %v2906, %v2910
      %v2913 = vshrl.u32 %v2762, 16
      %v2915 = vrot.slane %v2913, 4
      %v2916 = vshll.u32 %v2762, 16
      %v2918 = vrot.slane %v2916, 5
      %v2919 = vor.u32 %v2915, %v2918
      %v2920 = vrot.slane %v2919, 4
      %v2922 = vshll.u32 %v2763, 16
      %v2924 = vrot.slane %v2922, 5
      %v2925 = vsel %vm871, %v2920, %v2924
      %v2926 = vshrl.u32 %v2763, 16
      %v2928 = vrot.slane %v2926, 4
      %v2929 = vor.u32 %v2928, %v2924
      %v2930 = vrot.slane %v2929, 4
      %v2932 = vshll.u32 %v2764, 16
      %v2934 = vrot.slane %v2932, 5
      %v2935 = vsel %vm871, %v2930, %v2934
      %v2937 = vshrl.u32 %v2765, 16
      %v2939 = vrot.slane %v2937, 4
      %v2940 = vshll.u32 %v2765, 16
      %v2942 = vrot.slane %v2940, 5
      %v2943 = vor.u32 %v2939, %v2942
      %v2944 = vrot.slane %v2943, 4
      %v2946 = vshll.u32 %v2766, 16
      %v2948 = vrot.slane %v2946, 5
      %v2949 = vsel %vm871, %v2944, %v2948
      %v2950 = vshrl.u32 %v2766, 16
      %v2952 = vrot.slane %v2950, 4
      %v2953 = vor.u32 %v2952, %v2948
      %v2954 = vrot.slane %v2953, 4
      %v2956 = vshll.u32 %v2767, 16
      %v2958 = vrot.slane %v2956, 5
      %v2959 = vsel %vm871, %v2954, %v2958
      %v2960 = vld [vmem:[#allocation3] sm:$0xff]
      %v2961 = vld [vmem:[#allocation3 + $0x8] sm:$0xff]
      %v2962 = vld [vmem:[#allocation3 + $0x10] sm:$0xff]
      %v2963 = vld [vmem:[#allocation3 + $0x18] sm:$0xff]
      %v2964 = vld [vmem:[#allocation3 + $0x20] sm:$0xff]
      %v2965 = vld [vmem:[#allocation3 + $0x28] sm:$0xff]
      %v2966 = vld [vmem:[#allocation3 + $0x30] sm:$0xff]
      %v2967 = vld [vmem:[#allocation3 + $0x38] sm:$0xff]
      %v2968 = vld [vmem:[#allocation3 + $0x40] sm:$0xff]
      %v2969 = vld [vmem:[#allocation3 + $0x48] sm:$0xff]
      %v2970 = vld [vmem:[#allocation3 + $0x50] sm:$0xff]
      %v2971 = vld [vmem:[#allocation3 + $0x58] sm:$0xff]
      %v2972 = vld [vmem:[#allocation3 + $0x60] sm:$0xff]
      %v2973 = vld [vmem:[#allocation3 + $0x68] sm:$0xff]
      %v2974 = vld [vmem:[#allocation3 + $0x70] sm:$0xff]
      %v2975 = vld [vmem:[#allocation3 + $0x78] sm:$0xff]
      %s2976 = scalar_lea.vmem %s1, 14
      %v2977 = vld [vmem:[%s2976] sm:$0x3]
      %v2978 = vunpack.c.l.b16 %v2781
      %v2979 = vunpack.c.l.b16 %v2791
      %v2980 = vunpack.c.l.b16 %v2805
      %v2981 = vunpack.c.l.b16 %v2815
      %v2982 = vunpack.c.l.b16 %v2829
      %v2983 = vunpack.c.l.b16 %v2839
      %v2984 = vunpack.c.l.b16 %v2853
      %v2985 = vunpack.c.l.b16 %v2863
      %v2986 = vunpack.c.l.b16 %v2877
      %v2987 = vunpack.c.l.b16 %v2887
      %v2988 = vunpack.c.l.b16 %v2901
      %v2989 = vunpack.c.l.b16 %v2911
      %v2990 = vunpack.c.l.b16 %v2925
      %v2991 = vunpack.c.l.b16 %v2935
      %v2992 = vunpack.c.l.b16 %v2949
      %v2993 = vunpack.c.l.b16 %v2959
      %v2994 = vpack.c.b16 %v2979, %v2978
      %v2995 = vpack.c.b16 %v2981, %v2980
      %v2996 = vpack.c.b16 %v2983, %v2982
      %v2997 = vpack.c.b16 %v2985, %v2984
      %v2998 = vpack.c.b16 %v2987, %v2986
      %v2999 = vpack.c.b16 %v2989, %v2988
      %v3000 = vpack.c.b16 %v2991, %v2990
      %v3001 = vpack.c.b16 %v2993, %v2992
      %v3003 = vsel %vm684, %v2994, 0
      %v3006 = vsel %vm684, %v2995, 0
      %v3009 = vsel %vm684, %v2996, 0
      %v3012 = vsel %vm684, %v2997, 0
      %v3015 = vsel %vm684, %v2998, 0
      %v3018 = vsel %vm684, %v2999, 0
      %v3021 = vsel %vm684, %v3000, 0
      %v3024 = vsel %vm684, %v3001, 0
      %v3027 = vand.u32 %v2977, %v712
      %3029 = vmatprep.subr.bf16.mxu0 0
      %3030 = vmatpush1.bf16.msra.mxu0 %v3027
      %3031 = vmatprep.subr.bf16.mxu0 0
      %3032 = vmatpush1.bf16.msra.mxu0 0
      %3033 = vmatprep.subr.bf16.mxu0 0
      %3034 = vmatpush1.bf16.msra.mxu0 0
      %3035 = vmatprep.subr.bf16.mxu0 0
      %3036 = vmatpush1.bf16.msra.mxu0 0
      %3037 = vmatprep.subr.bf16.mxu0 0
      %3038 = vmatpush1.bf16.msra.mxu0 0
      %3039 = vmatprep.subr.bf16.mxu0 0
      %3040 = vmatpush1.bf16.msra.mxu0 0
      %3041 = vmatprep.subr.bf16.mxu0 0
      %3042 = vmatpush1.bf16.msra.mxu0 0
      %3043 = vmatprep.subr.bf16.mxu0 0
      %3044 = vmatpush1.bf16.msra.mxu0 0
      %3045 = vmatprep.subr.bf16.mxu0 0
      %3046 = vmatpush1.bf16.msra.mxu0 0
      %3047 = vmatprep.subr.bf16.mxu0 0
      %3048 = vmatpush1.bf16.msra.mxu0 0
      %3049 = vmatprep.subr.bf16.mxu0 0
      %3050 = vmatpush1.bf16.msra.mxu0 0
      %3051 = vmatprep.subr.bf16.mxu0 0
      %3052 = vmatpush1.bf16.msra.mxu0 0
      %3053 = vmatprep.subr.bf16.mxu0 0
      %3054 = vmatpush1.bf16.msra.mxu0 0
      %3055 = vmatprep.subr.bf16.mxu0 0
      %3056 = vmatpush1.bf16.msra.mxu0 0
      %3057 = vmatprep.subr.bf16.mxu0 0
      %3058 = vmatpush1.bf16.msra.mxu0 0
      %3059 = vmatprep.subr.bf16.mxu0 0
      %3060 = vmatpush1.bf16.msra.mxu0 0
      %3061 = vmatprep.mubr.bf16.mxu0 0
      %3062 = vmatmul.mubr.bf16.gmra.mrb[0].mxu0 %v3003
      %v3063 = vpop.f32.mrb[0].mxu0
      %v3064 = vadd.f32 0.0, %v3063
      %v3065 = vpop.f32.mrb[0].mxu0
      %v3066 = vpop.f32.mrb[0].mxu0
      %v3067 = vadd.f32 0.0, %v3066
      %v3068 = vpop.f32.mrb[0].mxu0
      %3069 = vmatprep.mubr.bf16.mxu0 0
      %3070 = vmatmul.mubr.bf16.gmra.mrb[0].mxu0 %v3006
      %v3071 = vpop.f32.mrb[0].mxu0
      %v3072 = vadd.f32 0.0, %v3071
      %v3073 = vpop.f32.mrb[0].mxu0
      %v3074 = vpop.f32.mrb[0].mxu0
      %v3075 = vadd.f32 0.0, %v3074
      %v3076 = vpop.f32.mrb[0].mxu0
      %3077 = vmatprep.mubr.bf16.mxu0 0
      %3078 = vmatmul.mubr.bf16.gmra.mrb[0].mxu0 %v3009
      %v3079 = vpop.f32.mrb[0].mxu0
      %v3080 = vadd.f32 0.0, %v3079
      %v3081 = vpop.f32.mrb[0].mxu0
      %v3082 = vpop.f32.mrb[0].mxu0
      %v3083 = vadd.f32 0.0, %v3082
      %v3084 = vpop.f32.mrb[0].mxu0
      %3085 = vmatprep.mubr.bf16.mxu0 0
      %3086 = vmatmul.mubr.bf16.gmra.mrb[0].mxu0 %v3012
      %v3087 = vpop.f32.mrb[0].mxu0
      %v3088 = vadd.f32 0.0, %v3087
      %v3089 = vpop.f32.mrb[0].mxu0
      %v3090 = vpop.f32.mrb[0].mxu0
      %v3091 = vadd.f32 0.0, %v3090
      %v3092 = vpop.f32.mrb[0].mxu0
      %3093 = vmatprep.mubr.bf16.mxu0 0
      %3094 = vmatmul.mubr.bf16.gmra.mrb[0].mxu0 %v3015
      %v3095 = vpop.f32.mrb[0].mxu0
      %v3096 = vadd.f32 0.0, %v3095
      %v3097 = vpop.f32.mrb[0].mxu0
      %v3098 = vpop.f32.mrb[0].mxu0
      %v3099 = vadd.f32 0.0, %v3098
      %v3100 = vpop.f32.mrb[0].mxu0
      %3101 = vmatprep.mubr.bf16.mxu0 0
      %3102 = vmatmul.mubr.bf16.gmra.mrb[0].mxu0 %v3018
      %v3103 = vpop.f32.mrb[0].mxu0
      %v3104 = vadd.f32 0.0, %v3103
      %v3105 = vpop.f32.mrb[0].mxu0
      %v3106 = vpop.f32.mrb[0].mxu0
      %v3107 = vadd.f32 0.0, %v3106
      %v3108 = vpop.f32.mrb[0].mxu0
      %3109 = vmatprep.mubr.bf16.mxu0 0
      %3110 = vmatmul.mubr.bf16.gmra.mrb[0].mxu0 %v3021
      %v3111 = vpop.f32.mrb[0].mxu0
      %v3112 = vadd.f32 0.0, %v3111
      %v3113 = vpop.f32.mrb[0].mxu0
      %v3114 = vpop.f32.mrb[0].mxu0
      %v3115 = vadd.f32 0.0, %v3114
      %v3116 = vpop.f32.mrb[0].mxu0
      %3117 = vmatprep.mubr.bf16.mxu0 0
      %3118 = vmatmul.mubr.bf16.gmra.mrb[0].mxu0 %v3024
      %v3119 = vpop.f32.mrb[0].mxu0
      %v3120 = vadd.f32 0.0, %v3119
      %v3121 = vpop.f32.mrb[0].mxu0
      %v3122 = vpop.f32.mrb[0].mxu0
      %v3123 = vadd.f32 0.0, %v3122
      %v3124 = vpop.f32.mrb[0].mxu0
      %3125 = vdwg.mxu0
      %v3126 = vadd.f32 %v2960, %v3064
      %v3127 = vadd.f32 %v2961, %v3067
      %v3128 = vadd.f32 %v2962, %v3072
      %v3129 = vadd.f32 %v2963, %v3075
      %v3130 = vadd.f32 %v2964, %v3080
      %v3131 = vadd.f32 %v2965, %v3083
      %v3132 = vadd.f32 %v2966, %v3088
      %v3133 = vadd.f32 %v2967, %v3091
      %v3134 = vadd.f32 %v2968, %v3096
      %v3135 = vadd.f32 %v2969, %v3099
      %v3136 = vadd.f32 %v2970, %v3104
      %v3137 = vadd.f32 %v2971, %v3107
      %v3138 = vadd.f32 %v2972, %v3112
      %v3139 = vadd.f32 %v2973, %v3115
      %v3140 = vadd.f32 %v2974, %v3120
      %v3141 = vadd.f32 %v2975, %v3123
      %3142 = vst.msk [vmem:[#allocation3] sm:$0xff] %vm594, %v3126
      %3143 = vst.msk [vmem:[#allocation3 + $0x8] sm:$0xff] %vm594, %v3127
      %3144 = vst.msk [vmem:[#allocation3 + $0x10] sm:$0xff] %vm594, %v3128
      %3145 = vst.msk [vmem:[#allocation3 + $0x18] sm:$0xff] %vm594, %v3129
      %3146 = vst.msk [vmem:[#allocation3 + $0x20] sm:$0xff] %vm594, %v3130
      %3147 = vst.msk [vmem:[#allocation3 + $0x28] sm:$0xff] %vm594, %v3131
      %3148 = vst.msk [vmem:[#allocation3 + $0x30] sm:$0xff] %vm594, %v3132
      %3149 = vst.msk [vmem:[#allocation3 + $0x38] sm:$0xff] %vm594, %v3133
      %3150 = vst.msk [vmem:[#allocation3 + $0x40] sm:$0xff] %vm594, %v3134
      %3151 = vst.msk [vmem:[#allocation3 + $0x48] sm:$0xff] %vm594, %v3135
      %3152 = vst.msk [vmem:[#allocation3 + $0x50] sm:$0xff] %vm594, %v3136
      %3153 = vst.msk [vmem:[#allocation3 + $0x58] sm:$0xff] %vm594, %v3137
      %3154 = vst.msk [vmem:[#allocation3 + $0x60] sm:$0xff] %vm594, %v3138
      %3155 = vst.msk [vmem:[#allocation3 + $0x68] sm:$0xff] %vm594, %v3139
      %3156 = vst.msk [vmem:[#allocation3 + $0x70] sm:$0xff] %vm594, %v3140
      %3157 = vst.msk [vmem:[#allocation3 + $0x78] sm:$0xff] %vm594, %v3141
      %v3158 = vld [vmem:[%s2513] sm:$0xe]
      %v3159 = vld [vmem:[%s2513 + $0x4] sm:$0xf]
      %v3160 = vld [vmem:[%s2513 + $0x8] sm:$0x1]
      %v3161 = vld [vmem:[%s2513 + $0xc] sm:$0xe]
      %v3162 = vld [vmem:[%s2513 + $0x10] sm:$0xf]
      %v3163 = vld [vmem:[%s2513 + $0x14] sm:$0x1]
      %v3164 = vld [vmem:[%s2513 + $0x18] sm:$0xe]
      %v3165 = vld [vmem:[%s2513 + $0x1c] sm:$0xf]
      %v3166 = vld [vmem:[%s2513 + $0x20] sm:$0x1]
      %v3167 = vld [vmem:[%s2513 + $0x24] sm:$0xe]
      %v3168 = vld [vmem:[%s2513 + $0x28] sm:$0xf]
      %v3169 = vld [vmem:[%s2513 + $0x2c] sm:$0x1]
      %v3170 = vld [vmem:[%s2513 + $0x30] sm:$0xe]
      %v3171 = vld [vmem:[%s2513 + $0x34] sm:$0xf]
      %v3172 = vld [vmem:[%s2513 + $0x38] sm:$0x1]
      %v3173 = vld [vmem:[%s2513 + $0x3c] sm:$0xe]
      %v3174 = vld [vmem:[%s2513 + $0x40] sm:$0xf]
      %v3175 = vld [vmem:[%s2513 + $0x44] sm:$0x1]
      %v3176 = vld [vmem:[%s2513 + $0x48] sm:$0xe]
      %v3177 = vld [vmem:[%s2513 + $0x4c] sm:$0xf]
      %v3178 = vld [vmem:[%s2513 + $0x50] sm:$0x1]
      %v3179 = vld [vmem:[%s2513 + $0x54] sm:$0xe]
      %v3180 = vld [vmem:[%s2513 + $0x58] sm:$0xf]
      %v3181 = vld [vmem:[%s2513 + $0x5c] sm:$0x1]
      %v3206 = vrot.slane %v3158, 5
      %v3207 = vrot.slane %v3206, 4
      %v3208 = vrot.slane %v3159, 5
      %v3209 = vsel %vm1312, %v3207, %v3208
      %v3210 = vrot.slane %v3208, 4
      %v3211 = vrot.slane %v3160, 5
      %v3212 = vsel %vm1312, %v3210, %v3211
      %v3213 = vrot.slane %v3161, 5
      %v3214 = vrot.slane %v3213, 4
      %v3215 = vrot.slane %v3162, 5
      %v3216 = vsel %vm1312, %v3214, %v3215
      %v3217 = vrot.slane %v3215, 4
      %v3218 = vrot.slane %v3163, 5
      %v3219 = vsel %vm1312, %v3217, %v3218
      %v3220 = vrot.slane %v3164, 5
      %v3221 = vrot.slane %v3220, 4
      %v3222 = vrot.slane %v3165, 5
      %v3223 = vsel %vm1312, %v3221, %v3222
      %v3224 = vrot.slane %v3222, 4
      %v3225 = vrot.slane %v3166, 5
      %v3226 = vsel %vm1312, %v3224, %v3225
      %v3227 = vrot.slane %v3167, 5
      %v3228 = vrot.slane %v3227, 4
      %v3229 = vrot.slane %v3168, 5
      %v3230 = vsel %vm1312, %v3228, %v3229
      %v3231 = vrot.slane %v3229, 4
      %v3232 = vrot.slane %v3169, 5
      %v3233 = vsel %vm1312, %v3231, %v3232
      %v3234 = vrot.slane %v3170, 5
      %v3235 = vrot.slane %v3234, 4
      %v3236 = vrot.slane %v3171, 5
      %v3237 = vsel %vm1312, %v3235, %v3236
      %v3238 = vrot.slane %v3236, 4
      %v3239 = vrot.slane %v3172, 5
      %v3240 = vsel %vm1312, %v3238, %v3239
      %v3241 = vrot.slane %v3173, 5
      %v3242 = vrot.slane %v3241, 4
      %v3243 = vrot.slane %v3174, 5
      %v3244 = vsel %vm1312, %v3242, %v3243
      %v3245 = vrot.slane %v3243, 4
      %v3246 = vrot.slane %v3175, 5
      %v3247 = vsel %vm1312, %v3245, %v3246
      %v3248 = vrot.slane %v3176, 5
      %v3249 = vrot.slane %v3248, 4
      %v3250 = vrot.slane %v3177, 5
      %v3251 = vsel %vm1312, %v3249, %v3250
      %v3252 = vrot.slane %v3250, 4
      %v3253 = vrot.slane %v3178, 5
      %v3254 = vsel %vm1312, %v3252, %v3253
      %v3255 = vrot.slane %v3179, 5
      %v3256 = vrot.slane %v3255, 4
      %v3257 = vrot.slane %v3180, 5
      %v3258 = vsel %vm1312, %v3256, %v3257
      %v3259 = vrot.slane %v3257, 4
      %v3260 = vrot.slane %v3181, 5
      %v3261 = vsel %vm1312, %v3259, %v3260
      %v3262 = vld [vmem:[#allocation3] sm:$0xff]
      %v3263 = vld [vmem:[#allocation3 + $0x8] sm:$0xff]
      %v3264 = vld [vmem:[#allocation3 + $0x10] sm:$0xff]
      %v3265 = vld [vmem:[#allocation3 + $0x18] sm:$0xff]
      %v3266 = vld [vmem:[#allocation3 + $0x20] sm:$0xff]
      %v3267 = vld [vmem:[#allocation3 + $0x28] sm:$0xff]
      %v3268 = vld [vmem:[#allocation3 + $0x30] sm:$0xff]
      %v3269 = vld [vmem:[#allocation3 + $0x38] sm:$0xff]
      %v3270 = vld [vmem:[#allocation3 + $0x40] sm:$0xff]
      %v3271 = vld [vmem:[#allocation3 + $0x48] sm:$0xff]
      %v3272 = vld [vmem:[#allocation3 + $0x50] sm:$0xff]
      %v3273 = vld [vmem:[#allocation3 + $0x58] sm:$0xff]
      %v3274 = vld [vmem:[#allocation3 + $0x60] sm:$0xff]
      %v3275 = vld [vmem:[#allocation3 + $0x68] sm:$0xff]
      %v3276 = vld [vmem:[#allocation3 + $0x70] sm:$0xff]
      %v3277 = vld [vmem:[#allocation3 + $0x78] sm:$0xff]
      %s3278 = scalar_lea.vmem %s1, 16
      %v3279 = vld [vmem:[%s3278] sm:$0x3]
      %v3280 = vunpack.c.l.b16 %v3209
      %v3281 = vunpack.c.l.b16 %v3212
      %v3282 = vunpack.c.l.b16 %v3216
      %v3283 = vunpack.c.l.b16 %v3219
      %v3284 = vunpack.c.l.b16 %v3223
      %v3285 = vunpack.c.l.b16 %v3226
      %v3286 = vunpack.c.l.b16 %v3230
      %v3287 = vunpack.c.l.b16 %v3233
      %v3288 = vunpack.c.l.b16 %v3237
      %v3289 = vunpack.c.l.b16 %v3240
      %v3290 = vunpack.c.l.b16 %v3244
      %v3291 = vunpack.c.l.b16 %v3247
      %v3292 = vunpack.c.l.b16 %v3251
      %v3293 = vunpack.c.l.b16 %v3254
      %v3294 = vunpack.c.l.b16 %v3258
      %v3295 = vunpack.c.l.b16 %v3261
      %v3296 = vpack.c.b16 %v3281, %v3280
      %v3297 = vpack.c.b16 %v3283, %v3282
      %v3298 = vpack.c.b16 %v3285, %v3284
      %v3299 = vpack.c.b16 %v3287, %v3286
      %v3300 = vpack.c.b16 %v3289, %v3288
      %v3301 = vpack.c.b16 %v3291, %v3290
      %v3302 = vpack.c.b16 %v3293, %v3292
      %v3303 = vpack.c.b16 %v3295, %v3294
      %v3305 = vsel %vm684, %v3296, 0
      %v3308 = vsel %vm684, %v3297, 0
      %v3311 = vsel %vm684, %v3298, 0
      %v3314 = vsel %vm684, %v3299, 0
      %v3317 = vsel %vm684, %v3300, 0
      %v3320 = vsel %vm684, %v3301, 0
      %v3323 = vsel %vm684, %v3302, 0
      %v3326 = vsel %vm684, %v3303, 0
      %v3329 = vand.u32 %v3279, %v712
      %3331 = vmatprep.subr.bf16.mxu0 0
      %3332 = vmatpush1.bf16.msra.mxu0 %v3329
      %3333 = vmatprep.subr.bf16.mxu0 0
      %3334 = vmatpush1.bf16.msra.mxu0 0
      %3335 = vmatprep.subr.bf16.mxu0 0
      %3336 = vmatpush1.bf16.msra.mxu0 0
      %3337 = vmatprep.subr.bf16.mxu0 0
      %3338 = vmatpush1.bf16.msra.mxu0 0
      %3339 = vmatprep.subr.bf16.mxu0 0
      %3340 = vmatpush1.bf16.msra.mxu0 0
      %3341 = vmatprep.subr.bf16.mxu0 0
      %3342 = vmatpush1.bf16.msra.mxu0 0
      %3343 = vmatprep.subr.bf16.mxu0 0
      %3344 = vmatpush1.bf16.msra.mxu0 0
      %3345 = vmatprep.subr.bf16.mxu0 0
      %3346 = vmatpush1.bf16.msra.mxu0 0
      %3347 = vmatprep.subr.bf16.mxu0 0
      %3348 = vmatpush1.bf16.msra.mxu0 0
      %3349 = vmatprep.subr.bf16.mxu0 0
      %3350 = vmatpush1.bf16.msra.mxu0 0
      %3351 = vmatprep.subr.bf16.mxu0 0
      %3352 = vmatpush1.bf16.msra.mxu0 0
      %3353 = vmatprep.subr.bf16.mxu0 0
      %3354 = vmatpush1.bf16.msra.mxu0 0
      %3355 = vmatprep.subr.bf16.mxu0 0
      %3356 = vmatpush1.bf16.msra.mxu0 0
      %3357 = vmatprep.subr.bf16.mxu0 0
      %3358 = vmatpush1.bf16.msra.mxu0 0
      %3359 = vmatprep.subr.bf16.mxu0 0
      %3360 = vmatpush1.bf16.msra.mxu0 0
      %3361 = vmatprep.subr.bf16.mxu0 0
      %3362 = vmatpush1.bf16.msra.mxu0 0
      %3363 = vmatprep.mubr.bf16.mxu0 0
      %3364 = vmatmul.mubr.bf16.gmra.mrb[0].mxu0 %v3305
      %v3365 = vpop.f32.mrb[0].mxu0
      %v3366 = vadd.f32 0.0, %v3365
      %v3367 = vpop.f32.mrb[0].mxu0
      %v3368 = vpop.f32.mrb[0].mxu0
      %v3369 = vadd.f32 0.0, %v3368
      %v3370 = vpop.f32.mrb[0].mxu0
      %3371 = vmatprep.mubr.bf16.mxu0 0
      %3372 = vmatmul.mubr.bf16.gmra.mrb[0].mxu0 %v3308
      %v3373 = vpop.f32.mrb[0].mxu0
      %v3374 = vadd.f32 0.0, %v3373
      %v3375 = vpop.f32.mrb[0].mxu0
      %v3376 = vpop.f32.mrb[0].mxu0
      %v3377 = vadd.f32 0.0, %v3376
      %v3378 = vpop.f32.mrb[0].mxu0
      %3379 = vmatprep.mubr.bf16.mxu0 0
      %3380 = vmatmul.mubr.bf16.gmra.mrb[0].mxu0 %v3311
      %v3381 = vpop.f32.mrb[0].mxu0
      %v3382 = vadd.f32 0.0, %v3381
      %v3383 = vpop.f32.mrb[0].mxu0
      %v3384 = vpop.f32.mrb[0].mxu0
      %v3385 = vadd.f32 0.0, %v3384
      %v3386 = vpop.f32.mrb[0].mxu0
      %3387 = vmatprep.mubr.bf16.mxu0 0
      %3388 = vmatmul.mubr.bf16.gmra.mrb[0].mxu0 %v3314
      %v3389 = vpop.f32.mrb[0].mxu0
      %v3390 = vadd.f32 0.0, %v3389
      %v3391 = vpop.f32.mrb[0].mxu0
      %v3392 = vpop.f32.mrb[0].mxu0
      %v3393 = vadd.f32 0.0, %v3392
      %v3394 = vpop.f32.mrb[0].mxu0
      %3395 = vmatprep.mubr.bf16.mxu0 0
      %3396 = vmatmul.mubr.bf16.gmra.mrb[0].mxu0 %v3317
      %v3397 = vpop.f32.mrb[0].mxu0
      %v3398 = vadd.f32 0.0, %v3397
      %v3399 = vpop.f32.mrb[0].mxu0
      %v3400 = vpop.f32.mrb[0].mxu0
      %v3401 = vadd.f32 0.0, %v3400
      %v3402 = vpop.f32.mrb[0].mxu0
      %3403 = vmatprep.mubr.bf16.mxu0 0
      %3404 = vmatmul.mubr.bf16.gmra.mrb[0].mxu0 %v3320
      %v3405 = vpop.f32.mrb[0].mxu0
      %v3406 = vadd.f32 0.0, %v3405
      %v3407 = vpop.f32.mrb[0].mxu0
      %v3408 = vpop.f32.mrb[0].mxu0
      %v3409 = vadd.f32 0.0, %v3408
      %v3410 = vpop.f32.mrb[0].mxu0
      %3411 = vmatprep.mubr.bf16.mxu0 0
      %3412 = vmatmul.mubr.bf16.gmra.mrb[0].mxu0 %v3323
      %v3413 = vpop.f32.mrb[0].mxu0
      %v3414 = vadd.f32 0.0, %v3413
      %v3415 = vpop.f32.mrb[0].mxu0
      %v3416 = vpop.f32.mrb[0].mxu0
      %v3417 = vadd.f32 0.0, %v3416
      %v3418 = vpop.f32.mrb[0].mxu0
      %3419 = vmatprep.mubr.bf16.mxu0 0
      %3420 = vmatmul.mubr.bf16.gmra.mrb[0].mxu0 %v3326
      %v3421 = vpop.f32.mrb[0].mxu0
      %v3422 = vadd.f32 0.0, %v3421
      %v3423 = vpop.f32.mrb[0].mxu0
      %v3424 = vpop.f32.mrb[0].mxu0
      %v3425 = vadd.f32 0.0, %v3424
      %v3426 = vpop.f32.mrb[0].mxu0
      %3427 = vdwg.mxu0
      %v3428 = vadd.f32 %v3262, %v3366
      %v3429 = vadd.f32 %v3263, %v3369
      %v3430 = vadd.f32 %v3264, %v3374
      %v3431 = vadd.f32 %v3265, %v3377
      %v3432 = vadd.f32 %v3266, %v3382
      %v3433 = vadd.f32 %v3267, %v3385
      %v3434 = vadd.f32 %v3268, %v3390
      %v3435 = vadd.f32 %v3269, %v3393
      %v3436 = vadd.f32 %v3270, %v3398
      %v3437 = vadd.f32 %v3271, %v3401
      %v3438 = vadd.f32 %v3272, %v3406
      %v3439 = vadd.f32 %v3273, %v3409
      %v3440 = vadd.f32 %v3274, %v3414
      %v3441 = vadd.f32 %v3275, %v3417
      %v3442 = vadd.f32 %v3276, %v3422
      %v3443 = vadd.f32 %v3277, %v3425
      %3444 = vst.msk [vmem:[#allocation3] sm:$0xff] %vm594, %v3428
      %3445 = vst.msk [vmem:[#allocation3 + $0x8] sm:$0xff] %vm594, %v3429
      %3446 = vst.msk [vmem:[#allocation3 + $0x10] sm:$0xff] %vm594, %v3430
      %3447 = vst.msk [vmem:[#allocation3 + $0x18] sm:$0xff] %vm594, %v3431
      %3448 = vst.msk [vmem:[#allocation3 + $0x20] sm:$0xff] %vm594, %v3432
      %3449 = vst.msk [vmem:[#allocation3 + $0x28] sm:$0xff] %vm594, %v3433
      %3450 = vst.msk [vmem:[#allocation3 + $0x30] sm:$0xff] %vm594, %v3434
      %3451 = vst.msk [vmem:[#allocation3 + $0x38] sm:$0xff] %vm594, %v3435
      %3452 = vst.msk [vmem:[#allocation3 + $0x40] sm:$0xff] %vm594, %v3436
      %3453 = vst.msk [vmem:[#allocation3 + $0x48] sm:$0xff] %vm594, %v3437
      %3454 = vst.msk [vmem:[#allocation3 + $0x50] sm:$0xff] %vm594, %v3438
      %3455 = vst.msk [vmem:[#allocation3 + $0x58] sm:$0xff] %vm594, %v3439
      %3456 = vst.msk [vmem:[#allocation3 + $0x60] sm:$0xff] %vm594, %v3440
      %3457 = vst.msk [vmem:[#allocation3 + $0x68] sm:$0xff] %vm594, %v3441
      %3458 = vst.msk [vmem:[#allocation3 + $0x70] sm:$0xff] %vm594, %v3442
      %3459 = vst.msk [vmem:[#allocation3 + $0x78] sm:$0xff] %vm594, %v3443
      %v3460 = vld [vmem:[#allocation3] sm:$0xff]
      %v3461 = vld [vmem:[#allocation3 + $0x8] sm:$0xff]
      %v3462 = vld [vmem:[#allocation3 + $0x10] sm:$0xff]
      %v3463 = vld [vmem:[#allocation3 + $0x18] sm:$0xff]
      %v3464 = vld [vmem:[#allocation3 + $0x20] sm:$0xff]
      %v3465 = vld [vmem:[#allocation3 + $0x28] sm:$0xff]
      %v3466 = vld [vmem:[#allocation3 + $0x30] sm:$0xff]
      %v3467 = vld [vmem:[#allocation3 + $0x38] sm:$0xff]
      %v3468 = vld [vmem:[#allocation3 + $0x40] sm:$0xff]
      %v3469 = vld [vmem:[#allocation3 + $0x48] sm:$0xff]
      %v3470 = vld [vmem:[#allocation3 + $0x50] sm:$0xff]
      %v3471 = vld [vmem:[#allocation3 + $0x58] sm:$0xff]
      %v3472 = vld [vmem:[#allocation3 + $0x60] sm:$0xff]
      %v3473 = vld [vmem:[#allocation3 + $0x68] sm:$0xff]
      %v3474 = vld [vmem:[#allocation3 + $0x70] sm:$0xff]
      %v3475 = vld [vmem:[#allocation3 + $0x78] sm:$0xff]
      %v3476 = vmax.f32 %v3460, 0.0
      %v3477 = vmax.f32 %v3461, 0.0
      %v3478 = vmax.f32 %v3462, 0.0
      %v3479 = vmax.f32 %v3463, 0.0
      %v3480 = vmax.f32 %v3464, 0.0
      %v3481 = vmax.f32 %v3465, 0.0
      %v3482 = vmax.f32 %v3466, 0.0
      %v3483 = vmax.f32 %v3467, 0.0
      %v3484 = vmax.f32 %v3468, 0.0
      %v3485 = vmax.f32 %v3469, 0.0
      %v3486 = vmax.f32 %v3470, 0.0
      %v3487 = vmax.f32 %v3471, 0.0
      %v3488 = vmax.f32 %v3472, 0.0
      %v3489 = vmax.f32 %v3473, 0.0
      %v3490 = vmax.f32 %v3474, 0.0
      %v3491 = vmax.f32 %v3475, 0.0
      %v3492 = vpack.c.bf16 %v3477, %v3476
      %v3493 = vpack.c.bf16 %v3479, %v3478
      %v3494 = vpack.c.bf16 %v3481, %v3480
      %v3495 = vpack.c.bf16 %v3483, %v3482
      %v3496 = vpack.c.bf16 %v3485, %v3484
      %v3497 = vpack.c.bf16 %v3487, %v3486
      %v3498 = vpack.c.bf16 %v3489, %v3488
      %v3499 = vpack.c.bf16 %v3491, %v3490
      %v3508 = vunpack.c.l.b16 %v3492
      %v3509 = vunpack.c.h.b16 %v3492
      %v3510 = vunpack.c.l.b16 %v3493
      %v3511 = vunpack.c.h.b16 %v3493
      %v3512 = vunpack.c.l.b16 %v3494
      %v3513 = vunpack.c.h.b16 %v3494
      %v3514 = vunpack.c.l.b16 %v3495
      %v3515 = vunpack.c.h.b16 %v3495
      %v3516 = vunpack.c.l.b16 %v3496
      %v3517 = vunpack.c.h.b16 %v3496
      %v3518 = vunpack.c.l.b16 %v3497
      %v3519 = vunpack.c.h.b16 %v3497
      %v3520 = vunpack.c.l.b16 %v3498
      %v3521 = vunpack.c.h.b16 %v3498
      %v3522 = vunpack.c.l.b16 %v3499
      %v3523 = vunpack.c.h.b16 %v3499
      %v3524 = vpack.c.b16 %v3508, %v3508
      %v3525 = vpack.c.b16 %v3509, %v3509
      %v3526 = vpack.c.b16 %v3510, %v3510
      %v3527 = vpack.c.b16 %v3511, %v3511
      %v3528 = vpack.c.b16 %v3512, %v3512
      %v3529 = vpack.c.b16 %v3513, %v3513
      %v3530 = vpack.c.b16 %v3514, %v3514
      %v3531 = vpack.c.b16 %v3515, %v3515
      %v3532 = vpack.c.b16 %v3516, %v3516
      %v3533 = vpack.c.b16 %v3517, %v3517
      %v3534 = vpack.c.b16 %v3518, %v3518
      %v3535 = vpack.c.b16 %v3519, %v3519
      %v3536 = vpack.c.b16 %v3520, %v3520
      %v3537 = vpack.c.b16 %v3521, %v3521
      %v3538 = vpack.c.b16 %v3522, %v3522
      %v3539 = vpack.c.b16 %v3523, %v3523
      %vm3556 = vcmask 60416
      %3557 = vst.msk [vmem:[%s194] sm:$0xf] %vm3556, %v3524
      %3558 = vst.msk [vmem:[%s194 + $0x4] sm:$0xf] %vm3556, %v3525
      %3559 = vst.msk [vmem:[%s194 + $0x8] sm:$0xf] %vm3556, %v3526
      %3560 = vst.msk [vmem:[%s194 + $0xc] sm:$0xf] %vm3556, %v3527
      %3561 = vst.msk [vmem:[%s194 + $0x10] sm:$0xf] %vm3556, %v3528
      %3562 = vst.msk [vmem:[%s194 + $0x14] sm:$0xf] %vm3556, %v3529
      %3563 = vst.msk [vmem:[%s194 + $0x18] sm:$0xf] %vm3556, %v3530
      %3564 = vst.msk [vmem:[%s194 + $0x1c] sm:$0xf] %vm3556, %v3531
      %3565 = vst.msk [vmem:[%s194 + $0x20] sm:$0xf] %vm3556, %v3532
      %3566 = vst.msk [vmem:[%s194 + $0x24] sm:$0xf] %vm3556, %v3533
      %3567 = vst.msk [vmem:[%s194 + $0x28] sm:$0xf] %vm3556, %v3534
      %3568 = vst.msk [vmem:[%s194 + $0x2c] sm:$0xf] %vm3556, %v3535
      %3569 = vst.msk [vmem:[%s194 + $0x30] sm:$0xf] %vm3556, %v3536
      %3570 = vst.msk [vmem:[%s194 + $0x34] sm:$0xf] %vm3556, %v3537
      %3571 = vst.msk [vmem:[%s194 + $0x38] sm:$0xf] %vm3556, %v3538
      %3572 = vst.msk [vmem:[%s194 + $0x3c] sm:$0xf] %vm3556, %v3539
      %s3573 = smul.u32 8, %s19
      %p3574 = scmp.lt.s32.totalorder %s18, 1
      %s3575 = scalar_select %p3574, %s18, 1
      %p3576 = scmp.lt.s32.totalorder %s3573, 15
      %s3577 = scalar_select %p3576, %s3573, 15
      %s3578 = smul.addr %s3577, 2
      %s3579 = smul.addr %s3575, 32
      %s3580 = sadd.s32 %s3578, %s3579
      %s3581 = smul.addr %s3580, 4
      %s3582 = scalar_lea.vmem %s3, %s3581
      // Predicated region
      $region33: #{tpu_custom_call.1} parent=31 // pred_check
        %p3583 = pneg %p114
      $region34: #{tpu_custom_call.1} parent=31 // pred_check_branch
        %3585 = sbr.rel (%p3583) target = $region36
      $region35: #{tpu_custom_call.1} parent=31 // pred_region
        %s3586 = smul.u32 8, %s19
      $region36: #{tpu_custom_call.1} parent=31 // pred_fallthru
        _
    $region32: #{tpu_custom_call.1} parent=5 // pred_fallthru
      _
    %p3587 = scmp.le.s32.totalorder 2, %s9
    // Predicated region
    $region37: #{tpu_custom_call.1} parent=5 // pred_check
      %p3588 = pneg %p3587
    $region38: #{tpu_custom_call.1} parent=5 // pred_check_branch
      %3590 = sbr.rel (%p3588) target = $region40
    $region39: #{tpu_custom_call.1} parent=5 // pred_region
      %s3591 = ssub.s32 %s9, 2
      // Predicated region
      $region41: #{tpu_custom_call.1} parent=39 // pred_check
        %p3592 = pneg %p120
      $region42: #{tpu_custom_call.1} parent=39 // pred_check_branch
        %3594 = sbr.rel (%p3592) target = $region44
      $region43: #{tpu_custom_call.1} parent=39 // pred_region
        %s3595 = smul.u32 8, %s21
        %p3596 = scmp.lt.s32.totalorder %s20, 1
        %s3597 = scalar_select %p3596, %s20, 1
        %p3598 = scmp.lt.s32.totalorder %s3595, 15
        %s3599 = scalar_select %p3598, %s3595, 15
        %s3600 = smul.addr %s3599, 2
        %s3601 = smul.addr %s3597, 32
        %s3602 = sadd.s32 %s3600, %s3601
        %s3603 = smul.addr %s3602, 4
        %s3604 = scalar_lea.vmem %s3, %s3603
      $region44: #{tpu_custom_call.1} parent=39 // pred_fallthru
        _
    $region40: #{tpu_custom_call.1} parent=5 // pred_fallthru
      _
  $region6: #{tpu_custom_call.1} parent=0 // loop_footer
    %s13 = sadd.s32 1, %s9
  $region7: #{tpu_custom_call.1} parent=0 // loop_footer_branch
    %8 = sbr.rel target = $region3
  $region8: #{tpu_custom_call.1} parent=0 // loop_exit
    _

</llo_original>
